<compile_context>
chip_gen: v5e
topology: v5e:2x2
jax: 0.10.0
libtpu: 0.0.40
codegen_flags: <defaults>
</compile_context>

<pallas_src>
import functools

import jax
import jax.numpy as jnp
import numpy as np
from jax import lax
from jax.experimental import pallas as pl
from jax.experimental.pallas import tpu as pltpu

EPS = 1e-5  # PyTorch BatchNorm2d default eps


# --------------------------------------------------------------------------- #
# kernel helpers
# --------------------------------------------------------------------------- #
def _zero_halo(pad_ref, nb, h, w, c, dtype):
    """Zero only the 1-pixel border of the padded scratch (interior is
    fully overwritten by the caller every grid step)."""
    zrow = jnp.zeros((nb, 1, w + 2, c), dtype)
    zcol = jnp.zeros((nb, h + 2, 1, c), dtype)
    pad_ref[:, pl.ds(0, 1), :, :] = zrow
    pad_ref[:, pl.ds(h + 1, 1), :, :] = zrow
    pad_ref[:, :, pl.ds(0, 1), :] = zcol
    pad_ref[:, :, pl.ds(w + 1, 1), :] = zcol


def _conv3x3(pad_ref, w_ref, nb, hout, wout, cin, dout, stride, fused):
    """3x3 conv over a zero-padded NHWC VMEM scratch via shifted-window matmul.

    fused=True : single im2col matmul (M, 9*cin) x (9*cin, dout)   (small channels)
    fused=False: 9 per-tap matmuls with an f32 accumulator          (large channels)
    Returns an f32 (nb, hout, wout, dout) array.
    """
    if stride == 1:
        ds_h = lambda d: pl.ds(d, hout)
        ds_w = lambda d: pl.ds(d, wout)
    else:
        # NOTE(perf): strided sublane (W) reads; a space-to-depth layout of the
        # padded activations would make these contiguous.  Correct as-is.
        ds_h = lambda d: pl.ds(d, hout, stride)
        ds_w = lambda d: pl.ds(d, wout, stride)

    m = nb * hout * wout
    if fused:
        taps = [pad_ref[:, ds_h(dh), ds_w(dw), :].reshape(m, cin)
                for dh in range(3) for dw in range(3)]
        patch = jnp.concatenate(taps, axis=-1)                   # (m, 9*cin)
        acc = jnp.dot(patch, w_ref[...], preferred_element_type=jnp.float32)
    else:
        acc = jnp.zeros((m, dout), jnp.float32)
        for t in range(9):
            dh, dw = divmod(t, 3)
            patch = pad_ref[:, ds_h(dh), ds_w(dw), :].reshape(m, cin)
            acc = acc + jnp.dot(patch, w_ref[t],
                                preferred_element_type=jnp.float32)
    return acc.reshape(nb, hout, wout, dout)


def _bottleneck_ir_kernel(stride, identity_shortcut, fuse1, fuse2, cdtype, *refs):
    if identity_shortcut:
        (x_ref, xs_ref, bn1s_ref, bn1b_ref, w1_ref, alpha_ref,
         w2_ref, bn2s_ref, bn2b_ref,
         out_ref, xpad_ref, y1pad_ref) = refs
        wsc_ref = scs_ref = scb_ref = None
    else:
        (x_ref, xs_ref, bn1s_ref, bn1b_ref, w1_ref, alpha_ref,
         w2_ref, bn2s_ref, bn2b_ref, wsc_ref, scs_ref, scb_ref,
         out_ref, xpad_ref, y1pad_ref) = refs

    NB, H, W, Cin = x_ref.shape
    _, Ho, Wo, D = out_ref.shape

    # ---- res branch: eval-mode BatchNorm2d(in_channel) (folded scale/shift) ----
    xbn = x_ref[...] * bn1s_ref[...] + bn1b_ref[...]             # f32 (NB,H,W,Cin)

    # Zero only the halo; re-done every step so correctness is independent of
    # how the "parallel" grid axis is split across cores.
    _zero_halo(xpad_ref, NB, H, W, Cin, cdtype)
    xpad_ref[:, pl.ds(1, H), pl.ds(1, W), :] = xbn.astype(cdtype)

    # ---- conv1: 3x3, stride 1, pad 1, no bias (bf16 operands, f32 acc) ----
    y1 = _conv3x3(xpad_ref, w1_ref, NB, H, W, Cin, D, 1, fuse1)

    # ---- PReLU(depth) (f32) ----
    y1 = jnp.where(y1 > 0, y1, alpha_ref[...] * y1)

    # ---- conv2: 3x3, stride `stride`, pad 1, no bias + BN2 ----
    _zero_halo(y1pad_ref, NB, H, W, D, cdtype)
    y1pad_ref[:, pl.ds(1, H), pl.ds(1, W), :] = y1.astype(cdtype)
    res = _conv3x3(y1pad_ref, w2_ref, NB, Ho, Wo, D, D, stride, fuse2)
    res = res * bn2s_ref[...] + bn2b_ref[...]

    # ---- shortcut (subsample already done in the wrapper) ----
    xs = xs_ref[...]                                             # f32 (NB,Ho,Wo,Cin)
    if identity_shortcut:
        sc = xs                                                  # MaxPool2d(1, stride)
    else:
        sc = jnp.dot(xs.reshape(NB * Ho * Wo, Cin).astype(cdtype), wsc_ref[...],
                     preferred_element_type=jnp.float32).reshape(NB, Ho, Wo, D)
        sc = sc * scs_ref[...] + scb_ref[...]

    out_ref[...] = (res + sc).astype(out_ref.dtype)


# --------------------------------------------------------------------------- #
# wrapper
# --------------------------------------------------------------------------- #
def _pick_batch_block(n, h, w, cin, d, ho, wo, compute_bytes):
    """Largest divisor of n (<= 8) whose per-step VMEM working set stays small
    (conservative so the default scoped VMEM limit is fine on v5e/v6e/v7x)."""
    budget = 8 * 1024 * 1024
    best = 1
    for nb in range(1, min(n, 8) + 1):
        if n % nb:
            continue
        scratch = nb * (h + 2) * (w + 2) * (cin + d) * compute_bytes
        io = 2 * nb * (h * w * cin + ho * wo * cin + ho * wo * d) * 4  # dbl-buffered
        if scratch + io <= budget:
            best = nb
    return best


def bottleneck_ir_forward(x_nchw, params, stride, compute_dtype=jnp.bfloat16):
    """Forward pass of bottleneck_IR.  x_nchw: (N, Cin, H, W) float32 (NCHW).

    params = (bn1_g, bn1_b, bn1_m, bn1_v, w1(3,3,Cin,D), alpha(D), w2(3,3,D,D),
              bn2_g, bn2_b, bn2_m, bn2_v, wsc(Cin,D) or None, bnsc_g, bnsc_b,
              bnsc_m, bnsc_v).  wsc is None <=> in_channel == depth
              (PyTorch uses MaxPool2d(1, stride) as the shortcut).
    """
    (bn1_g, bn1_b, bn1_m, bn1_v, w1, alpha, w2,
     bn2_g, bn2_b, bn2_m, bn2_v,
     wsc, bnsc_g, bnsc_b, bnsc_m, bnsc_v) = params

    x = jnp.transpose(x_nchw, (0, 2, 3, 1)).astype(jnp.float32)   # NHWC
    N, H, W, Cin = x.shape
    D = w1.shape[-1]
    Ho = (H - 1) // stride + 1
    Wo = (W - 1) // stride + 1
    identity_shortcut = wsc is None

    # Shortcut spatial subsample done here (plain XLA strided slice) so the
    # kernel never does strided sublane reads for the shortcut.
    xs = x[:, ::stride, ::stride, :]                              # (N, Ho, Wo, Cin)

    # Fold eval-mode BatchNorm into per-channel scale/shift, shape (1, C).
    def fold(g, b, m, v):
        s = g / jnp.sqrt(v + EPS)
        return s.reshape(1, -1), (b - m * s).reshape(1, -1)

    bn1s, bn1sh = fold(bn1_g, bn1_b, bn1_m, bn1_v)
    bn2s, bn2sh = fold(bn2_g, bn2_b, bn2_m, bn2_v)
    alpha_r = alpha.reshape(1, -1)

    # im2col-fuse the 9 taps when channels are small; per-tap matmuls otherwise.
    fuse1 = Cin < 128
    fuse2 = D < 128
    w1r = (w1.reshape(9 * Cin, D) if fuse1
           else w1.reshape(9, Cin, D)).astype(compute_dtype)
    w2r = (w2.reshape(9 * D, D) if fuse2
           else w2.reshape(9, D, D)).astype(compute_dtype)

    cbytes = np.dtype(compute_dtype).itemsize
    NB = _pick_batch_block(N, H, W, Cin, D, Ho, Wo, cbytes)

    kernel = functools.partial(_bottleneck_ir_kernel, stride, identity_shortcut,
                               fuse1, fuse2, compute_dtype)

    def const_spec(shape):
        nd = len(shape)
        return pl.BlockSpec(shape, lambda n, _nd=nd: (0,) * _nd)

    in_specs = [
        pl.BlockSpec((NB, H, W, Cin), lambda n: (n, 0, 0, 0)),     # x
        pl.BlockSpec((NB, Ho, Wo, Cin), lambda n: (n, 0, 0, 0)),   # x subsampled
        const_spec((1, Cin)), const_spec((1, Cin)),                # BN1 scale/shift
        const_spec(w1r.shape),                                     # conv1 weight
        const_spec((1, D)),                                        # PReLU alpha
        const_spec(w2r.shape),                                     # conv2 weight
        const_spec((1, D)), const_spec((1, D)),                    # BN2 scale/shift
    ]
    inputs = [x, xs, bn1s, bn1sh, w1r, alpha_r, w2r, bn2s, bn2sh]
    if not identity_shortcut:
        scs, scsh = fold(bnsc_g, bnsc_b, bnsc_m, bnsc_v)
        in_specs += [const_spec((Cin, D)), const_spec((1, D)), const_spec((1, D))]
        inputs += [wsc.astype(compute_dtype), scs, scsh]

    out = pl.pallas_call(
        kernel,
        out_shape=jax.ShapeDtypeStruct((N, Ho, Wo, D), jnp.float32),
        grid_spec=pltpu.PrefetchScalarGridSpec(
            num_scalar_prefetch=0,
            grid=(N // NB,),
            in_specs=in_specs,
            out_specs=pl.BlockSpec((NB, Ho, Wo, D), lambda n: (n, 0, 0, 0)),
            scratch_shapes=[
                pltpu.VMEM((NB, H + 2, W + 2, Cin), compute_dtype),  # padded BN1(x)
                pltpu.VMEM((NB, H + 2, W + 2, D), compute_dtype),    # padded PReLU out
            ],
        ),
        compiler_params=pltpu.CompilerParams(
            dimension_semantics=("parallel",)),   # batch blocks are independent
    )(*inputs)

    return jnp.transpose(out, (0, 3, 1, 2))   # back to NCHW


# --------------------------------------------------------------------------- #
# pure-JAX reference (mirrors the PyTorch module in eval mode)
# --------------------------------------------------------------------------- #
def reference_forward(x_nchw, params, stride):
    (bn1_g, bn1_b, bn1_m, bn1_v, w1, alpha, w2,
     bn2_g, bn2_b, bn2_m, bn2_v,
     wsc, bnsc_g, bnsc_b, bnsc_m, bnsc_v) = params
    x = jnp.transpose(x_nchw, (0, 2, 3, 1)).astype(jnp.float32)
    dn = ('NHWC', 'HWIO', 'NHWC')
    prec = lax.Precision.HIGHEST

    def bn(y, g, b, m, v):
        return (y - m) / jnp.sqrt(v + EPS) * g + b

    xbn = bn(x, bn1_g, bn1_b, bn1_m, bn1_v)
    y1 = lax.conv_general_dilated(xbn, w1, (1, 1), ((1, 1), (1, 1)),
                                  dimension_numbers=dn, precision=prec)
    y1 = jnp.where(y1 > 0, y1, alpha * y1)
    y2 = lax.conv_general_dilated(y1, w2, (stride, stride), ((1, 1), (1, 1)),
                                  dimension_numbers=dn, precision=prec)
    res = bn(y2, bn2_g, bn2_b, bn2_m, bn2_v)
    if wsc is None:                                  # MaxPool2d(1, stride)
        sc = x[:, ::stride, ::stride, :]
    else:
        sc = lax.conv_general_dilated(x, wsc.reshape(1, 1, *wsc.shape),
                                      (stride, stride), ((0, 0), (0, 0)),
                                      dimension_numbers=dn, precision=prec)
        sc = bn(sc, bnsc_g, bnsc_b, bnsc_m, bnsc_v)
    return jnp.transpose(res + sc, (0, 3, 1, 2))


# --------------------------------------------------------------------------- #
# test
# --------------------------------------------------------------------------- #
def _make_params(key, cin, d, identity_shortcut):
    ks = jax.random.split(key, 16)
    nrm = lambda k, s, sc: jax.random.normal(k, s, jnp.float32) * sc
    if identity_shortcut:
        wsc = bnsc_g = bnsc_b = bnsc_m = bnsc_v = None
    else:
        wsc = nrm(ks[10], (cin, d), 0.2)
        bnsc_g = nrm(ks[11], (d,), 0.5) + 1.0
        bnsc_b = nrm(ks[12], (d,), 0.1)
        bnsc_m = nrm(ks[13], (d,), 0.1)
        bnsc_v = jax.random.uniform(ks[14], (d,), jnp.float32, 0.5, 1.5)
    return (
        nrm(ks[0], (cin,), 0.5) + 1.0,                              # BN1 gamma
        nrm(ks[1], (cin,), 0.1),                                    # BN1 beta
        nrm(ks[2], (cin,), 0.1),                                    # BN1 running_mean
        jax.random.uniform(ks[3], (cin,), jnp.float32, 0.5, 1.5),   # BN1 running_var
        nrm(ks[4], (3, 3, cin, d), 0.1),                            # conv1 weight (HWIO)
        jnp.full((d,), 0.25, jnp.float32),                          # PReLU alpha
        nrm(ks[5], (3, 3, d, d), 0.1),                              # conv2 weight (HWIO)
        nrm(ks[6], (d,), 0.5) + 1.0,                                # BN2 gamma
        nrm(ks[7], (d,), 0.1),                                      # BN2 beta
        nrm(ks[8], (d,), 0.1),                                      # BN2 running_mean
        jax.random.uniform(ks[9], (d,), jnp.float32, 0.5, 1.5),     # BN2 running_var
        wsc, bnsc_g, bnsc_b, bnsc_m, bnsc_v,                        # shortcut (or None)
    )


if __name__ == "__main__":
    key = jax.random.PRNGKey(0)
    k_p1, k_p2, k_x1, k_x2 = jax.random.split(key, 4)

    # --- case 1: projection shortcut (in_channel != depth), stride 2 ---------
    N, Cin, H, W, D, stride = 2, 4, 16, 16, 8, 2
    params1 = _make_params(k_p1, Cin, D, identity_shortcut=False)
    x1 = jax.random.normal(k_x1, (N, Cin, H, W), jnp.float32)
    ref1 = reference_forward(x1, params1, stride)

    # f32-operand run: validates the conv / pad / stride index math tightly.
    out1_f32 = jax.block_until_ready(
        bottleneck_ir_forward(x1, params1, stride, compute_dtype=jnp.float32))
    np.testing.assert_allclose(np.asarray(out1_f32), np.asarray(ref1),
                               atol=1e-3, rtol=1e-3)

    # bf16-operand run (default, MXU-native): looser tolerance vs f32 reference.
    out1 = jax.block_until_ready(bottleneck_ir_forward(x1, params1, stride))
    np.testing.assert_allclose(np.asarray(out1), np.asarray(ref1),
                               atol=5e-2, rtol=5e-2)

    # --- case 2: identity shortcut (in_channel == depth -> MaxPool2d(1, s)) --
    Cin2 = D
    params2 = _make_params(k_p2, Cin2, D, identity_shortcut=True)
    x2 = jax.random.normal(k_x2, (N, Cin2, H, W), jnp.float32)
    ref2 = reference_forward(x2, params2, stride)
    out2 = jax.block_until_ready(bottleneck_ir_forward(x2, params2, stride))
    np.testing.assert_allclose(np.asarray(out2), np.asarray(ref2),
                               atol=5e-2, rtol=5e-2)

    print("KERNEL_OK")
</pallas_src>

<mosaic_0001>
module attributes {stable_mosaic.version = 11 : i64} {
  func.func @_bottleneck_ir_kernel(%arg0: i32, %arg1: memref<2x16x16x4xf32, #tpu.memory_space<vmem>>, %arg2: memref<2x8x8x4xf32, #tpu.memory_space<vmem>>, %arg3: memref<1x4xf32, #tpu.memory_space<vmem>>, %arg4: memref<1x4xf32, #tpu.memory_space<vmem>>, %arg5: memref<36x8xf32, #tpu.memory_space<vmem>>, %arg6: memref<1x8xf32, #tpu.memory_space<vmem>>, %arg7: memref<72x8xf32, #tpu.memory_space<vmem>>, %arg8: memref<1x8xf32, #tpu.memory_space<vmem>>, %arg9: memref<1x8xf32, #tpu.memory_space<vmem>>, %arg10: memref<4x8xf32, #tpu.memory_space<vmem>>, %arg11: memref<1x8xf32, #tpu.memory_space<vmem>>, %arg12: memref<1x8xf32, #tpu.memory_space<vmem>>, %arg13: memref<2x8x8x8xf32, #tpu.memory_space<vmem>>, %arg14: memref<2x18x18x4xf32, #tpu.memory_space<vmem>>, %arg15: memref<2x18x18x8xf32, #tpu.memory_space<vmem>>) attributes {dimension_semantics = [#tpu.dimension_semantics<parallel>], iteration_bounds = array<i64: 1>, scalar_prefetch = 0 : i64, scratch_operands = 2 : i64, tpu.core_type = #tpu.core_type<tc>, window_params = [{transform_indices = @transform_0, window_bounds = array<i64: 2, 16, 16, 4>}, {transform_indices = @transform_1, window_bounds = array<i64: 2, 8, 8, 4>}, {pipeline_mode = #tpu.pipeline_mode<synchronous>, transform_indices = @transform_2, window_bounds = array<i64: 1, 4>}, {pipeline_mode = #tpu.pipeline_mode<synchronous>, transform_indices = @transform_3, window_bounds = array<i64: 1, 4>}, {pipeline_mode = #tpu.pipeline_mode<synchronous>, transform_indices = @transform_4, window_bounds = array<i64: 36, 8>}, {pipeline_mode = #tpu.pipeline_mode<synchronous>, transform_indices = @transform_5, window_bounds = array<i64: 1, 8>}, {pipeline_mode = #tpu.pipeline_mode<synchronous>, transform_indices = @transform_6, window_bounds = array<i64: 72, 8>}, {pipeline_mode = #tpu.pipeline_mode<synchronous>, transform_indices = @transform_7, window_bounds = array<i64: 1, 8>}, {pipeline_mode = #tpu.pipeline_mode<synchronous>, transform_indices = @transform_8, window_bounds = array<i64: 1, 8>}, {pipeline_mode = #tpu.pipeline_mode<synchronous>, transform_indices = @transform_9, window_bounds = array<i64: 4, 8>}, {pipeline_mode = #tpu.pipeline_mode<synchronous>, transform_indices = @transform_10, window_bounds = array<i64: 1, 8>}, {pipeline_mode = #tpu.pipeline_mode<synchronous>, transform_indices = @transform_11, window_bounds = array<i64: 1, 8>}, {transform_indices = @transform_12, window_bounds = array<i64: 2, 8, 8, 8>}]} {
    %c0 = arith.constant 0 : index
    %c0_0 = arith.constant 0 : index
    %c0_1 = arith.constant 0 : index
    %c0_2 = arith.constant 0 : index
    %0 = vector.load %arg1[%c0, %c0_0, %c0_1, %c0_2] : memref<2x16x16x4xf32, #tpu.memory_space<vmem>>, vector<2x16x16x4xf32>
    %c0_3 = arith.constant 0 : index
    %c0_4 = arith.constant 0 : index
    %1 = vector.load %arg3[%c0_3, %c0_4] : memref<1x4xf32, #tpu.memory_space<vmem>>, vector<1x4xf32>
    %2 = vector.shape_cast %1 : vector<1x4xf32> to vector<1x1x1x4xf32>
    %3 = vector.broadcast %2 : vector<1x1x1x4xf32> to vector<2x16x16x4xf32>
    %4 = arith.mulf %0, %3 : vector<2x16x16x4xf32>
    %c0_5 = arith.constant 0 : index
    %c0_6 = arith.constant 0 : index
    %5 = vector.load %arg4[%c0_5, %c0_6] : memref<1x4xf32, #tpu.memory_space<vmem>>, vector<1x4xf32>
    %6 = vector.shape_cast %5 : vector<1x4xf32> to vector<1x1x1x4xf32>
    %7 = vector.broadcast %6 : vector<1x1x1x4xf32> to vector<2x16x16x4xf32>
    %8 = arith.addf %4, %7 : vector<2x16x16x4xf32>
    %cst = arith.constant 0.000000e+00 : f32
    %9 = vector.broadcast %cst : f32 to vector<2x1x18x4xf32>
    %cst_7 = arith.constant 0.000000e+00 : f32
    %10 = vector.broadcast %cst_7 : f32 to vector<2x18x1x4xf32>
    %c0_8 = arith.constant 0 : index
    %c0_9 = arith.constant 0 : index
    %c0_10 = arith.constant 0 : index
    %c0_11 = arith.constant 0 : index
    %11 = vector.load %arg14[%c0_8, %c0_9, %c0_10, %c0_11] : memref<2x18x18x4xf32, #tpu.memory_space<vmem>>, vector<2x1x18x4xf32>
    tpu.vector_store %arg14[%c0_8, %c0_9, %c0_10, %c0_11], %9 {strides = array<i32>} : memref<2x18x18x4xf32, #tpu.memory_space<vmem>>, vector<2x1x18x4xf32>,
    %c0_12 = arith.constant 0 : index
    %c17 = arith.constant 17 : index
    %c0_13 = arith.constant 0 : index
    %c0_14 = arith.constant 0 : index
    %12 = vector.load %arg14[%c0_12, %c17, %c0_13, %c0_14] : memref<2x18x18x4xf32, #tpu.memory_space<vmem>>, vector<2x1x18x4xf32>
    tpu.vector_store %arg14[%c0_12, %c17, %c0_13, %c0_14], %9 {strides = array<i32>} : memref<2x18x18x4xf32, #tpu.memory_space<vmem>>, vector<2x1x18x4xf32>,
    %c0_15 = arith.constant 0 : index
    %c0_16 = arith.constant 0 : index
    %c0_17 = arith.constant 0 : index
    %c0_18 = arith.constant 0 : index
    %13 = vector.load %arg14[%c0_15, %c0_16, %c0_17, %c0_18] : memref<2x18x18x4xf32, #tpu.memory_space<vmem>>, vector<2x18x1x4xf32>
    tpu.vector_store %arg14[%c0_15, %c0_16, %c0_17, %c0_18], %10 {strides = array<i32>} : memref<2x18x18x4xf32, #tpu.memory_space<vmem>>, vector<2x18x1x4xf32>,
    %c0_19 = arith.constant 0 : index
    %c0_20 = arith.constant 0 : index
    %c17_21 = arith.constant 17 : index
    %c0_22 = arith.constant 0 : index
    %14 = vector.load %arg14[%c0_19, %c0_20, %c17_21, %c0_22] : memref<2x18x18x4xf32, #tpu.memory_space<vmem>>, vector<2x18x1x4xf32>
    tpu.vector_store %arg14[%c0_19, %c0_20, %c17_21, %c0_22], %10 {strides = array<i32>} : memref<2x18x18x4xf32, #tpu.memory_space<vmem>>, vector<2x18x1x4xf32>,
    %c0_23 = arith.constant 0 : index
    %c1 = arith.constant 1 : index
    %c1_24 = arith.constant 1 : index
    %c0_25 = arith.constant 0 : index
    %15 = vector.load %arg14[%c0_23, %c1, %c1_24, %c0_25] : memref<2x18x18x4xf32, #tpu.memory_space<vmem>>, vector<2x16x16x4xf32>
    tpu.vector_store %arg14[%c0_23, %c1, %c1_24, %c0_25], %8 {strides = array<i32>} : memref<2x18x18x4xf32, #tpu.memory_space<vmem>>, vector<2x16x16x4xf32>,
    %c0_26 = arith.constant 0 : index
    %c0_27 = arith.constant 0 : index
    %c0_28 = arith.constant 0 : index
    %c0_29 = arith.constant 0 : index
    %16 = vector.load %arg14[%c0_26, %c0_27, %c0_28, %c0_29] : memref<2x18x18x4xf32, #tpu.memory_space<vmem>>, vector<2x16x16x4xf32>
    %17 = vector.shape_cast %16 : vector<2x16x16x4xf32> to vector<512x4xf32>
    %c0_30 = arith.constant 0 : index
    %c0_31 = arith.constant 0 : index
    %c1_32 = arith.constant 1 : index
    %c0_33 = arith.constant 0 : index
    %18 = vector.load %arg14[%c0_30, %c0_31, %c1_32, %c0_33] : memref<2x18x18x4xf32, #tpu.memory_space<vmem>>, vector<2x16x16x4xf32>
    %19 = vector.shape_cast %18 : vector<2x16x16x4xf32> to vector<512x4xf32>
    %c0_34 = arith.constant 0 : index
    %c0_35 = arith.constant 0 : index
    %c2 = arith.constant 2 : index
    %c0_36 = arith.constant 0 : index
    %20 = vector.load %arg14[%c0_34, %c0_35, %c2, %c0_36] : memref<2x18x18x4xf32, #tpu.memory_space<vmem>>, vector<2x16x16x4xf32>
    %21 = vector.shape_cast %20 : vector<2x16x16x4xf32> to vector<512x4xf32>
    %c0_37 = arith.constant 0 : index
    %c1_38 = arith.constant 1 : index
    %c0_39 = arith.constant 0 : index
    %c0_40 = arith.constant 0 : index
    %22 = vector.load %arg14[%c0_37, %c1_38, %c0_39, %c0_40] : memref<2x18x18x4xf32, #tpu.memory_space<vmem>>, vector<2x16x16x4xf32>
    %23 = vector.shape_cast %22 : vector<2x16x16x4xf32> to vector<512x4xf32>
    %c0_41 = arith.constant 0 : index
    %c1_42 = arith.constant 1 : index
    %c1_43 = arith.constant 1 : index
    %c0_44 = arith.constant 0 : index
    %24 = vector.load %arg14[%c0_41, %c1_42, %c1_43, %c0_44] : memref<2x18x18x4xf32, #tpu.memory_space<vmem>>, vector<2x16x16x4xf32>
    %25 = vector.shape_cast %24 : vector<2x16x16x4xf32> to vector<512x4xf32>
    %c0_45 = arith.constant 0 : index
    %c1_46 = arith.constant 1 : index
    %c2_47 = arith.constant 2 : index
    %c0_48 = arith.constant 0 : index
    %26 = vector.load %arg14[%c0_45, %c1_46, %c2_47, %c0_48] : memref<2x18x18x4xf32, #tpu.memory_space<vmem>>, vector<2x16x16x4xf32>
    %27 = vector.shape_cast %26 : vector<2x16x16x4xf32> to vector<512x4xf32>
    %c0_49 = arith.constant 0 : index
    %c2_50 = arith.constant 2 : index
    %c0_51 = arith.constant 0 : index
    %c0_52 = arith.constant 0 : index
    %28 = vector.load %arg14[%c0_49, %c2_50, %c0_51, %c0_52] : memref<2x18x18x4xf32, #tpu.memory_space<vmem>>, vector<2x16x16x4xf32>
    %29 = vector.shape_cast %28 : vector<2x16x16x4xf32> to vector<512x4xf32>
    %c0_53 = arith.constant 0 : index
    %c2_54 = arith.constant 2 : index
    %c1_55 = arith.constant 1 : index
    %c0_56 = arith.constant 0 : index
    %30 = vector.load %arg14[%c0_53, %c2_54, %c1_55, %c0_56] : memref<2x18x18x4xf32, #tpu.memory_space<vmem>>, vector<2x16x16x4xf32>
    %31 = vector.shape_cast %30 : vector<2x16x16x4xf32> to vector<512x4xf32>
    %c0_57 = arith.constant 0 : index
    %c2_58 = arith.constant 2 : index
    %c2_59 = arith.constant 2 : index
    %c0_60 = arith.constant 0 : index
    %32 = vector.load %arg14[%c0_57, %c2_58, %c2_59, %c0_60] : memref<2x18x18x4xf32, #tpu.memory_space<vmem>>, vector<2x16x16x4xf32>
    %33 = vector.shape_cast %32 : vector<2x16x16x4xf32> to vector<512x4xf32>
    %34 = tpu.concatenate %17, %19, %21, %23, %25, %27, %29, %31, %33 in 1 : vector<512x4xf32>, vector<512x4xf32>, vector<512x4xf32>, vector<512x4xf32>, vector<512x4xf32>, vector<512x4xf32>, vector<512x4xf32>, vector<512x4xf32>, vector<512x4xf32> -> vector<512x36xf32>
    %c0_61 = arith.constant 0 : index
    %c0_62 = arith.constant 0 : index
    %35 = vector.load %arg5[%c0_61, %c0_62] : memref<36x8xf32, #tpu.memory_space<vmem>>, vector<36x8xf32>
    %cst_63 = arith.constant dense<0.000000e+00> : vector<512x8xf32>
    %36 = tpu.matmul %34, %35, %cst_63 {dimension_numbers = #tpu.dot_dimension_numbers<[1], [0], [0], [1], [0, 0, 1, 1], [], []>} : vector<512x36xf32>, vector<36x8xf32>, vector<512x8xf32> -> vector<512x8xf32>
    %37 = vector.shape_cast %36 : vector<512x8xf32> to vector<2x16x16x8xf32>
    %cst_64 = arith.constant 0.000000e+00 : f32
    %38 = vector.broadcast %cst_64 : f32 to vector<2x16x16x8xf32>
    %39 = arith.cmpf ogt, %37, %38 : vector<2x16x16x8xf32>
    %c0_65 = arith.constant 0 : index
    %c0_66 = arith.constant 0 : index
    %40 = vector.load %arg6[%c0_65, %c0_66] : memref<1x8xf32, #tpu.memory_space<vmem>>, vector<1x8xf32>
    %41 = vector.shape_cast %40 : vector<1x8xf32> to vector<1x1x1x8xf32>
    %42 = vector.broadcast %41 : vector<1x1x1x8xf32> to vector<2x16x16x8xf32>
    %43 = arith.mulf %42, %37 : vector<2x16x16x8xf32>
    %44 = arith.select %39, %37, %43 : vector<2x16x16x8xi1>, vector<2x16x16x8xf32>
    %cst_67 = arith.constant 0.000000e+00 : f32
    %45 = vector.broadcast %cst_67 : f32 to vector<2x1x18x8xf32>
    %cst_68 = arith.constant 0.000000e+00 : f32
    %46 = vector.broadcast %cst_68 : f32 to vector<2x18x1x8xf32>
    %c0_69 = arith.constant 0 : index
    %c0_70 = arith.constant 0 : index
    %c0_71 = arith.constant 0 : index
    %c0_72 = arith.constant 0 : index
    %47 = vector.load %arg15[%c0_69, %c0_70, %c0_71, %c0_72] : memref<2x18x18x8xf32, #tpu.memory_space<vmem>>, vector<2x1x18x8xf32>
    tpu.vector_store %arg15[%c0_69, %c0_70, %c0_71, %c0_72], %45 {strides = array<i32>} : memref<2x18x18x8xf32, #tpu.memory_space<vmem>>, vector<2x1x18x8xf32>,
    %c0_73 = arith.constant 0 : index
    %c17_74 = arith.constant 17 : index
    %c0_75 = arith.constant 0 : index
    %c0_76 = arith.constant 0 : index
    %48 = vector.load %arg15[%c0_73, %c17_74, %c0_75, %c0_76] : memref<2x18x18x8xf32, #tpu.memory_space<vmem>>, vector<2x1x18x8xf32>
    tpu.vector_store %arg15[%c0_73, %c17_74, %c0_75, %c0_76], %45 {strides = array<i32>} : memref<2x18x18x8xf32, #tpu.memory_space<vmem>>, vector<2x1x18x8xf32>,
    %c0_77 = arith.constant 0 : index
    %c0_78 = arith.constant 0 : index
    %c0_79 = arith.constant 0 : index
    %c0_80 = arith.constant 0 : index
    %49 = vector.load %arg15[%c0_77, %c0_78, %c0_79, %c0_80] : memref<2x18x18x8xf32, #tpu.memory_space<vmem>>, vector<2x18x1x8xf32>
    tpu.vector_store %arg15[%c0_77, %c0_78, %c0_79, %c0_80], %46 {strides = array<i32>} : memref<2x18x18x8xf32, #tpu.memory_space<vmem>>, vector<2x18x1x8xf32>,
    %c0_81 = arith.constant 0 : index
    %c0_82 = arith.constant 0 : index
    %c17_83 = arith.constant 17 : index
    %c0_84 = arith.constant 0 : index
    %50 = vector.load %arg15[%c0_81, %c0_82, %c17_83, %c0_84] : memref<2x18x18x8xf32, #tpu.memory_space<vmem>>, vector<2x18x1x8xf32>
    tpu.vector_store %arg15[%c0_81, %c0_82, %c17_83, %c0_84], %46 {strides = array<i32>} : memref<2x18x18x8xf32, #tpu.memory_space<vmem>>, vector<2x18x1x8xf32>,
    %c0_85 = arith.constant 0 : index
    %c1_86 = arith.constant 1 : index
    %c1_87 = arith.constant 1 : index
    %c0_88 = arith.constant 0 : index
    %51 = vector.load %arg15[%c0_85, %c1_86, %c1_87, %c0_88] : memref<2x18x18x8xf32, #tpu.memory_space<vmem>>, vector<2x16x16x8xf32>
    tpu.vector_store %arg15[%c0_85, %c1_86, %c1_87, %c0_88], %44 {strides = array<i32>} : memref<2x18x18x8xf32, #tpu.memory_space<vmem>>, vector<2x16x16x8xf32>,
    %c0_89 = arith.constant 0 : index
    %c0_90 = arith.constant 0 : index
    %c0_91 = arith.constant 0 : index
    %c0_92 = arith.constant 0 : index
    %52 = tpu.strided_load %arg15[%c0_89, %c0_90, %c0_91, %c0_92] {strides = array<i32: 1, 2, 2, 1>} : memref<2x18x18x8xf32, #tpu.memory_space<vmem>>, vector<2x8x8x8xf32>
    %53 = vector.shape_cast %52 : vector<2x8x8x8xf32> to vector<128x8xf32>
    %c0_93 = arith.constant 0 : index
    %c0_94 = arith.constant 0 : index
    %c1_95 = arith.constant 1 : index
    %c0_96 = arith.constant 0 : index
    %54 = tpu.strided_load %arg15[%c0_93, %c0_94, %c1_95, %c0_96] {strides = array<i32: 1, 2, 2, 1>} : memref<2x18x18x8xf32, #tpu.memory_space<vmem>>, vector<2x8x8x8xf32>
    %55 = vector.shape_cast %54 : vector<2x8x8x8xf32> to vector<128x8xf32>
    %c0_97 = arith.constant 0 : index
    %c0_98 = arith.constant 0 : index
    %c2_99 = arith.constant 2 : index
    %c0_100 = arith.constant 0 : index
    %56 = tpu.strided_load %arg15[%c0_97, %c0_98, %c2_99, %c0_100] {strides = array<i32: 1, 2, 2, 1>} : memref<2x18x18x8xf32, #tpu.memory_space<vmem>>, vector<2x8x8x8xf32>
    %57 = vector.shape_cast %56 : vector<2x8x8x8xf32> to vector<128x8xf32>
    %c0_101 = arith.constant 0 : index
    %c1_102 = arith.constant 1 : index
    %c0_103 = arith.constant 0 : index
    %c0_104 = arith.constant 0 : index
    %58 = tpu.strided_load %arg15[%c0_101, %c1_102, %c0_103, %c0_104] {strides = array<i32: 1, 2, 2, 1>} : memref<2x18x18x8xf32, #tpu.memory_space<vmem>>, vector<2x8x8x8xf32>
    %59 = vector.shape_cast %58 : vector<2x8x8x8xf32> to vector<128x8xf32>
    %c0_105 = arith.constant 0 : index
    %c1_106 = arith.constant 1 : index
    %c1_107 = arith.constant 1 : index
    %c0_108 = arith.constant 0 : index
    %60 = tpu.strided_load %arg15[%c0_105, %c1_106, %c1_107, %c0_108] {strides = array<i32: 1, 2, 2, 1>} : memref<2x18x18x8xf32, #tpu.memory_space<vmem>>, vector<2x8x8x8xf32>
    %61 = vector.shape_cast %60 : vector<2x8x8x8xf32> to vector<128x8xf32>
    %c0_109 = arith.constant 0 : index
    %c1_110 = arith.constant 1 : index
    %c2_111 = arith.constant 2 : index
    %c0_112 = arith.constant 0 : index
    %62 = tpu.strided_load %arg15[%c0_109, %c1_110, %c2_111, %c0_112] {strides = array<i32: 1, 2, 2, 1>} : memref<2x18x18x8xf32, #tpu.memory_space<vmem>>, vector<2x8x8x8xf32>
    %63 = vector.shape_cast %62 : vector<2x8x8x8xf32> to vector<128x8xf32>
    %c0_113 = arith.constant 0 : index
    %c2_114 = arith.constant 2 : index
    %c0_115 = arith.constant 0 : index
    %c0_116 = arith.constant 0 : index
    %64 = tpu.strided_load %arg15[%c0_113, %c2_114, %c0_115, %c0_116] {strides = array<i32: 1, 2, 2, 1>} : memref<2x18x18x8xf32, #tpu.memory_space<vmem>>, vector<2x8x8x8xf32>
    %65 = vector.shape_cast %64 : vector<2x8x8x8xf32> to vector<128x8xf32>
    %c0_117 = arith.constant 0 : index
    %c2_118 = arith.constant 2 : index
    %c1_119 = arith.constant 1 : index
    %c0_120 = arith.constant 0 : index
    %66 = tpu.strided_load %arg15[%c0_117, %c2_118, %c1_119, %c0_120] {strides = array<i32: 1, 2, 2, 1>} : memref<2x18x18x8xf32, #tpu.memory_space<vmem>>, vector<2x8x8x8xf32>
    %67 = vector.shape_cast %66 : vector<2x8x8x8xf32> to vector<128x8xf32>
    %c0_121 = arith.constant 0 : index
    %c2_122 = arith.constant 2 : index
    %c2_123 = arith.constant 2 : index
    %c0_124 = arith.constant 0 : index
    %68 = tpu.strided_load %arg15[%c0_121, %c2_122, %c2_123, %c0_124] {strides = array<i32: 1, 2, 2, 1>} : memref<2x18x18x8xf32, #tpu.memory_space<vmem>>, vector<2x8x8x8xf32>
    %69 = vector.shape_cast %68 : vector<2x8x8x8xf32> to vector<128x8xf32>
    %70 = tpu.concatenate %53, %55, %57, %59, %61, %63, %65, %67, %69 in 1 : vector<128x8xf32>, vector<128x8xf32>, vector<128x8xf32>, vector<128x8xf32>, vector<128x8xf32>, vector<128x8xf32>, vector<128x8xf32>, vector<128x8xf32>, vector<128x8xf32> -> vector<128x72xf32>
    %c0_125 = arith.constant 0 : index
    %c0_126 = arith.constant 0 : index
    %71 = vector.load %arg7[%c0_125, %c0_126] : memref<72x8xf32, #tpu.memory_space<vmem>>, vector<72x8xf32>
    %cst_127 = arith.constant dense<0.000000e+00> : vector<128x8xf32>
    %72 = tpu.matmul %70, %71, %cst_127 {dimension_numbers = #tpu.dot_dimension_numbers<[1], [0], [0], [1], [0, 0, 1, 1], [], []>} : vector<128x72xf32>, vector<72x8xf32>, vector<128x8xf32> -> vector<128x8xf32>
    %73 = vector.shape_cast %72 : vector<128x8xf32> to vector<2x8x8x8xf32>
    %c0_128 = arith.constant 0 : index
    %c0_129 = arith.constant 0 : index
    %74 = vector.load %arg8[%c0_128, %c0_129] : memref<1x8xf32, #tpu.memory_space<vmem>>, vector<1x8xf32>
    %75 = vector.shape_cast %74 : vector<1x8xf32> to vector<1x1x1x8xf32>
    %76 = vector.broadcast %75 : vector<1x1x1x8xf32> to vector<2x8x8x8xf32>
    %77 = arith.mulf %73, %76 : vector<2x8x8x8xf32>
    %c0_130 = arith.constant 0 : index
    %c0_131 = arith.constant 0 : index
    %78 = vector.load %arg9[%c0_130, %c0_131] : memref<1x8xf32, #tpu.memory_space<vmem>>, vector<1x8xf32>
    %79 = vector.shape_cast %78 : vector<1x8xf32> to vector<1x1x1x8xf32>
    %80 = vector.broadcast %79 : vector<1x1x1x8xf32> to vector<2x8x8x8xf32>
    %81 = arith.addf %77, %80 : vector<2x8x8x8xf32>
    %c0_132 = arith.constant 0 : index
    %c0_133 = arith.constant 0 : index
    %c0_134 = arith.constant 0 : index
    %c0_135 = arith.constant 0 : index
    %82 = vector.load %arg2[%c0_132, %c0_133, %c0_134, %c0_135] : memref<2x8x8x4xf32, #tpu.memory_space<vmem>>, vector<2x8x8x4xf32>
    %83 = vector.shape_cast %82 : vector<2x8x8x4xf32> to vector<128x4xf32>
    %c0_136 = arith.constant 0 : index
    %c0_137 = arith.constant 0 : index
    %84 = vector.load %arg10[%c0_136, %c0_137] : memref<4x8xf32, #tpu.memory_space<vmem>>, vector<4x8xf32>
    %cst_138 = arith.constant dense<0.000000e+00> : vector<128x8xf32>
    %85 = tpu.matmul %83, %84, %cst_138 {dimension_numbers = #tpu.dot_dimension_numbers<[1], [0], [0], [1], [0, 0, 1, 1], [], []>} : vector<128x4xf32>, vector<4x8xf32>, vector<128x8xf32> -> vector<128x8xf32>
    %86 = vector.shape_cast %85 : vector<128x8xf32> to vector<2x8x8x8xf32>
    %c0_139 = arith.constant 0 : index
    %c0_140 = arith.constant 0 : index
    %87 = vector.load %arg11[%c0_139, %c0_140] : memref<1x8xf32, #tpu.memory_space<vmem>>, vector<1x8xf32>
    %88 = vector.shape_cast %87 : vector<1x8xf32> to vector<1x1x1x8xf32>
    %89 = vector.broadcast %88 : vector<1x1x1x8xf32> to vector<2x8x8x8xf32>
    %90 = arith.mulf %86, %89 : vector<2x8x8x8xf32>
    %c0_141 = arith.constant 0 : index
    %c0_142 = arith.constant 0 : index
    %91 = vector.load %arg12[%c0_141, %c0_142] : memref<1x8xf32, #tpu.memory_space<vmem>>, vector<1x8xf32>
    %92 = vector.shape_cast %91 : vector<1x8xf32> to vector<1x1x1x8xf32>
    %93 = vector.broadcast %92 : vector<1x1x1x8xf32> to vector<2x8x8x8xf32>
    %94 = arith.addf %90, %93 : vector<2x8x8x8xf32>
    %95 = arith.addf %81, %94 : vector<2x8x8x8xf32>
    %c0_143 = arith.constant 0 : index
    %c0_144 = arith.constant 0 : index
    %c0_145 = arith.constant 0 : index
    %c0_146 = arith.constant 0 : index
    %96 = vector.load %arg13[%c0_143, %c0_144, %c0_145, %c0_146] : memref<2x8x8x8xf32, #tpu.memory_space<vmem>>, vector<2x8x8x8xf32>
    tpu.vector_store %arg13[%c0_143, %c0_144, %c0_145, %c0_146], %95 {strides = array<i32>} : memref<2x8x8x8xf32, #tpu.memory_space<vmem>>, vector<2x8x8x8xf32>,
    return
  }
  func.func @transform_0(%arg0: i32) -> (i32, i32, i32, i32) {
    %c0_i32 = arith.constant 0 : i32
    %c0_i32_0 = arith.constant 0 : i32
    %c0_i32_1 = arith.constant 0 : i32
    %c0_i32_2 = arith.constant 0 : i32
    return %arg0, %c0_i32, %c0_i32_0, %c0_i32_1 : i32, i32, i32, i32
  }
  func.func @transform_1(%arg0: i32) -> (i32, i32, i32, i32) {
    %c0_i32 = arith.constant 0 : i32
    %c0_i32_0 = arith.constant 0 : i32
    %c0_i32_1 = arith.constant 0 : i32
    %c0_i32_2 = arith.constant 0 : i32
    return %arg0, %c0_i32, %c0_i32_0, %c0_i32_1 : i32, i32, i32, i32
  }
  func.func @transform_2(%arg0: i32) -> (i32, i32) {
    %c0_i32 = arith.constant 0 : i32
    %c0_i32_0 = arith.constant 0 : i32
    %c0_i32_1 = arith.constant 0 : i32
    return %c0_i32, %c0_i32_0 : i32, i32
  }
  func.func @transform_3(%arg0: i32) -> (i32, i32) {
    %c0_i32 = arith.constant 0 : i32
    %c0_i32_0 = arith.constant 0 : i32
    %c0_i32_1 = arith.constant 0 : i32
    return %c0_i32, %c0_i32_0 : i32, i32
  }
  func.func @transform_4(%arg0: i32) -> (i32, i32) {
    %c0_i32 = arith.constant 0 : i32
    %c0_i32_0 = arith.constant 0 : i32
    %c0_i32_1 = arith.constant 0 : i32
    return %c0_i32, %c0_i32_0 : i32, i32
  }
  func.func @transform_5(%arg0: i32) -> (i32, i32) {
    %c0_i32 = arith.constant 0 : i32
    %c0_i32_0 = arith.constant 0 : i32
    %c0_i32_1 = arith.constant 0 : i32
    return %c0_i32, %c0_i32_0 : i32, i32
  }
  func.func @transform_6(%arg0: i32) -> (i32, i32) {
    %c0_i32 = arith.constant 0 : i32
    %c0_i32_0 = arith.constant 0 : i32
    %c0_i32_1 = arith.constant 0 : i32
    return %c0_i32, %c0_i32_0 : i32, i32
  }
  func.func @transform_7(%arg0: i32) -> (i32, i32) {
    %c0_i32 = arith.constant 0 : i32
    %c0_i32_0 = arith.constant 0 : i32
    %c0_i32_1 = arith.constant 0 : i32
    return %c0_i32, %c0_i32_0 : i32, i32
  }
  func.func @transform_8(%arg0: i32) -> (i32, i32) {
    %c0_i32 = arith.constant 0 : i32
    %c0_i32_0 = arith.constant 0 : i32
    %c0_i32_1 = arith.constant 0 : i32
    return %c0_i32, %c0_i32_0 : i32, i32
  }
  func.func @transform_9(%arg0: i32) -> (i32, i32) {
    %c0_i32 = arith.constant 0 : i32
    %c0_i32_0 = arith.constant 0 : i32
    %c0_i32_1 = arith.constant 0 : i32
    return %c0_i32, %c0_i32_0 : i32, i32
  }
  func.func @transform_10(%arg0: i32) -> (i32, i32) {
    %c0_i32 = arith.constant 0 : i32
    %c0_i32_0 = arith.constant 0 : i32
    %c0_i32_1 = arith.constant 0 : i32
    return %c0_i32, %c0_i32_0 : i32, i32
  }
  func.func @transform_11(%arg0: i32) -> (i32, i32) {
    %c0_i32 = arith.constant 0 : i32
    %c0_i32_0 = arith.constant 0 : i32
    %c0_i32_1 = arith.constant 0 : i32
    return %c0_i32, %c0_i32_0 : i32, i32
  }
  func.func @transform_12(%arg0: i32) -> (i32, i32, i32, i32) {
    %c0_i32 = arith.constant 0 : i32
    %c0_i32_0 = arith.constant 0 : i32
    %c0_i32_1 = arith.constant 0 : i32
    %c0_i32_2 = arith.constant 0 : i32
    return %arg0, %c0_i32, %c0_i32_0, %c0_i32_1 : i32, i32, i32, i32
  }
}

</mosaic_0001>

<llo_original>
// kernel: tpu_custom_call.1
$region0: #{tpu_custom_call.1}
  #allocation0 [shape = 'u32[]', space=smem, size = 0x4, offset = 0x4, fixed_abs, tag = 'smem constant byte address 0x4 - core index']
  #allocation1 [shape = 'u32[72,128]{1,0:T(1,128)}', space=vmem, size = 0x9000, scoped, tag = 'internal scratch']
  #allocation2 [shape = 'f32[2,18,18,4]{3,2,1,0:T(8,128)}', space=vmem, size = 0x6c000, scoped, tag = 'scratch operand']
  #allocation3 [shape = 'f32[2,18,18,8]{3,2,1,0:T(8,128)}', space=vmem, size = 0x6c000, scoped, tag = 'scratch operand']
  %s0 = inlined_call_operand.vmem [shape: f32[2,16,16,4], index: 0, kind: input, shape index: {}]
  %s1 = inlined_call_operand.vmem [shape: f32[2,8,8,4], index: 1, kind: input, shape index: {}]
  %s2 = inlined_call_operand.vmem [shape: f32[1,4], index: 2, kind: input, shape index: {}]
  %s3 = inlined_call_operand.vmem [shape: f32[1,4], index: 3, kind: input, shape index: {}]
  %s4 = inlined_call_operand.vmem [shape: f32[36,8], index: 4, kind: input, shape index: {}]
  %s5 = inlined_call_operand.vmem [shape: f32[1,8], index: 5, kind: input, shape index: {}]
  %s6 = inlined_call_operand.vmem [shape: f32[72,8], index: 6, kind: input, shape index: {}]
  %s7 = inlined_call_operand.vmem [shape: f32[1,8], index: 7, kind: input, shape index: {}]
  %s8 = inlined_call_operand.vmem [shape: f32[1,8], index: 8, kind: input, shape index: {}]
  %s9 = inlined_call_operand.vmem [shape: f32[4,8], index: 9, kind: input, shape index: {}]
  %s10 = inlined_call_operand.vmem [shape: f32[1,8], index: 10, kind: input, shape index: {}]
  %s11 = inlined_call_operand.vmem [shape: f32[1,8], index: 11, kind: input, shape index: {}]
  %s12 = inlined_call_operand.hbm [shape: f32[2,8,8,8], index: 12, kind: output, shape index: {}]
  %s13 = sld [smem:[#allocation0]]
  $region58: #{tpu_custom_call.1} parent=0
    _
  %s15 = ssub.s32 1, %s13
  %s16 = scalar_select 0, %s15, %s13
  $region1: #{tpu_custom_call.1} parent=0
    #allocation4 [shape = 'u8[65536]{0}', space=vmem, size = 0x10000, scoped, tag = 'output window, operand 0, single buffered']
    #allocation5 [shape = 's32[1]{0}', space=sflag, size = 0x4, scoped, tag = 'scoped memory for tpu_custom_call.1']
    %17 = vsyncpa [#allocation5], 0
    // Predicated region
    $region2: #{tpu_custom_call.1} parent=1 // pred_check
      _
    $region3: #{tpu_custom_call.1} parent=1 // pred_check_branch
      %19 = sbr.rel (0) target = $region5
    $region4: #{tpu_custom_call.1} parent=1 // pred_region
      _
    $region5: #{tpu_custom_call.1} parent=1 // pred_fallthru
      _
    // Predicated region
    $region6: #{tpu_custom_call.1} parent=1 // pred_check
      _
    $region7: #{tpu_custom_call.1} parent=1 // pred_check_branch
      %21 = sbr.rel (0) target = $region9
    $region8: #{tpu_custom_call.1} parent=1 // pred_region
      _
    $region9: #{tpu_custom_call.1} parent=1 // pred_fallthru
      _
    // Predicated region
    $region10: #{tpu_custom_call.1} parent=1 // pred_check
      _
    $region11: #{tpu_custom_call.1} parent=1 // pred_check_branch
      %23 = sbr.rel (0) target = $region13
    $region12: #{tpu_custom_call.1} parent=1 // pred_region
      _
    $region13: #{tpu_custom_call.1} parent=1 // pred_fallthru
      _
    // Predicated region
    $region14: #{tpu_custom_call.1} parent=1 // pred_check
      _
    $region15: #{tpu_custom_call.1} parent=1 // pred_check_branch
      %25 = sbr.rel (0) target = $region17
    $region16: #{tpu_custom_call.1} parent=1 // pred_region
      _
    $region17: #{tpu_custom_call.1} parent=1 // pred_fallthru
      _
    // Predicated region
    $region18: #{tpu_custom_call.1} parent=1 // pred_check
      _
    $region19: #{tpu_custom_call.1} parent=1 // pred_check_branch
      %27 = sbr.rel (0) target = $region21
    $region20: #{tpu_custom_call.1} parent=1 // pred_region
      _
    $region21: #{tpu_custom_call.1} parent=1 // pred_fallthru
      _
    // Predicated region
    $region22: #{tpu_custom_call.1} parent=1 // pred_check
      _
    $region23: #{tpu_custom_call.1} parent=1 // pred_check_branch
      %29 = sbr.rel (0) target = $region25
    $region24: #{tpu_custom_call.1} parent=1 // pred_region
      _
    $region25: #{tpu_custom_call.1} parent=1 // pred_fallthru
      _
    // Predicated region
    $region26: #{tpu_custom_call.1} parent=1 // pred_check
      _
    $region27: #{tpu_custom_call.1} parent=1 // pred_check_branch
      %31 = sbr.rel (0) target = $region29
    $region28: #{tpu_custom_call.1} parent=1 // pred_region
      _
    $region29: #{tpu_custom_call.1} parent=1 // pred_fallthru
      _
    // Predicated region
    $region30: #{tpu_custom_call.1} parent=1 // pred_check
      _
    $region31: #{tpu_custom_call.1} parent=1 // pred_check_branch
      %33 = sbr.rel (0) target = $region33
    $region32: #{tpu_custom_call.1} parent=1 // pred_region
      _
    $region33: #{tpu_custom_call.1} parent=1 // pred_fallthru
      _
    // Predicated region
    $region34: #{tpu_custom_call.1} parent=1 // pred_check
      _
    $region35: #{tpu_custom_call.1} parent=1 // pred_check_branch
      %35 = sbr.rel (0) target = $region37
    $region36: #{tpu_custom_call.1} parent=1 // pred_region
      _
    $region37: #{tpu_custom_call.1} parent=1 // pred_fallthru
      _
    // Predicated region
    $region38: #{tpu_custom_call.1} parent=1 // pred_check
      _
    $region39: #{tpu_custom_call.1} parent=1 // pred_check_branch
      %37 = sbr.rel (0) target = $region41
    $region40: #{tpu_custom_call.1} parent=1 // pred_region
      _
    $region41: #{tpu_custom_call.1} parent=1 // pred_fallthru
      _
    // Predicated region
    $region42: #{tpu_custom_call.1} parent=1 // pred_check
      _
    $region43: #{tpu_custom_call.1} parent=1 // pred_check_branch
      %39 = sbr.rel (0) target = $region45
    $region44: #{tpu_custom_call.1} parent=1 // pred_region
      _
    $region45: #{tpu_custom_call.1} parent=1 // pred_fallthru
      _
    // Predicated region
    $region46: #{tpu_custom_call.1} parent=1 // pred_check
      _
    $region47: #{tpu_custom_call.1} parent=1 // pred_check_branch
      %41 = sbr.rel (0) target = $region49
    $region48: #{tpu_custom_call.1} parent=1 // pred_region
      _
    $region49: #{tpu_custom_call.1} parent=1 // pred_fallthru
      _
    %v42 = vld [vmem:[%s0] sm:$0xff]
    %v43 = vld [vmem:[%s0 + $0x8] sm:$0xff]
    %v44 = vld [vmem:[%s0 + $0x10] sm:$0xff]
    %v45 = vld [vmem:[%s0 + $0x18] sm:$0xff]
    %v46 = vld [vmem:[%s0 + $0x20] sm:$0xff]
    %v47 = vld [vmem:[%s0 + $0x28] sm:$0xff]
    %v48 = vld [vmem:[%s0 + $0x30] sm:$0xff]
    %v49 = vld [vmem:[%s0 + $0x38] sm:$0xff]
    %v50 = vld [vmem:[%s0 + $0x40] sm:$0xff]
    %v51 = vld [vmem:[%s0 + $0x48] sm:$0xff]
    %v52 = vld [vmem:[%s0 + $0x50] sm:$0xff]
    %v53 = vld [vmem:[%s0 + $0x58] sm:$0xff]
    %v54 = vld [vmem:[%s0 + $0x60] sm:$0xff]
    %v55 = vld [vmem:[%s0 + $0x68] sm:$0xff]
    %v56 = vld [vmem:[%s0 + $0x70] sm:$0xff]
    %v57 = vld [vmem:[%s0 + $0x78] sm:$0xff]
    %v58 = vld [vmem:[%s0 + $0x80] sm:$0xff]
    %v59 = vld [vmem:[%s0 + $0x88] sm:$0xff]
    %v60 = vld [vmem:[%s0 + $0x90] sm:$0xff]
    %v61 = vld [vmem:[%s0 + $0x98] sm:$0xff]
    %v62 = vld [vmem:[%s0 + $0xa0] sm:$0xff]
    %v63 = vld [vmem:[%s0 + $0xa8] sm:$0xff]
    %v64 = vld [vmem:[%s0 + $0xb0] sm:$0xff]
    %v65 = vld [vmem:[%s0 + $0xb8] sm:$0xff]
    %v66 = vld [vmem:[%s0 + $0xc0] sm:$0xff]
    %v67 = vld [vmem:[%s0 + $0xc8] sm:$0xff]
    %v68 = vld [vmem:[%s0 + $0xd0] sm:$0xff]
    %v69 = vld [vmem:[%s0 + $0xd8] sm:$0xff]
    %v70 = vld [vmem:[%s0 + $0xe0] sm:$0xff]
    %v71 = vld [vmem:[%s0 + $0xe8] sm:$0xff]
    %v72 = vld [vmem:[%s0 + $0xf0] sm:$0xff]
    %v73 = vld [vmem:[%s0 + $0xf8] sm:$0xff]
    %v74 = vld [vmem:[%s0 + $0x100] sm:$0xff]
    %v75 = vld [vmem:[%s0 + $0x108] sm:$0xff]
    %v76 = vld [vmem:[%s0 + $0x110] sm:$0xff]
    %v77 = vld [vmem:[%s0 + $0x118] sm:$0xff]
    %v78 = vld [vmem:[%s0 + $0x120] sm:$0xff]
    %v79 = vld [vmem:[%s0 + $0x128] sm:$0xff]
    %v80 = vld [vmem:[%s0 + $0x130] sm:$0xff]
    %v81 = vld [vmem:[%s0 + $0x138] sm:$0xff]
    %v82 = vld [vmem:[%s0 + $0x140] sm:$0xff]
    %v83 = vld [vmem:[%s0 + $0x148] sm:$0xff]
    %v84 = vld [vmem:[%s0 + $0x150] sm:$0xff]
    %v85 = vld [vmem:[%s0 + $0x158] sm:$0xff]
    %v86 = vld [vmem:[%s0 + $0x160] sm:$0xff]
    %v87 = vld [vmem:[%s0 + $0x168] sm:$0xff]
    %v88 = vld [vmem:[%s0 + $0x170] sm:$0xff]
    %v89 = vld [vmem:[%s0 + $0x178] sm:$0xff]
    %v90 = vld [vmem:[%s0 + $0x180] sm:$0xff]
    %v91 = vld [vmem:[%s0 + $0x188] sm:$0xff]
    %v92 = vld [vmem:[%s0 + $0x190] sm:$0xff]
    %v93 = vld [vmem:[%s0 + $0x198] sm:$0xff]
    %v94 = vld [vmem:[%s0 + $0x1a0] sm:$0xff]
    %v95 = vld [vmem:[%s0 + $0x1a8] sm:$0xff]
    %v96 = vld [vmem:[%s0 + $0x1b0] sm:$0xff]
    %v97 = vld [vmem:[%s0 + $0x1b8] sm:$0xff]
    %v98 = vld [vmem:[%s0 + $0x1c0] sm:$0xff]
    %v99 = vld [vmem:[%s0 + $0x1c8] sm:$0xff]
    %v100 = vld [vmem:[%s0 + $0x1d0] sm:$0xff]
    %v101 = vld [vmem:[%s0 + $0x1d8] sm:$0xff]
    %v102 = vld [vmem:[%s0 + $0x1e0] sm:$0xff]
    %v103 = vld [vmem:[%s0 + $0x1e8] sm:$0xff]
    %v104 = vld [vmem:[%s0 + $0x1f0] sm:$0xff]
    %v105 = vld [vmem:[%s0 + $0x1f8] sm:$0xff]
    %v106 = vld [vmem:[%s2] sm:$0x1]
    %v108 = vperm.slane %v106, 0
    %v110 = vmul.f32 %v42, %v108
    %v111 = vmul.f32 %v43, %v108
    %v112 = vmul.f32 %v44, %v108
    %v113 = vmul.f32 %v45, %v108
    %v114 = vmul.f32 %v46, %v108
    %v115 = vmul.f32 %v47, %v108
    %v116 = vmul.f32 %v48, %v108
    %v117 = vmul.f32 %v49, %v108
    %v118 = vmul.f32 %v50, %v108
    %v119 = vmul.f32 %v51, %v108
    %v120 = vmul.f32 %v52, %v108
    %v121 = vmul.f32 %v53, %v108
    %v122 = vmul.f32 %v54, %v108
    %v123 = vmul.f32 %v55, %v108
    %v124 = vmul.f32 %v56, %v108
    %v125 = vmul.f32 %v57, %v108
    %v126 = vmul.f32 %v58, %v108
    %v127 = vmul.f32 %v59, %v108
    %v128 = vmul.f32 %v60, %v108
    %v129 = vmul.f32 %v61, %v108
    %v130 = vmul.f32 %v62, %v108
    %v131 = vmul.f32 %v63, %v108
    %v132 = vmul.f32 %v64, %v108
    %v133 = vmul.f32 %v65, %v108
    %v134 = vmul.f32 %v66, %v108
    %v135 = vmul.f32 %v67, %v108
    %v136 = vmul.f32 %v68, %v108
    %v137 = vmul.f32 %v69, %v108
    %v138 = vmul.f32 %v70, %v108
    %v139 = vmul.f32 %v71, %v108
    %v140 = vmul.f32 %v72, %v108
    %v141 = vmul.f32 %v73, %v108
    %v142 = vmul.f32 %v74, %v108
    %v143 = vmul.f32 %v75, %v108
    %v144 = vmul.f32 %v76, %v108
    %v145 = vmul.f32 %v77, %v108
    %v146 = vmul.f32 %v78, %v108
    %v147 = vmul.f32 %v79, %v108
    %v148 = vmul.f32 %v80, %v108
    %v149 = vmul.f32 %v81, %v108
    %v150 = vmul.f32 %v82, %v108
    %v151 = vmul.f32 %v83, %v108
    %v152 = vmul.f32 %v84, %v108
    %v153 = vmul.f32 %v85, %v108
    %v154 = vmul.f32 %v86, %v108
    %v155 = vmul.f32 %v87, %v108
    %v156 = vmul.f32 %v88, %v108
    %v157 = vmul.f32 %v89, %v108
    %v158 = vmul.f32 %v90, %v108
    %v159 = vmul.f32 %v91, %v108
    %v160 = vmul.f32 %v92, %v108
    %v161 = vmul.f32 %v93, %v108
    %v162 = vmul.f32 %v94, %v108
    %v163 = vmul.f32 %v95, %v108
    %v164 = vmul.f32 %v96, %v108
    %v165 = vmul.f32 %v97, %v108
    %v166 = vmul.f32 %v98, %v108
    %v167 = vmul.f32 %v99, %v108
    %v168 = vmul.f32 %v100, %v108
    %v169 = vmul.f32 %v101, %v108
    %v170 = vmul.f32 %v102, %v108
    %v171 = vmul.f32 %v103, %v108
    %v172 = vmul.f32 %v104, %v108
    %v173 = vmul.f32 %v105, %v108
    %v174 = vld [vmem:[%s3] sm:$0x1]
    %v176 = vperm.slane %v174, 0
    %v178 = vadd.f32 %v110, %v176
    %v179 = vadd.f32 %v111, %v176
    %v180 = vadd.f32 %v112, %v176
    %v181 = vadd.f32 %v113, %v176
    %v182 = vadd.f32 %v114, %v176
    %v183 = vadd.f32 %v115, %v176
    %v184 = vadd.f32 %v116, %v176
    %v185 = vadd.f32 %v117, %v176
    %v186 = vadd.f32 %v118, %v176
    %v187 = vadd.f32 %v119, %v176
    %v188 = vadd.f32 %v120, %v176
    %v189 = vadd.f32 %v121, %v176
    %v190 = vadd.f32 %v122, %v176
    %v191 = vadd.f32 %v123, %v176
    %v192 = vadd.f32 %v124, %v176
    %v193 = vadd.f32 %v125, %v176
    %v194 = vadd.f32 %v126, %v176
    %v195 = vadd.f32 %v127, %v176
    %v196 = vadd.f32 %v128, %v176
    %v197 = vadd.f32 %v129, %v176
    %v198 = vadd.f32 %v130, %v176
    %v199 = vadd.f32 %v131, %v176
    %v200 = vadd.f32 %v132, %v176
    %v201 = vadd.f32 %v133, %v176
    %v202 = vadd.f32 %v134, %v176
    %v203 = vadd.f32 %v135, %v176
    %v204 = vadd.f32 %v136, %v176
    %v205 = vadd.f32 %v137, %v176
    %v206 = vadd.f32 %v138, %v176
    %v207 = vadd.f32 %v139, %v176
    %v208 = vadd.f32 %v140, %v176
    %v209 = vadd.f32 %v141, %v176
    %v210 = vadd.f32 %v142, %v176
    %v211 = vadd.f32 %v143, %v176
    %v212 = vadd.f32 %v144, %v176
    %v213 = vadd.f32 %v145, %v176
    %v214 = vadd.f32 %v146, %v176
    %v215 = vadd.f32 %v147, %v176
    %v216 = vadd.f32 %v148, %v176
    %v217 = vadd.f32 %v149, %v176
    %v218 = vadd.f32 %v150, %v176
    %v219 = vadd.f32 %v151, %v176
    %v220 = vadd.f32 %v152, %v176
    %v221 = vadd.f32 %v153, %v176
    %v222 = vadd.f32 %v154, %v176
    %v223 = vadd.f32 %v155, %v176
    %v224 = vadd.f32 %v156, %v176
    %v225 = vadd.f32 %v157, %v176
    %v226 = vadd.f32 %v158, %v176
    %v227 = vadd.f32 %v159, %v176
    %v228 = vadd.f32 %v160, %v176
    %v229 = vadd.f32 %v161, %v176
    %v230 = vadd.f32 %v162, %v176
    %v231 = vadd.f32 %v163, %v176
    %v232 = vadd.f32 %v164, %v176
    %v233 = vadd.f32 %v165, %v176
    %v234 = vadd.f32 %v166, %v176
    %v235 = vadd.f32 %v167, %v176
    %v236 = vadd.f32 %v168, %v176
    %v237 = vadd.f32 %v169, %v176
    %v238 = vadd.f32 %v170, %v176
    %v239 = vadd.f32 %v171, %v176
    %v240 = vadd.f32 %v172, %v176
    %v241 = vadd.f32 %v173, %v176
    %vm242 = vcmask 31744
    %243 = vst.msk [vmem:[#allocation2] sm:$0xff] %vm242, 0.0
    %244 = vst.msk [vmem:[#allocation2 + $0x8] sm:$0xff] %vm242, 0.0
    %vm245 = vcmask 25600
    %246 = vst.msk [vmem:[#allocation2 + $0x10] sm:$0x3] %vm245, 0.0
    %247 = vst.msk [vmem:[#allocation2 + $0x1b0] sm:$0xff] %vm242, 0.0
    %248 = vst.msk [vmem:[#allocation2 + $0x1b8] sm:$0xff] %vm242, 0.0
    %249 = vst.msk [vmem:[#allocation2 + $0x1c0] sm:$0x3] %vm245, 0.0
    %s250 = scalar_lea.vmem [#allocation2], 408
    %251 = vst.msk [vmem:[%s250] sm:$0xff] %vm242, 0.0
    %252 = vst.msk [vmem:[%s250 + $0x8] sm:$0xff] %vm242, 0.0
    %253 = vst.msk [vmem:[%s250 + $0x10] sm:$0x3] %vm245, 0.0
    %254 = vst.msk [vmem:[%s250 + $0x1b0] sm:$0xff] %vm242, 0.0
    %255 = vst.msk [vmem:[%s250 + $0x1b8] sm:$0xff] %vm242, 0.0
    %256 = vst.msk [vmem:[%s250 + $0x1c0] sm:$0x3] %vm245, 0.0
    %vm257 = vcmask 24576
    %258 = vst.msk [vmem:[#allocation2] sm:$0x1] %vm257, 0.0
    %259 = vst.msk [vmem:[#allocation2 + $0x18] sm:$0x1] %vm257, 0.0
    %260 = vst.msk [vmem:[#allocation2 + $0x30] sm:$0x1] %vm257, 0.0
    %261 = vst.msk [vmem:[#allocation2 + $0x48] sm:$0x1] %vm257, 0.0
    %262 = vst.msk [vmem:[#allocation2 + $0x60] sm:$0x1] %vm257, 0.0
    %263 = vst.msk [vmem:[#allocation2 + $0x78] sm:$0x1] %vm257, 0.0
    %264 = vst.msk [vmem:[#allocation2 + $0x90] sm:$0x1] %vm257, 0.0
    %265 = vst.msk [vmem:[#allocation2 + $0xa8] sm:$0x1] %vm257, 0.0
    %266 = vst.msk [vmem:[#allocation2 + $0xc0] sm:$0x1] %vm257, 0.0
    %267 = vst.msk [vmem:[#allocation2 + $0xd8] sm:$0x1] %vm257, 0.0
    %268 = vst.msk [vmem:[#allocation2 + $0xf0] sm:$0x1] %vm257, 0.0
    %269 = vst.msk [vmem:[#allocation2 + $0x108] sm:$0x1] %vm257, 0.0
    %270 = vst.msk [vmem:[#allocation2 + $0x120] sm:$0x1] %vm257, 0.0
    %271 = vst.msk [vmem:[#allocation2 + $0x138] sm:$0x1] %vm257, 0.0
    %272 = vst.msk [vmem:[#allocation2 + $0x150] sm:$0x1] %vm257, 0.0
    %273 = vst.msk [vmem:[#allocation2 + $0x168] sm:$0x1] %vm257, 0.0
    %274 = vst.msk [vmem:[#allocation2 + $0x180] sm:$0x1] %vm257, 0.0
    %275 = vst.msk [vmem:[#allocation2 + $0x198] sm:$0x1] %vm257, 0.0
    %276 = vst.msk [vmem:[#allocation2 + $0x1b0] sm:$0x1] %vm257, 0.0
    %277 = vst.msk [vmem:[#allocation2 + $0x1c8] sm:$0x1] %vm257, 0.0
    %278 = vst.msk [vmem:[#allocation2 + $0x1e0] sm:$0x1] %vm257, 0.0
    %279 = vst.msk [vmem:[#allocation2 + $0x1f8] sm:$0x1] %vm257, 0.0
    %280 = vst.msk [vmem:[#allocation2 + $0x210] sm:$0x1] %vm257, 0.0
    %281 = vst.msk [vmem:[#allocation2 + $0x228] sm:$0x1] %vm257, 0.0
    %282 = vst.msk [vmem:[#allocation2 + $0x240] sm:$0x1] %vm257, 0.0
    %283 = vst.msk [vmem:[#allocation2 + $0x258] sm:$0x1] %vm257, 0.0
    %284 = vst.msk [vmem:[#allocation2 + $0x270] sm:$0x1] %vm257, 0.0
    %285 = vst.msk [vmem:[#allocation2 + $0x288] sm:$0x1] %vm257, 0.0
    %286 = vst.msk [vmem:[#allocation2 + $0x2a0] sm:$0x1] %vm257, 0.0
    %287 = vst.msk [vmem:[#allocation2 + $0x2b8] sm:$0x1] %vm257, 0.0
    %288 = vst.msk [vmem:[#allocation2 + $0x2d0] sm:$0x1] %vm257, 0.0
    %289 = vst.msk [vmem:[#allocation2 + $0x2e8] sm:$0x1] %vm257, 0.0
    %290 = vst.msk [vmem:[#allocation2 + $0x300] sm:$0x1] %vm257, 0.0
    %291 = vst.msk [vmem:[#allocation2 + $0x318] sm:$0x1] %vm257, 0.0
    %292 = vst.msk [vmem:[#allocation2 + $0x330] sm:$0x1] %vm257, 0.0
    %293 = vst.msk [vmem:[#allocation2 + $0x348] sm:$0x1] %vm257, 0.0
    %294 = vst.msk [vmem:[#allocation2 + $0x11] sm:$0x1] %vm257, 0.0
    %295 = vst.msk [vmem:[#allocation2 + $0x29] sm:$0x1] %vm257, 0.0
    %296 = vst.msk [vmem:[#allocation2 + $0x41] sm:$0x1] %vm257, 0.0
    %297 = vst.msk [vmem:[#allocation2 + $0x59] sm:$0x1] %vm257, 0.0
    %298 = vst.msk [vmem:[#allocation2 + $0x71] sm:$0x1] %vm257, 0.0
    %299 = vst.msk [vmem:[#allocation2 + $0x89] sm:$0x1] %vm257, 0.0
    %300 = vst.msk [vmem:[#allocation2 + $0xa1] sm:$0x1] %vm257, 0.0
    %301 = vst.msk [vmem:[#allocation2 + $0xb9] sm:$0x1] %vm257, 0.0
    %302 = vst.msk [vmem:[#allocation2 + $0xd1] sm:$0x1] %vm257, 0.0
    %303 = vst.msk [vmem:[#allocation2 + $0xe9] sm:$0x1] %vm257, 0.0
    %304 = vst.msk [vmem:[#allocation2 + $0x101] sm:$0x1] %vm257, 0.0
    %305 = vst.msk [vmem:[#allocation2 + $0x119] sm:$0x1] %vm257, 0.0
    %306 = vst.msk [vmem:[#allocation2 + $0x131] sm:$0x1] %vm257, 0.0
    %307 = vst.msk [vmem:[#allocation2 + $0x149] sm:$0x1] %vm257, 0.0
    %308 = vst.msk [vmem:[#allocation2 + $0x161] sm:$0x1] %vm257, 0.0
    %309 = vst.msk [vmem:[#allocation2 + $0x179] sm:$0x1] %vm257, 0.0
    %310 = vst.msk [vmem:[#allocation2 + $0x191] sm:$0x1] %vm257, 0.0
    %311 = vst.msk [vmem:[#allocation2 + $0x1a9] sm:$0x1] %vm257, 0.0
    %312 = vst.msk [vmem:[#allocation2 + $0x1c1] sm:$0x1] %vm257, 0.0
    %313 = vst.msk [vmem:[#allocation2 + $0x1d9] sm:$0x1] %vm257, 0.0
    %314 = vst.msk [vmem:[#allocation2 + $0x1f1] sm:$0x1] %vm257, 0.0
    %315 = vst.msk [vmem:[#allocation2 + $0x209] sm:$0x1] %vm257, 0.0
    %316 = vst.msk [vmem:[#allocation2 + $0x221] sm:$0x1] %vm257, 0.0
    %317 = vst.msk [vmem:[#allocation2 + $0x239] sm:$0x1] %vm257, 0.0
    %318 = vst.msk [vmem:[#allocation2 + $0x251] sm:$0x1] %vm257, 0.0
    %319 = vst.msk [vmem:[#allocation2 + $0x269] sm:$0x1] %vm257, 0.0
    %320 = vst.msk [vmem:[#allocation2 + $0x281] sm:$0x1] %vm257, 0.0
    %321 = vst.msk [vmem:[#allocation2 + $0x299] sm:$0x1] %vm257, 0.0
    %322 = vst.msk [vmem:[#allocation2 + $0x2b1] sm:$0x1] %vm257, 0.0
    %323 = vst.msk [vmem:[#allocation2 + $0x2c9] sm:$0x1] %vm257, 0.0
    %324 = vst.msk [vmem:[#allocation2 + $0x2e1] sm:$0x1] %vm257, 0.0
    %325 = vst.msk [vmem:[#allocation2 + $0x2f9] sm:$0x1] %vm257, 0.0
    %326 = vst.msk [vmem:[#allocation2 + $0x311] sm:$0x1] %vm257, 0.0
    %327 = vst.msk [vmem:[#allocation2 + $0x329] sm:$0x1] %vm257, 0.0
    %328 = vst.msk [vmem:[#allocation2 + $0x341] sm:$0x1] %vm257, 0.0
    %329 = vst.msk [vmem:[#allocation2 + $0x359] sm:$0x1] %vm257, 0.0
    %s330 = scalar_lea.vmem [#allocation2], 24
    %331 = vst.msk [vmem:[%s330 + $0x1] sm:$0xff] %vm242, %v178
    %332 = vst.msk [vmem:[%s330 + $0x9] sm:$0xff] %vm242, %v179
    %333 = vst.msk [vmem:[%s330 + $0x19] sm:$0xff] %vm242, %v180
    %334 = vst.msk [vmem:[%s330 + $0x21] sm:$0xff] %vm242, %v181
    %335 = vst.msk [vmem:[%s330 + $0x31] sm:$0xff] %vm242, %v182
    %336 = vst.msk [vmem:[%s330 + $0x39] sm:$0xff] %vm242, %v183
    %337 = vst.msk [vmem:[%s330 + $0x49] sm:$0xff] %vm242, %v184
    %338 = vst.msk [vmem:[%s330 + $0x51] sm:$0xff] %vm242, %v185
    %339 = vst.msk [vmem:[%s330 + $0x61] sm:$0xff] %vm242, %v186
    %340 = vst.msk [vmem:[%s330 + $0x69] sm:$0xff] %vm242, %v187
    %341 = vst.msk [vmem:[%s330 + $0x79] sm:$0xff] %vm242, %v188
    %342 = vst.msk [vmem:[%s330 + $0x81] sm:$0xff] %vm242, %v189
    %343 = vst.msk [vmem:[%s330 + $0x91] sm:$0xff] %vm242, %v190
    %344 = vst.msk [vmem:[%s330 + $0x99] sm:$0xff] %vm242, %v191
    %345 = vst.msk [vmem:[%s330 + $0xa9] sm:$0xff] %vm242, %v192
    %346 = vst.msk [vmem:[%s330 + $0xb1] sm:$0xff] %vm242, %v193
    %347 = vst.msk [vmem:[%s330 + $0xc1] sm:$0xff] %vm242, %v194
    %348 = vst.msk [vmem:[%s330 + $0xc9] sm:$0xff] %vm242, %v195
    %349 = vst.msk [vmem:[%s330 + $0xd9] sm:$0xff] %vm242, %v196
    %350 = vst.msk [vmem:[%s330 + $0xe1] sm:$0xff] %vm242, %v197
    %351 = vst.msk [vmem:[%s330 + $0xf1] sm:$0xff] %vm242, %v198
    %352 = vst.msk [vmem:[%s330 + $0xf9] sm:$0xff] %vm242, %v199
    %353 = vst.msk [vmem:[%s330 + $0x109] sm:$0xff] %vm242, %v200
    %354 = vst.msk [vmem:[%s330 + $0x111] sm:$0xff] %vm242, %v201
    %355 = vst.msk [vmem:[%s330 + $0x121] sm:$0xff] %vm242, %v202
    %356 = vst.msk [vmem:[%s330 + $0x129] sm:$0xff] %vm242, %v203
    %357 = vst.msk [vmem:[%s330 + $0x139] sm:$0xff] %vm242, %v204
    %358 = vst.msk [vmem:[%s330 + $0x141] sm:$0xff] %vm242, %v205
    %359 = vst.msk [vmem:[%s330 + $0x151] sm:$0xff] %vm242, %v206
    %360 = vst.msk [vmem:[%s330 + $0x159] sm:$0xff] %vm242, %v207
    %361 = vst.msk [vmem:[%s330 + $0x169] sm:$0xff] %vm242, %v208
    %362 = vst.msk [vmem:[%s330 + $0x171] sm:$0xff] %vm242, %v209
    %363 = vst.msk [vmem:[%s330 + $0x1b1] sm:$0xff] %vm242, %v210
    %364 = vst.msk [vmem:[%s330 + $0x1b9] sm:$0xff] %vm242, %v211
    %365 = vst.msk [vmem:[%s330 + $0x1c9] sm:$0xff] %vm242, %v212
    %366 = vst.msk [vmem:[%s330 + $0x1d1] sm:$0xff] %vm242, %v213
    %367 = vst.msk [vmem:[%s330 + $0x1e1] sm:$0xff] %vm242, %v214
    %368 = vst.msk [vmem:[%s330 + $0x1e9] sm:$0xff] %vm242, %v215
    %369 = vst.msk [vmem:[%s330 + $0x1f9] sm:$0xff] %vm242, %v216
    %370 = vst.msk [vmem:[%s330 + $0x201] sm:$0xff] %vm242, %v217
    %371 = vst.msk [vmem:[%s330 + $0x211] sm:$0xff] %vm242, %v218
    %372 = vst.msk [vmem:[%s330 + $0x219] sm:$0xff] %vm242, %v219
    %373 = vst.msk [vmem:[%s330 + $0x229] sm:$0xff] %vm242, %v220
    %374 = vst.msk [vmem:[%s330 + $0x231] sm:$0xff] %vm242, %v221
    %375 = vst.msk [vmem:[%s330 + $0x241] sm:$0xff] %vm242, %v222
    %376 = vst.msk [vmem:[%s330 + $0x249] sm:$0xff] %vm242, %v223
    %377 = vst.msk [vmem:[%s330 + $0x259] sm:$0xff] %vm242, %v224
    %378 = vst.msk [vmem:[%s330 + $0x261] sm:$0xff] %vm242, %v225
    %379 = vst.msk [vmem:[%s330 + $0x271] sm:$0xff] %vm242, %v226
    %380 = vst.msk [vmem:[%s330 + $0x279] sm:$0xff] %vm242, %v227
    %381 = vst.msk [vmem:[%s330 + $0x289] sm:$0xff] %vm242, %v228
    %382 = vst.msk [vmem:[%s330 + $0x291] sm:$0xff] %vm242, %v229
    %383 = vst.msk [vmem:[%s330 + $0x2a1] sm:$0xff] %vm242, %v230
    %384 = vst.msk [vmem:[%s330 + $0x2a9] sm:$0xff] %vm242, %v231
    %385 = vst.msk [vmem:[%s330 + $0x2b9] sm:$0xff] %vm242, %v232
    %386 = vst.msk [vmem:[%s330 + $0x2c1] sm:$0xff] %vm242, %v233
    %387 = vst.msk [vmem:[%s330 + $0x2d1] sm:$0xff] %vm242, %v234
    %388 = vst.msk [vmem:[%s330 + $0x2d9] sm:$0xff] %vm242, %v235
    %389 = vst.msk [vmem:[%s330 + $0x2e9] sm:$0xff] %vm242, %v236
    %390 = vst.msk [vmem:[%s330 + $0x2f1] sm:$0xff] %vm242, %v237
    %391 = vst.msk [vmem:[%s330 + $0x301] sm:$0xff] %vm242, %v238
    %392 = vst.msk [vmem:[%s330 + $0x309] sm:$0xff] %vm242, %v239
    %393 = vst.msk [vmem:[%s330 + $0x319] sm:$0xff] %vm242, %v240
    %394 = vst.msk [vmem:[%s330 + $0x321] sm:$0xff] %vm242, %v241
    %v395 = vld [vmem:[#allocation2] sm:$0xff]
    %v396 = vld [vmem:[#allocation2 + $0x8] sm:$0xff]
    %v397 = vld [vmem:[#allocation2 + $0x18] sm:$0xff]
    %v398 = vld [vmem:[#allocation2 + $0x20] sm:$0xff]
    %v399 = vld [vmem:[#allocation2 + $0x30] sm:$0xff]
    %v400 = vld [vmem:[#allocation2 + $0x38] sm:$0xff]
    %v401 = vld [vmem:[#allocation2 + $0x48] sm:$0xff]
    %v402 = vld [vmem:[#allocation2 + $0x50] sm:$0xff]
    %v403 = vld [vmem:[#allocation2 + $0x60] sm:$0xff]
    %v404 = vld [vmem:[#allocation2 + $0x68] sm:$0xff]
    %v405 = vld [vmem:[#allocation2 + $0x78] sm:$0xff]
    %v406 = vld [vmem:[#allocation2 + $0x80] sm:$0xff]
    %v407 = vld [vmem:[#allocation2 + $0x90] sm:$0xff]
    %v408 = vld [vmem:[#allocation2 + $0x98] sm:$0xff]
    %v409 = vld [vmem:[#allocation2 + $0xa8] sm:$0xff]
    %v410 = vld [vmem:[#allocation2 + $0xb0] sm:$0xff]
    %v411 = vld [vmem:[#allocation2 + $0xc0] sm:$0xff]
    %v412 = vld [vmem:[#allocation2 + $0xc8] sm:$0xff]
    %v413 = vld [vmem:[#allocation2 + $0xd8] sm:$0xff]
    %v414 = vld [vmem:[#allocation2 + $0xe0] sm:$0xff]
    %v415 = vld [vmem:[#allocation2 + $0xf0] sm:$0xff]
    %v416 = vld [vmem:[#allocation2 + $0xf8] sm:$0xff]
    %v417 = vld [vmem:[#allocation2 + $0x108] sm:$0xff]
    %v418 = vld [vmem:[#allocation2 + $0x110] sm:$0xff]
    %v419 = vld [vmem:[#allocation2 + $0x120] sm:$0xff]
    %v420 = vld [vmem:[#allocation2 + $0x128] sm:$0xff]
    %v421 = vld [vmem:[#allocation2 + $0x138] sm:$0xff]
    %v422 = vld [vmem:[#allocation2 + $0x140] sm:$0xff]
    %v423 = vld [vmem:[#allocation2 + $0x150] sm:$0xff]
    %v424 = vld [vmem:[#allocation2 + $0x158] sm:$0xff]
    %v425 = vld [vmem:[#allocation2 + $0x168] sm:$0xff]
    %v426 = vld [vmem:[#allocation2 + $0x170] sm:$0xff]
    %v427 = vld [vmem:[#allocation2 + $0x1b0] sm:$0xff]
    %v428 = vld [vmem:[#allocation2 + $0x1b8] sm:$0xff]
    %v429 = vld [vmem:[#allocation2 + $0x1c8] sm:$0xff]
    %v430 = vld [vmem:[#allocation2 + $0x1d0] sm:$0xff]
    %v431 = vld [vmem:[#allocation2 + $0x1e0] sm:$0xff]
    %v432 = vld [vmem:[#allocation2 + $0x1e8] sm:$0xff]
    %v433 = vld [vmem:[#allocation2 + $0x1f8] sm:$0xff]
    %v434 = vld [vmem:[#allocation2 + $0x200] sm:$0xff]
    %v435 = vld [vmem:[#allocation2 + $0x210] sm:$0xff]
    %v436 = vld [vmem:[#allocation2 + $0x218] sm:$0xff]
    %v437 = vld [vmem:[#allocation2 + $0x228] sm:$0xff]
    %v438 = vld [vmem:[#allocation2 + $0x230] sm:$0xff]
    %v439 = vld [vmem:[#allocation2 + $0x240] sm:$0xff]
    %v440 = vld [vmem:[#allocation2 + $0x248] sm:$0xff]
    %v441 = vld [vmem:[#allocation2 + $0x258] sm:$0xff]
    %v442 = vld [vmem:[#allocation2 + $0x260] sm:$0xff]
    %v443 = vld [vmem:[#allocation2 + $0x270] sm:$0xff]
    %v444 = vld [vmem:[#allocation2 + $0x278] sm:$0xff]
    %v445 = vld [vmem:[#allocation2 + $0x288] sm:$0xff]
    %v446 = vld [vmem:[#allocation2 + $0x290] sm:$0xff]
    %v447 = vld [vmem:[#allocation2 + $0x2a0] sm:$0xff]
    %v448 = vld [vmem:[#allocation2 + $0x2a8] sm:$0xff]
    %v449 = vld [vmem:[#allocation2 + $0x2b8] sm:$0xff]
    %v450 = vld [vmem:[#allocation2 + $0x2c0] sm:$0xff]
    %v451 = vld [vmem:[#allocation2 + $0x2d0] sm:$0xff]
    %v452 = vld [vmem:[#allocation2 + $0x2d8] sm:$0xff]
    %v453 = vld [vmem:[#allocation2 + $0x2e8] sm:$0xff]
    %v454 = vld [vmem:[#allocation2 + $0x2f0] sm:$0xff]
    %v455 = vld [vmem:[#allocation2 + $0x300] sm:$0xff]
    %v456 = vld [vmem:[#allocation2 + $0x308] sm:$0xff]
    %v457 = vld [vmem:[#allocation2 + $0x318] sm:$0xff]
    %v458 = vld [vmem:[#allocation2 + $0x320] sm:$0xff]
    %v459 = vld [vmem:[#allocation2 + $0x1] sm:$0xff]
    %v460 = vld [vmem:[#allocation2 + $0x9] sm:$0xff]
    %v461 = vld [vmem:[#allocation2 + $0x19] sm:$0xff]
    %v462 = vld [vmem:[#allocation2 + $0x21] sm:$0xff]
    %v463 = vld [vmem:[#allocation2 + $0x31] sm:$0xff]
    %v464 = vld [vmem:[#allocation2 + $0x39] sm:$0xff]
    %v465 = vld [vmem:[#allocation2 + $0x49] sm:$0xff]
    %v466 = vld [vmem:[#allocation2 + $0x51] sm:$0xff]
    %v467 = vld [vmem:[#allocation2 + $0x61] sm:$0xff]
    %v468 = vld [vmem:[#allocation2 + $0x69] sm:$0xff]
    %v469 = vld [vmem:[#allocation2 + $0x79] sm:$0xff]
    %v470 = vld [vmem:[#allocation2 + $0x81] sm:$0xff]
    %v471 = vld [vmem:[#allocation2 + $0x91] sm:$0xff]
    %v472 = vld [vmem:[#allocation2 + $0x99] sm:$0xff]
    %v473 = vld [vmem:[#allocation2 + $0xa9] sm:$0xff]
    %v474 = vld [vmem:[#allocation2 + $0xb1] sm:$0xff]
    %v475 = vld [vmem:[#allocation2 + $0xc1] sm:$0xff]
    %v476 = vld [vmem:[#allocation2 + $0xc9] sm:$0xff]
    %v477 = vld [vmem:[#allocation2 + $0xd9] sm:$0xff]
    %v478 = vld [vmem:[#allocation2 + $0xe1] sm:$0xff]
    %v479 = vld [vmem:[#allocation2 + $0xf1] sm:$0xff]
    %v480 = vld [vmem:[#allocation2 + $0xf9] sm:$0xff]
    %v481 = vld [vmem:[#allocation2 + $0x109] sm:$0xff]
    %v482 = vld [vmem:[#allocation2 + $0x111] sm:$0xff]
    %v483 = vld [vmem:[#allocation2 + $0x121] sm:$0xff]
    %v484 = vld [vmem:[#allocation2 + $0x129] sm:$0xff]
    %v485 = vld [vmem:[#allocation2 + $0x139] sm:$0xff]
    %v486 = vld [vmem:[#allocation2 + $0x141] sm:$0xff]
    %v487 = vld [vmem:[#allocation2 + $0x151] sm:$0xff]
    %v488 = vld [vmem:[#allocation2 + $0x159] sm:$0xff]
    %v489 = vld [vmem:[#allocation2 + $0x169] sm:$0xff]
    %v490 = vld [vmem:[#allocation2 + $0x171] sm:$0xff]
    %v491 = vld [vmem:[#allocation2 + $0x1b1] sm:$0xff]
    %v492 = vld [vmem:[#allocation2 + $0x1b9] sm:$0xff]
    %v493 = vld [vmem:[#allocation2 + $0x1c9] sm:$0xff]
    %v494 = vld [vmem:[#allocation2 + $0x1d1] sm:$0xff]
    %v495 = vld [vmem:[#allocation2 + $0x1e1] sm:$0xff]
    %v496 = vld [vmem:[#allocation2 + $0x1e9] sm:$0xff]
    %v497 = vld [vmem:[#allocation2 + $0x1f9] sm:$0xff]
    %v498 = vld [vmem:[#allocation2 + $0x201] sm:$0xff]
    %v499 = vld [vmem:[#allocation2 + $0x211] sm:$0xff]
    %v500 = vld [vmem:[#allocation2 + $0x219] sm:$0xff]
    %v501 = vld [vmem:[#allocation2 + $0x229] sm:$0xff]
    %v502 = vld [vmem:[#allocation2 + $0x231] sm:$0xff]
    %v503 = vld [vmem:[#allocation2 + $0x241] sm:$0xff]
    %v504 = vld [vmem:[#allocation2 + $0x249] sm:$0xff]
    %v505 = vld [vmem:[#allocation2 + $0x259] sm:$0xff]
    %v506 = vld [vmem:[#allocation2 + $0x261] sm:$0xff]
    %v507 = vld [vmem:[#allocation2 + $0x271] sm:$0xff]
    %v508 = vld [vmem:[#allocation2 + $0x279] sm:$0xff]
    %v509 = vld [vmem:[#allocation2 + $0x289] sm:$0xff]
    %v510 = vld [vmem:[#allocation2 + $0x291] sm:$0xff]
    %v511 = vld [vmem:[#allocation2 + $0x2a1] sm:$0xff]
    %v512 = vld [vmem:[#allocation2 + $0x2a9] sm:$0xff]
    %v513 = vld [vmem:[#allocation2 + $0x2b9] sm:$0xff]
    %v514 = vld [vmem:[#allocation2 + $0x2c1] sm:$0xff]
    %v515 = vld [vmem:[#allocation2 + $0x2d1] sm:$0xff]
    %v516 = vld [vmem:[#allocation2 + $0x2d9] sm:$0xff]
    %v517 = vld [vmem:[#allocation2 + $0x2e9] sm:$0xff]
    %v518 = vld [vmem:[#allocation2 + $0x2f1] sm:$0xff]
    %v519 = vld [vmem:[#allocation2 + $0x301] sm:$0xff]
    %v520 = vld [vmem:[#allocation2 + $0x309] sm:$0xff]
    %v521 = vld [vmem:[#allocation2 + $0x319] sm:$0xff]
    %v522 = vld [vmem:[#allocation2 + $0x321] sm:$0xff]
    %v523 = vld [vmem:[#allocation2 + $0x2] sm:$0xff]
    %v524 = vld [vmem:[#allocation2 + $0xa] sm:$0xff]
    %v525 = vld [vmem:[#allocation2 + $0x1a] sm:$0xff]
    %v526 = vld [vmem:[#allocation2 + $0x22] sm:$0xff]
    %v527 = vld [vmem:[#allocation2 + $0x32] sm:$0xff]
    %v528 = vld [vmem:[#allocation2 + $0x3a] sm:$0xff]
    %v529 = vld [vmem:[#allocation2 + $0x4a] sm:$0xff]
    %v530 = vld [vmem:[#allocation2 + $0x52] sm:$0xff]
    %v531 = vld [vmem:[#allocation2 + $0x62] sm:$0xff]
    %v532 = vld [vmem:[#allocation2 + $0x6a] sm:$0xff]
    %v533 = vld [vmem:[#allocation2 + $0x7a] sm:$0xff]
    %v534 = vld [vmem:[#allocation2 + $0x82] sm:$0xff]
    %v535 = vld [vmem:[#allocation2 + $0x92] sm:$0xff]
    %v536 = vld [vmem:[#allocation2 + $0x9a] sm:$0xff]
    %v537 = vld [vmem:[#allocation2 + $0xaa] sm:$0xff]
    %v538 = vld [vmem:[#allocation2 + $0xb2] sm:$0xff]
    %v539 = vld [vmem:[#allocation2 + $0xc2] sm:$0xff]
    %v540 = vld [vmem:[#allocation2 + $0xca] sm:$0xff]
    %v541 = vld [vmem:[#allocation2 + $0xda] sm:$0xff]
    %v542 = vld [vmem:[#allocation2 + $0xe2] sm:$0xff]
    %v543 = vld [vmem:[#allocation2 + $0xf2] sm:$0xff]
    %v544 = vld [vmem:[#allocation2 + $0xfa] sm:$0xff]
    %v545 = vld [vmem:[#allocation2 + $0x10a] sm:$0xff]
    %v546 = vld [vmem:[#allocation2 + $0x112] sm:$0xff]
    %v547 = vld [vmem:[#allocation2 + $0x122] sm:$0xff]
    %v548 = vld [vmem:[#allocation2 + $0x12a] sm:$0xff]
    %v549 = vld [vmem:[#allocation2 + $0x13a] sm:$0xff]
    %v550 = vld [vmem:[#allocation2 + $0x142] sm:$0xff]
    %v551 = vld [vmem:[#allocation2 + $0x152] sm:$0xff]
    %v552 = vld [vmem:[#allocation2 + $0x15a] sm:$0xff]
    %v553 = vld [vmem:[#allocation2 + $0x16a] sm:$0xff]
    %v554 = vld [vmem:[#allocation2 + $0x172] sm:$0xff]
    %v555 = vld [vmem:[#allocation2 + $0x1b2] sm:$0xff]
    %v556 = vld [vmem:[#allocation2 + $0x1ba] sm:$0xff]
    %v557 = vld [vmem:[#allocation2 + $0x1ca] sm:$0xff]
    %v558 = vld [vmem:[#allocation2 + $0x1d2] sm:$0xff]
    %v559 = vld [vmem:[#allocation2 + $0x1e2] sm:$0xff]
    %v560 = vld [vmem:[#allocation2 + $0x1ea] sm:$0xff]
    %v561 = vld [vmem:[#allocation2 + $0x1fa] sm:$0xff]
    %v562 = vld [vmem:[#allocation2 + $0x202] sm:$0xff]
    %v563 = vld [vmem:[#allocation2 + $0x212] sm:$0xff]
    %v564 = vld [vmem:[#allocation2 + $0x21a] sm:$0xff]
    %v565 = vld [vmem:[#allocation2 + $0x22a] sm:$0xff]
    %v566 = vld [vmem:[#allocation2 + $0x232] sm:$0xff]
    %v567 = vld [vmem:[#allocation2 + $0x242] sm:$0xff]
    %v568 = vld [vmem:[#allocation2 + $0x24a] sm:$0xff]
    %v569 = vld [vmem:[#allocation2 + $0x25a] sm:$0xff]
    %v570 = vld [vmem:[#allocation2 + $0x262] sm:$0xff]
    %v571 = vld [vmem:[#allocation2 + $0x272] sm:$0xff]
    %v572 = vld [vmem:[#allocation2 + $0x27a] sm:$0xff]
    %v573 = vld [vmem:[#allocation2 + $0x28a] sm:$0xff]
    %v574 = vld [vmem:[#allocation2 + $0x292] sm:$0xff]
    %v575 = vld [vmem:[#allocation2 + $0x2a2] sm:$0xff]
    %v576 = vld [vmem:[#allocation2 + $0x2aa] sm:$0xff]
    %v577 = vld [vmem:[#allocation2 + $0x2ba] sm:$0xff]
    %v578 = vld [vmem:[#allocation2 + $0x2c2] sm:$0xff]
    %v579 = vld [vmem:[#allocation2 + $0x2d2] sm:$0xff]
    %v580 = vld [vmem:[#allocation2 + $0x2da] sm:$0xff]
    %v581 = vld [vmem:[#allocation2 + $0x2ea] sm:$0xff]
    %v582 = vld [vmem:[#allocation2 + $0x2f2] sm:$0xff]
    %v583 = vld [vmem:[#allocation2 + $0x302] sm:$0xff]
    %v584 = vld [vmem:[#allocation2 + $0x30a] sm:$0xff]
    %v585 = vld [vmem:[#allocation2 + $0x31a] sm:$0xff]
    %v586 = vld [vmem:[#allocation2 + $0x322] sm:$0xff]
    %v587 = vld [vmem:[%s330] sm:$0xff]
    %v588 = vld [vmem:[%s330 + $0x8] sm:$0xff]
    %v589 = vld [vmem:[%s330 + $0x18] sm:$0xff]
    %v590 = vld [vmem:[%s330 + $0x20] sm:$0xff]
    %v591 = vld [vmem:[%s330 + $0x30] sm:$0xff]
    %v592 = vld [vmem:[%s330 + $0x38] sm:$0xff]
    %v593 = vld [vmem:[%s330 + $0x48] sm:$0xff]
    %v594 = vld [vmem:[%s330 + $0x50] sm:$0xff]
    %v595 = vld [vmem:[%s330 + $0x60] sm:$0xff]
    %v596 = vld [vmem:[%s330 + $0x68] sm:$0xff]
    %v597 = vld [vmem:[%s330 + $0x78] sm:$0xff]
    %v598 = vld [vmem:[%s330 + $0x80] sm:$0xff]
    %v599 = vld [vmem:[%s330 + $0x90] sm:$0xff]
    %v600 = vld [vmem:[%s330 + $0x98] sm:$0xff]
    %v601 = vld [vmem:[%s330 + $0xa8] sm:$0xff]
    %v602 = vld [vmem:[%s330 + $0xb0] sm:$0xff]
    %v603 = vld [vmem:[%s330 + $0xc0] sm:$0xff]
    %v604 = vld [vmem:[%s330 + $0xc8] sm:$0xff]
    %v605 = vld [vmem:[%s330 + $0xd8] sm:$0xff]
    %v606 = vld [vmem:[%s330 + $0xe0] sm:$0xff]
    %v607 = vld [vmem:[%s330 + $0xf0] sm:$0xff]
    %v608 = vld [vmem:[%s330 + $0xf8] sm:$0xff]
    %v609 = vld [vmem:[%s330 + $0x108] sm:$0xff]
    %v610 = vld [vmem:[%s330 + $0x110] sm:$0xff]
    %v611 = vld [vmem:[%s330 + $0x120] sm:$0xff]
    %v612 = vld [vmem:[%s330 + $0x128] sm:$0xff]
    %v613 = vld [vmem:[%s330 + $0x138] sm:$0xff]
    %v614 = vld [vmem:[%s330 + $0x140] sm:$0xff]
    %v615 = vld [vmem:[%s330 + $0x150] sm:$0xff]
    %v616 = vld [vmem:[%s330 + $0x158] sm:$0xff]
    %v617 = vld [vmem:[%s330 + $0x168] sm:$0xff]
    %v618 = vld [vmem:[%s330 + $0x170] sm:$0xff]
    %v619 = vld [vmem:[%s330 + $0x1b0] sm:$0xff]
    %v620 = vld [vmem:[%s330 + $0x1b8] sm:$0xff]
    %v621 = vld [vmem:[%s330 + $0x1c8] sm:$0xff]
    %v622 = vld [vmem:[%s330 + $0x1d0] sm:$0xff]
    %v623 = vld [vmem:[%s330 + $0x1e0] sm:$0xff]
    %v624 = vld [vmem:[%s330 + $0x1e8] sm:$0xff]
    %v625 = vld [vmem:[%s330 + $0x1f8] sm:$0xff]
    %v626 = vld [vmem:[%s330 + $0x200] sm:$0xff]
    %v627 = vld [vmem:[%s330 + $0x210] sm:$0xff]
    %v628 = vld [vmem:[%s330 + $0x218] sm:$0xff]
    %v629 = vld [vmem:[%s330 + $0x228] sm:$0xff]
    %v630 = vld [vmem:[%s330 + $0x230] sm:$0xff]
    %v631 = vld [vmem:[%s330 + $0x240] sm:$0xff]
    %v632 = vld [vmem:[%s330 + $0x248] sm:$0xff]
    %v633 = vld [vmem:[%s330 + $0x258] sm:$0xff]
    %v634 = vld [vmem:[%s330 + $0x260] sm:$0xff]
    %v635 = vld [vmem:[%s330 + $0x270] sm:$0xff]
    %v636 = vld [vmem:[%s330 + $0x278] sm:$0xff]
    %v637 = vld [vmem:[%s330 + $0x288] sm:$0xff]
    %v638 = vld [vmem:[%s330 + $0x290] sm:$0xff]
    %v639 = vld [vmem:[%s330 + $0x2a0] sm:$0xff]
    %v640 = vld [vmem:[%s330 + $0x2a8] sm:$0xff]
    %v641 = vld [vmem:[%s330 + $0x2b8] sm:$0xff]
    %v642 = vld [vmem:[%s330 + $0x2c0] sm:$0xff]
    %v643 = vld [vmem:[%s330 + $0x2d0] sm:$0xff]
    %v644 = vld [vmem:[%s330 + $0x2d8] sm:$0xff]
    %v645 = vld [vmem:[%s330 + $0x2e8] sm:$0xff]
    %v646 = vld [vmem:[%s330 + $0x2f0] sm:$0xff]
    %v647 = vld [vmem:[%s330 + $0x300] sm:$0xff]
    %v648 = vld [vmem:[%s330 + $0x308] sm:$0xff]
    %v649 = vld [vmem:[%s330 + $0x318] sm:$0xff]
    %v650 = vld [vmem:[%s330 + $0x320] sm:$0xff]
    %v651 = vld [vmem:[%s330 + $0x1] sm:$0xff]
    %v652 = vld [vmem:[%s330 + $0x9] sm:$0xff]
    %v653 = vld [vmem:[%s330 + $0x19] sm:$0xff]
    %v654 = vld [vmem:[%s330 + $0x21] sm:$0xff]
    %v655 = vld [vmem:[%s330 + $0x31] sm:$0xff]
    %v656 = vld [vmem:[%s330 + $0x39] sm:$0xff]
    %v657 = vld [vmem:[%s330 + $0x49] sm:$0xff]
    %v658 = vld [vmem:[%s330 + $0x51] sm:$0xff]
    %v659 = vld [vmem:[%s330 + $0x61] sm:$0xff]
    %v660 = vld [vmem:[%s330 + $0x69] sm:$0xff]
    %v661 = vld [vmem:[%s330 + $0x79] sm:$0xff]
    %v662 = vld [vmem:[%s330 + $0x81] sm:$0xff]
    %v663 = vld [vmem:[%s330 + $0x91] sm:$0xff]
    %v664 = vld [vmem:[%s330 + $0x99] sm:$0xff]
    %v665 = vld [vmem:[%s330 + $0xa9] sm:$0xff]
    %v666 = vld [vmem:[%s330 + $0xb1] sm:$0xff]
    %v667 = vld [vmem:[%s330 + $0xc1] sm:$0xff]
    %v668 = vld [vmem:[%s330 + $0xc9] sm:$0xff]
    %v669 = vld [vmem:[%s330 + $0xd9] sm:$0xff]
    %v670 = vld [vmem:[%s330 + $0xe1] sm:$0xff]
    %v671 = vld [vmem:[%s330 + $0xf1] sm:$0xff]
    %v672 = vld [vmem:[%s330 + $0xf9] sm:$0xff]
    %v673 = vld [vmem:[%s330 + $0x109] sm:$0xff]
    %v674 = vld [vmem:[%s330 + $0x111] sm:$0xff]
    %v675 = vld [vmem:[%s330 + $0x121] sm:$0xff]
    %v676 = vld [vmem:[%s330 + $0x129] sm:$0xff]
    %v677 = vld [vmem:[%s330 + $0x139] sm:$0xff]
    %v678 = vld [vmem:[%s330 + $0x141] sm:$0xff]
    %v679 = vld [vmem:[%s330 + $0x151] sm:$0xff]
    %v680 = vld [vmem:[%s330 + $0x159] sm:$0xff]
    %v681 = vld [vmem:[%s330 + $0x169] sm:$0xff]
    %v682 = vld [vmem:[%s330 + $0x171] sm:$0xff]
    %v683 = vld [vmem:[%s330 + $0x1b1] sm:$0xff]
    %v684 = vld [vmem:[%s330 + $0x1b9] sm:$0xff]
    %v685 = vld [vmem:[%s330 + $0x1c9] sm:$0xff]
    %v686 = vld [vmem:[%s330 + $0x1d1] sm:$0xff]
    %v687 = vld [vmem:[%s330 + $0x1e1] sm:$0xff]
    %v688 = vld [vmem:[%s330 + $0x1e9] sm:$0xff]
    %v689 = vld [vmem:[%s330 + $0x1f9] sm:$0xff]
    %v690 = vld [vmem:[%s330 + $0x201] sm:$0xff]
    %v691 = vld [vmem:[%s330 + $0x211] sm:$0xff]
    %v692 = vld [vmem:[%s330 + $0x219] sm:$0xff]
    %v693 = vld [vmem:[%s330 + $0x229] sm:$0xff]
    %v694 = vld [vmem:[%s330 + $0x231] sm:$0xff]
    %v695 = vld [vmem:[%s330 + $0x241] sm:$0xff]
    %v696 = vld [vmem:[%s330 + $0x249] sm:$0xff]
    %v697 = vld [vmem:[%s330 + $0x259] sm:$0xff]
    %v698 = vld [vmem:[%s330 + $0x261] sm:$0xff]
    %v699 = vld [vmem:[%s330 + $0x271] sm:$0xff]
    %v700 = vld [vmem:[%s330 + $0x279] sm:$0xff]
    %v701 = vld [vmem:[%s330 + $0x289] sm:$0xff]
    %v702 = vld [vmem:[%s330 + $0x291] sm:$0xff]
    %v703 = vld [vmem:[%s330 + $0x2a1] sm:$0xff]
    %v704 = vld [vmem:[%s330 + $0x2a9] sm:$0xff]
    %v705 = vld [vmem:[%s330 + $0x2b9] sm:$0xff]
    %v706 = vld [vmem:[%s330 + $0x2c1] sm:$0xff]
    %v707 = vld [vmem:[%s330 + $0x2d1] sm:$0xff]
    %v708 = vld [vmem:[%s330 + $0x2d9] sm:$0xff]
    %v709 = vld [vmem:[%s330 + $0x2e9] sm:$0xff]
    %v710 = vld [vmem:[%s330 + $0x2f1] sm:$0xff]
    %v711 = vld [vmem:[%s330 + $0x301] sm:$0xff]
    %v712 = vld [vmem:[%s330 + $0x309] sm:$0xff]
    %v713 = vld [vmem:[%s330 + $0x319] sm:$0xff]
    %v714 = vld [vmem:[%s330 + $0x321] sm:$0xff]
    %v715 = vld [vmem:[%s330 + $0x2] sm:$0xff]
    %v716 = vld [vmem:[%s330 + $0xa] sm:$0xff]
    %v717 = vld [vmem:[%s330 + $0x1a] sm:$0xff]
    %v718 = vld [vmem:[%s330 + $0x22] sm:$0xff]
    %v719 = vld [vmem:[%s330 + $0x32] sm:$0xff]
    %v720 = vld [vmem:[%s330 + $0x3a] sm:$0xff]
    %v721 = vld [vmem:[%s330 + $0x4a] sm:$0xff]
    %v722 = vld [vmem:[%s330 + $0x52] sm:$0xff]
    %v723 = vld [vmem:[%s330 + $0x62] sm:$0xff]
    %v724 = vld [vmem:[%s330 + $0x6a] sm:$0xff]
    %v725 = vld [vmem:[%s330 + $0x7a] sm:$0xff]
    %v726 = vld [vmem:[%s330 + $0x82] sm:$0xff]
    %v727 = vld [vmem:[%s330 + $0x92] sm:$0xff]
    %v728 = vld [vmem:[%s330 + $0x9a] sm:$0xff]
    %v729 = vld [vmem:[%s330 + $0xaa] sm:$0xff]
    %v730 = vld [vmem:[%s330 + $0xb2] sm:$0xff]
    %v731 = vld [vmem:[%s330 + $0xc2] sm:$0xff]
    %v732 = vld [vmem:[%s330 + $0xca] sm:$0xff]
    %v733 = vld [vmem:[%s330 + $0xda] sm:$0xff]
    %v734 = vld [vmem:[%s330 + $0xe2] sm:$0xff]
    %v735 = vld [vmem:[%s330 + $0xf2] sm:$0xff]
    %v736 = vld [vmem:[%s330 + $0xfa] sm:$0xff]
    %v737 = vld [vmem:[%s330 + $0x10a] sm:$0xff]
    %v738 = vld [vmem:[%s330 + $0x112] sm:$0xff]
    %v739 = vld [vmem:[%s330 + $0x122] sm:$0xff]
    %v740 = vld [vmem:[%s330 + $0x12a] sm:$0xff]
    %v741 = vld [vmem:[%s330 + $0x13a] sm:$0xff]
    %v742 = vld [vmem:[%s330 + $0x142] sm:$0xff]
    %v743 = vld [vmem:[%s330 + $0x152] sm:$0xff]
    %v744 = vld [vmem:[%s330 + $0x15a] sm:$0xff]
    %v745 = vld [vmem:[%s330 + $0x16a] sm:$0xff]
    %v746 = vld [vmem:[%s330 + $0x172] sm:$0xff]
    %v747 = vld [vmem:[%s330 + $0x1b2] sm:$0xff]
    %v748 = vld [vmem:[%s330 + $0x1ba] sm:$0xff]
    %v749 = vld [vmem:[%s330 + $0x1ca] sm:$0xff]
    %v750 = vld [vmem:[%s330 + $0x1d2] sm:$0xff]
    %v751 = vld [vmem:[%s330 + $0x1e2] sm:$0xff]
    %v752 = vld [vmem:[%s330 + $0x1ea] sm:$0xff]
    %v753 = vld [vmem:[%s330 + $0x1fa] sm:$0xff]
    %v754 = vld [vmem:[%s330 + $0x202] sm:$0xff]
    %v755 = vld [vmem:[%s330 + $0x212] sm:$0xff]
    %v756 = vld [vmem:[%s330 + $0x21a] sm:$0xff]
    %v757 = vld [vmem:[%s330 + $0x22a] sm:$0xff]
    %v758 = vld [vmem:[%s330 + $0x232] sm:$0xff]
    %v759 = vld [vmem:[%s330 + $0x242] sm:$0xff]
    %v760 = vld [vmem:[%s330 + $0x24a] sm:$0xff]
    %v761 = vld [vmem:[%s330 + $0x25a] sm:$0xff]
    %v762 = vld [vmem:[%s330 + $0x262] sm:$0xff]
    %v763 = vld [vmem:[%s330 + $0x272] sm:$0xff]
    %v764 = vld [vmem:[%s330 + $0x27a] sm:$0xff]
    %v765 = vld [vmem:[%s330 + $0x28a] sm:$0xff]
    %v766 = vld [vmem:[%s330 + $0x292] sm:$0xff]
    %v767 = vld [vmem:[%s330 + $0x2a2] sm:$0xff]
    %v768 = vld [vmem:[%s330 + $0x2aa] sm:$0xff]
    %v769 = vld [vmem:[%s330 + $0x2ba] sm:$0xff]
    %v770 = vld [vmem:[%s330 + $0x2c2] sm:$0xff]
    %v771 = vld [vmem:[%s330 + $0x2d2] sm:$0xff]
    %v772 = vld [vmem:[%s330 + $0x2da] sm:$0xff]
    %v773 = vld [vmem:[%s330 + $0x2ea] sm:$0xff]
    %v774 = vld [vmem:[%s330 + $0x2f2] sm:$0xff]
    %v775 = vld [vmem:[%s330 + $0x302] sm:$0xff]
    %v776 = vld [vmem:[%s330 + $0x30a] sm:$0xff]
    %v777 = vld [vmem:[%s330 + $0x31a] sm:$0xff]
    %v778 = vld [vmem:[%s330 + $0x322] sm:$0xff]
    %s779 = scalar_lea.vmem [#allocation2], 48
    %v780 = vld [vmem:[%s779] sm:$0xff]
    %v781 = vld [vmem:[%s779 + $0x8] sm:$0xff]
    %v782 = vld [vmem:[%s779 + $0x18] sm:$0xff]
    %v783 = vld [vmem:[%s779 + $0x20] sm:$0xff]
    %v784 = vld [vmem:[%s779 + $0x30] sm:$0xff]
    %v785 = vld [vmem:[%s779 + $0x38] sm:$0xff]
    %v786 = vld [vmem:[%s779 + $0x48] sm:$0xff]
    %v787 = vld [vmem:[%s779 + $0x50] sm:$0xff]
    %v788 = vld [vmem:[%s779 + $0x60] sm:$0xff]
    %v789 = vld [vmem:[%s779 + $0x68] sm:$0xff]
    %v790 = vld [vmem:[%s779 + $0x78] sm:$0xff]
    %v791 = vld [vmem:[%s779 + $0x80] sm:$0xff]
    %v792 = vld [vmem:[%s779 + $0x90] sm:$0xff]
    %v793 = vld [vmem:[%s779 + $0x98] sm:$0xff]
    %v794 = vld [vmem:[%s779 + $0xa8] sm:$0xff]
    %v795 = vld [vmem:[%s779 + $0xb0] sm:$0xff]
    %v796 = vld [vmem:[%s779 + $0xc0] sm:$0xff]
    %v797 = vld [vmem:[%s779 + $0xc8] sm:$0xff]
    %v798 = vld [vmem:[%s779 + $0xd8] sm:$0xff]
    %v799 = vld [vmem:[%s779 + $0xe0] sm:$0xff]
    %v800 = vld [vmem:[%s779 + $0xf0] sm:$0xff]
    %v801 = vld [vmem:[%s779 + $0xf8] sm:$0xff]
    %v802 = vld [vmem:[%s779 + $0x108] sm:$0xff]
    %v803 = vld [vmem:[%s779 + $0x110] sm:$0xff]
    %v804 = vld [vmem:[%s779 + $0x120] sm:$0xff]
    %v805 = vld [vmem:[%s779 + $0x128] sm:$0xff]
    %v806 = vld [vmem:[%s779 + $0x138] sm:$0xff]
    %v807 = vld [vmem:[%s779 + $0x140] sm:$0xff]
    %v808 = vld [vmem:[%s779 + $0x150] sm:$0xff]
    %v809 = vld [vmem:[%s779 + $0x158] sm:$0xff]
    %v810 = vld [vmem:[%s779 + $0x168] sm:$0xff]
    %v811 = vld [vmem:[%s779 + $0x170] sm:$0xff]
    %v812 = vld [vmem:[%s779 + $0x1b0] sm:$0xff]
    %v813 = vld [vmem:[%s779 + $0x1b8] sm:$0xff]
    %v814 = vld [vmem:[%s779 + $0x1c8] sm:$0xff]
    %v815 = vld [vmem:[%s779 + $0x1d0] sm:$0xff]
    %v816 = vld [vmem:[%s779 + $0x1e0] sm:$0xff]
    %v817 = vld [vmem:[%s779 + $0x1e8] sm:$0xff]
    %v818 = vld [vmem:[%s779 + $0x1f8] sm:$0xff]
    %v819 = vld [vmem:[%s779 + $0x200] sm:$0xff]
    %v820 = vld [vmem:[%s779 + $0x210] sm:$0xff]
    %v821 = vld [vmem:[%s779 + $0x218] sm:$0xff]
    %v822 = vld [vmem:[%s779 + $0x228] sm:$0xff]
    %v823 = vld [vmem:[%s779 + $0x230] sm:$0xff]
    %v824 = vld [vmem:[%s779 + $0x240] sm:$0xff]
    %v825 = vld [vmem:[%s779 + $0x248] sm:$0xff]
    %v826 = vld [vmem:[%s779 + $0x258] sm:$0xff]
    %v827 = vld [vmem:[%s779 + $0x260] sm:$0xff]
    %v828 = vld [vmem:[%s779 + $0x270] sm:$0xff]
    %v829 = vld [vmem:[%s779 + $0x278] sm:$0xff]
    %v830 = vld [vmem:[%s779 + $0x288] sm:$0xff]
    %v831 = vld [vmem:[%s779 + $0x290] sm:$0xff]
    %v832 = vld [vmem:[%s779 + $0x2a0] sm:$0xff]
    %v833 = vld [vmem:[%s779 + $0x2a8] sm:$0xff]
    %v834 = vld [vmem:[%s779 + $0x2b8] sm:$0xff]
    %v835 = vld [vmem:[%s779 + $0x2c0] sm:$0xff]
    %v836 = vld [vmem:[%s779 + $0x2d0] sm:$0xff]
    %v837 = vld [vmem:[%s779 + $0x2d8] sm:$0xff]
    %v838 = vld [vmem:[%s779 + $0x2e8] sm:$0xff]
    %v839 = vld [vmem:[%s779 + $0x2f0] sm:$0xff]
    %v840 = vld [vmem:[%s779 + $0x300] sm:$0xff]
    %v841 = vld [vmem:[%s779 + $0x308] sm:$0xff]
    %v842 = vld [vmem:[%s779 + $0x318] sm:$0xff]
    %v843 = vld [vmem:[%s779 + $0x320] sm:$0xff]
    %v844 = vld [vmem:[%s779 + $0x1] sm:$0xff]
    %v845 = vld [vmem:[%s779 + $0x9] sm:$0xff]
    %v846 = vld [vmem:[%s779 + $0x19] sm:$0xff]
    %v847 = vld [vmem:[%s779 + $0x21] sm:$0xff]
    %v848 = vld [vmem:[%s779 + $0x31] sm:$0xff]
    %v849 = vld [vmem:[%s779 + $0x39] sm:$0xff]
    %v850 = vld [vmem:[%s779 + $0x49] sm:$0xff]
    %v851 = vld [vmem:[%s779 + $0x51] sm:$0xff]
    %v852 = vld [vmem:[%s779 + $0x61] sm:$0xff]
    %v853 = vld [vmem:[%s779 + $0x69] sm:$0xff]
    %v854 = vld [vmem:[%s779 + $0x79] sm:$0xff]
    %v855 = vld [vmem:[%s779 + $0x81] sm:$0xff]
    %v856 = vld [vmem:[%s779 + $0x91] sm:$0xff]
    %v857 = vld [vmem:[%s779 + $0x99] sm:$0xff]
    %v858 = vld [vmem:[%s779 + $0xa9] sm:$0xff]
    %v859 = vld [vmem:[%s779 + $0xb1] sm:$0xff]
    %v860 = vld [vmem:[%s779 + $0xc1] sm:$0xff]
    %v861 = vld [vmem:[%s779 + $0xc9] sm:$0xff]
    %v862 = vld [vmem:[%s779 + $0xd9] sm:$0xff]
    %v863 = vld [vmem:[%s779 + $0xe1] sm:$0xff]
    %v864 = vld [vmem:[%s779 + $0xf1] sm:$0xff]
    %v865 = vld [vmem:[%s779 + $0xf9] sm:$0xff]
    %v866 = vld [vmem:[%s779 + $0x109] sm:$0xff]
    %v867 = vld [vmem:[%s779 + $0x111] sm:$0xff]
    %v868 = vld [vmem:[%s779 + $0x121] sm:$0xff]
    %v869 = vld [vmem:[%s779 + $0x129] sm:$0xff]
    %v870 = vld [vmem:[%s779 + $0x139] sm:$0xff]
    %v871 = vld [vmem:[%s779 + $0x141] sm:$0xff]
    %v872 = vld [vmem:[%s779 + $0x151] sm:$0xff]
    %v873 = vld [vmem:[%s779 + $0x159] sm:$0xff]
    %v874 = vld [vmem:[%s779 + $0x169] sm:$0xff]
    %v875 = vld [vmem:[%s779 + $0x171] sm:$0xff]
    %v876 = vld [vmem:[%s779 + $0x1b1] sm:$0xff]
    %v877 = vld [vmem:[%s779 + $0x1b9] sm:$0xff]
    %v878 = vld [vmem:[%s779 + $0x1c9] sm:$0xff]
    %v879 = vld [vmem:[%s779 + $0x1d1] sm:$0xff]
    %v880 = vld [vmem:[%s779 + $0x1e1] sm:$0xff]
    %v881 = vld [vmem:[%s779 + $0x1e9] sm:$0xff]
    %v882 = vld [vmem:[%s779 + $0x1f9] sm:$0xff]
    %v883 = vld [vmem:[%s779 + $0x201] sm:$0xff]
    %v884 = vld [vmem:[%s779 + $0x211] sm:$0xff]
    %v885 = vld [vmem:[%s779 + $0x219] sm:$0xff]
    %v886 = vld [vmem:[%s779 + $0x229] sm:$0xff]
    %v887 = vld [vmem:[%s779 + $0x231] sm:$0xff]
    %v888 = vld [vmem:[%s779 + $0x241] sm:$0xff]
    %v889 = vld [vmem:[%s779 + $0x249] sm:$0xff]
    %v890 = vld [vmem:[%s779 + $0x259] sm:$0xff]
    %v891 = vld [vmem:[%s779 + $0x261] sm:$0xff]
    %v892 = vld [vmem:[%s779 + $0x271] sm:$0xff]
    %v893 = vld [vmem:[%s779 + $0x279] sm:$0xff]
    %v894 = vld [vmem:[%s779 + $0x289] sm:$0xff]
    %v895 = vld [vmem:[%s779 + $0x291] sm:$0xff]
    %v896 = vld [vmem:[%s779 + $0x2a1] sm:$0xff]
    %v897 = vld [vmem:[%s779 + $0x2a9] sm:$0xff]
    %v898 = vld [vmem:[%s779 + $0x2b9] sm:$0xff]
    %v899 = vld [vmem:[%s779 + $0x2c1] sm:$0xff]
    %v900 = vld [vmem:[%s779 + $0x2d1] sm:$0xff]
    %v901 = vld [vmem:[%s779 + $0x2d9] sm:$0xff]
    %v902 = vld [vmem:[%s779 + $0x2e9] sm:$0xff]
    %v903 = vld [vmem:[%s779 + $0x2f1] sm:$0xff]
    %v904 = vld [vmem:[%s779 + $0x301] sm:$0xff]
    %v905 = vld [vmem:[%s779 + $0x309] sm:$0xff]
    %v906 = vld [vmem:[%s779 + $0x319] sm:$0xff]
    %v907 = vld [vmem:[%s779 + $0x321] sm:$0xff]
    %v908 = vld [vmem:[%s779 + $0x2] sm:$0xff]
    %v909 = vld [vmem:[%s779 + $0xa] sm:$0xff]
    %v910 = vld [vmem:[%s779 + $0x1a] sm:$0xff]
    %v911 = vld [vmem:[%s779 + $0x22] sm:$0xff]
    %v912 = vld [vmem:[%s779 + $0x32] sm:$0xff]
    %v913 = vld [vmem:[%s779 + $0x3a] sm:$0xff]
    %v914 = vld [vmem:[%s779 + $0x4a] sm:$0xff]
    %v915 = vld [vmem:[%s779 + $0x52] sm:$0xff]
    %v916 = vld [vmem:[%s779 + $0x62] sm:$0xff]
    %v917 = vld [vmem:[%s779 + $0x6a] sm:$0xff]
    %v918 = vld [vmem:[%s779 + $0x7a] sm:$0xff]
    %v919 = vld [vmem:[%s779 + $0x82] sm:$0xff]
    %v920 = vld [vmem:[%s779 + $0x92] sm:$0xff]
    %v921 = vld [vmem:[%s779 + $0x9a] sm:$0xff]
    %v922 = vld [vmem:[%s779 + $0xaa] sm:$0xff]
    %v923 = vld [vmem:[%s779 + $0xb2] sm:$0xff]
    %v924 = vld [vmem:[%s779 + $0xc2] sm:$0xff]
    %v925 = vld [vmem:[%s779 + $0xca] sm:$0xff]
    %v926 = vld [vmem:[%s779 + $0xda] sm:$0xff]
    %v927 = vld [vmem:[%s779 + $0xe2] sm:$0xff]
    %v928 = vld [vmem:[%s779 + $0xf2] sm:$0xff]
    %v929 = vld [vmem:[%s779 + $0xfa] sm:$0xff]
    %v930 = vld [vmem:[%s779 + $0x10a] sm:$0xff]
    %v931 = vld [vmem:[%s779 + $0x112] sm:$0xff]
    %v932 = vld [vmem:[%s779 + $0x122] sm:$0xff]
    %v933 = vld [vmem:[%s779 + $0x12a] sm:$0xff]
    %v934 = vld [vmem:[%s779 + $0x13a] sm:$0xff]
    %v935 = vld [vmem:[%s779 + $0x142] sm:$0xff]
    %v936 = vld [vmem:[%s779 + $0x152] sm:$0xff]
    %v937 = vld [vmem:[%s779 + $0x15a] sm:$0xff]
    %v938 = vld [vmem:[%s779 + $0x16a] sm:$0xff]
    %v939 = vld [vmem:[%s779 + $0x172] sm:$0xff]
    %v940 = vld [vmem:[%s779 + $0x1b2] sm:$0xff]
    %v941 = vld [vmem:[%s779 + $0x1ba] sm:$0xff]
    %v942 = vld [vmem:[%s779 + $0x1ca] sm:$0xff]
    %v943 = vld [vmem:[%s779 + $0x1d2] sm:$0xff]
    %v944 = vld [vmem:[%s779 + $0x1e2] sm:$0xff]
    %v945 = vld [vmem:[%s779 + $0x1ea] sm:$0xff]
    %v946 = vld [vmem:[%s779 + $0x1fa] sm:$0xff]
    %v947 = vld [vmem:[%s779 + $0x202] sm:$0xff]
    %v948 = vld [vmem:[%s779 + $0x212] sm:$0xff]
    %v949 = vld [vmem:[%s779 + $0x21a] sm:$0xff]
    %v950 = vld [vmem:[%s779 + $0x22a] sm:$0xff]
    %v951 = vld [vmem:[%s779 + $0x232] sm:$0xff]
    %v952 = vld [vmem:[%s779 + $0x242] sm:$0xff]
    %v953 = vld [vmem:[%s779 + $0x24a] sm:$0xff]
    %v954 = vld [vmem:[%s779 + $0x25a] sm:$0xff]
    %v955 = vld [vmem:[%s779 + $0x262] sm:$0xff]
    %v956 = vld [vmem:[%s779 + $0x272] sm:$0xff]
    %v957 = vld [vmem:[%s779 + $0x27a] sm:$0xff]
    %v958 = vld [vmem:[%s779 + $0x28a] sm:$0xff]
    %v959 = vld [vmem:[%s779 + $0x292] sm:$0xff]
    %v960 = vld [vmem:[%s779 + $0x2a2] sm:$0xff]
    %v961 = vld [vmem:[%s779 + $0x2aa] sm:$0xff]
    %v962 = vld [vmem:[%s779 + $0x2ba] sm:$0xff]
    %v963 = vld [vmem:[%s779 + $0x2c2] sm:$0xff]
    %v964 = vld [vmem:[%s779 + $0x2d2] sm:$0xff]
    %v965 = vld [vmem:[%s779 + $0x2da] sm:$0xff]
    %v966 = vld [vmem:[%s779 + $0x2ea] sm:$0xff]
    %v967 = vld [vmem:[%s779 + $0x2f2] sm:$0xff]
    %v968 = vld [vmem:[%s779 + $0x302] sm:$0xff]
    %v969 = vld [vmem:[%s779 + $0x30a] sm:$0xff]
    %v970 = vld [vmem:[%s779 + $0x31a] sm:$0xff]
    %v971 = vld [vmem:[%s779 + $0x322] sm:$0xff]
    %1036 = vrot.lane.b32.xlu0 %v459, 4
    %v1037 = vpop.permute.xlu0 %1036
    %1038 = vrot.lane.b32.xlu0 %v460, 4
    %v1039 = vpop.permute.xlu0 %1038
    %1040 = vrot.lane.b32.xlu0 %v461, 4
    %v1041 = vpop.permute.xlu0 %1040
    %1042 = vrot.lane.b32.xlu0 %v462, 4
    %v1043 = vpop.permute.xlu0 %1042
    %1044 = vrot.lane.b32.xlu0 %v463, 4
    %v1045 = vpop.permute.xlu0 %1044
    %1046 = vrot.lane.b32.xlu0 %v464, 4
    %v1047 = vpop.permute.xlu0 %1046
    %1048 = vrot.lane.b32.xlu0 %v465, 4
    %v1049 = vpop.permute.xlu0 %1048
    %1050 = vrot.lane.b32.xlu0 %v466, 4
    %v1051 = vpop.permute.xlu0 %1050
    %1052 = vrot.lane.b32.xlu0 %v467, 4
    %v1053 = vpop.permute.xlu0 %1052
    %1054 = vrot.lane.b32.xlu0 %v468, 4
    %v1055 = vpop.permute.xlu0 %1054
    %1056 = vrot.lane.b32.xlu0 %v469, 4
    %v1057 = vpop.permute.xlu0 %1056
    %1058 = vrot.lane.b32.xlu0 %v470, 4
    %v1059 = vpop.permute.xlu0 %1058
    %1060 = vrot.lane.b32.xlu0 %v471, 4
    %v1061 = vpop.permute.xlu0 %1060
    %1062 = vrot.lane.b32.xlu0 %v472, 4
    %v1063 = vpop.permute.xlu0 %1062
    %1064 = vrot.lane.b32.xlu0 %v473, 4
    %v1065 = vpop.permute.xlu0 %1064
    %1066 = vrot.lane.b32.xlu0 %v474, 4
    %v1067 = vpop.permute.xlu0 %1066
    %1068 = vrot.lane.b32.xlu0 %v475, 4
    %v1069 = vpop.permute.xlu0 %1068
    %1070 = vrot.lane.b32.xlu0 %v476, 4
    %v1071 = vpop.permute.xlu0 %1070
    %1072 = vrot.lane.b32.xlu0 %v477, 4
    %v1073 = vpop.permute.xlu0 %1072
    %1074 = vrot.lane.b32.xlu0 %v478, 4
    %v1075 = vpop.permute.xlu0 %1074
    %1076 = vrot.lane.b32.xlu0 %v479, 4
    %v1077 = vpop.permute.xlu0 %1076
    %1078 = vrot.lane.b32.xlu0 %v480, 4
    %v1079 = vpop.permute.xlu0 %1078
    %1080 = vrot.lane.b32.xlu0 %v481, 4
    %v1081 = vpop.permute.xlu0 %1080
    %1082 = vrot.lane.b32.xlu0 %v482, 4
    %v1083 = vpop.permute.xlu0 %1082
    %1084 = vrot.lane.b32.xlu0 %v483, 4
    %v1085 = vpop.permute.xlu0 %1084
    %1086 = vrot.lane.b32.xlu0 %v484, 4
    %v1087 = vpop.permute.xlu0 %1086
    %1088 = vrot.lane.b32.xlu0 %v485, 4
    %v1089 = vpop.permute.xlu0 %1088
    %1090 = vrot.lane.b32.xlu0 %v486, 4
    %v1091 = vpop.permute.xlu0 %1090
    %1092 = vrot.lane.b32.xlu0 %v487, 4
    %v1093 = vpop.permute.xlu0 %1092
    %1094 = vrot.lane.b32.xlu0 %v488, 4
    %v1095 = vpop.permute.xlu0 %1094
    %1096 = vrot.lane.b32.xlu0 %v489, 4
    %v1097 = vpop.permute.xlu0 %1096
    %1098 = vrot.lane.b32.xlu0 %v490, 4
    %v1099 = vpop.permute.xlu0 %1098
    %1100 = vrot.lane.b32.xlu0 %v491, 4
    %v1101 = vpop.permute.xlu0 %1100
    %1102 = vrot.lane.b32.xlu0 %v492, 4
    %v1103 = vpop.permute.xlu0 %1102
    %1104 = vrot.lane.b32.xlu0 %v493, 4
    %v1105 = vpop.permute.xlu0 %1104
    %1106 = vrot.lane.b32.xlu0 %v494, 4
    %v1107 = vpop.permute.xlu0 %1106
    %1108 = vrot.lane.b32.xlu0 %v495, 4
    %v1109 = vpop.permute.xlu0 %1108
    %1110 = vrot.lane.b32.xlu0 %v496, 4
    %v1111 = vpop.permute.xlu0 %1110
    %1112 = vrot.lane.b32.xlu0 %v497, 4
    %v1113 = vpop.permute.xlu0 %1112
    %1114 = vrot.lane.b32.xlu0 %v498, 4
    %v1115 = vpop.permute.xlu0 %1114
    %1116 = vrot.lane.b32.xlu0 %v499, 4
    %v1117 = vpop.permute.xlu0 %1116
    %1118 = vrot.lane.b32.xlu0 %v500, 4
    %v1119 = vpop.permute.xlu0 %1118
    %1120 = vrot.lane.b32.xlu0 %v501, 4
    %v1121 = vpop.permute.xlu0 %1120
    %1122 = vrot.lane.b32.xlu0 %v502, 4
    %v1123 = vpop.permute.xlu0 %1122
    %1124 = vrot.lane.b32.xlu0 %v503, 4
    %v1125 = vpop.permute.xlu0 %1124
    %1126 = vrot.lane.b32.xlu0 %v504, 4
    %v1127 = vpop.permute.xlu0 %1126
    %1128 = vrot.lane.b32.xlu0 %v505, 4
    %v1129 = vpop.permute.xlu0 %1128
    %1130 = vrot.lane.b32.xlu0 %v506, 4
    %v1131 = vpop.permute.xlu0 %1130
    %1132 = vrot.lane.b32.xlu0 %v507, 4
    %v1133 = vpop.permute.xlu0 %1132
    %1134 = vrot.lane.b32.xlu0 %v508, 4
    %v1135 = vpop.permute.xlu0 %1134
    %1136 = vrot.lane.b32.xlu0 %v509, 4
    %v1137 = vpop.permute.xlu0 %1136
    %1138 = vrot.lane.b32.xlu0 %v510, 4
    %v1139 = vpop.permute.xlu0 %1138
    %1140 = vrot.lane.b32.xlu0 %v511, 4
    %v1141 = vpop.permute.xlu0 %1140
    %1142 = vrot.lane.b32.xlu0 %v512, 4
    %v1143 = vpop.permute.xlu0 %1142
    %1144 = vrot.lane.b32.xlu0 %v513, 4
    %v1145 = vpop.permute.xlu0 %1144
    %1146 = vrot.lane.b32.xlu0 %v514, 4
    %v1147 = vpop.permute.xlu0 %1146
    %1148 = vrot.lane.b32.xlu0 %v515, 4
    %v1149 = vpop.permute.xlu0 %1148
    %1150 = vrot.lane.b32.xlu0 %v516, 4
    %v1151 = vpop.permute.xlu0 %1150
    %1152 = vrot.lane.b32.xlu0 %v517, 4
    %v1153 = vpop.permute.xlu0 %1152
    %1154 = vrot.lane.b32.xlu0 %v518, 4
    %v1155 = vpop.permute.xlu0 %1154
    %1156 = vrot.lane.b32.xlu0 %v519, 4
    %v1157 = vpop.permute.xlu0 %1156
    %1158 = vrot.lane.b32.xlu0 %v520, 4
    %v1159 = vpop.permute.xlu0 %1158
    %1160 = vrot.lane.b32.xlu0 %v521, 4
    %v1161 = vpop.permute.xlu0 %1160
    %1162 = vrot.lane.b32.xlu0 %v522, 4
    %v1163 = vpop.permute.xlu0 %1162
    %1292 = vrot.lane.b32.xlu0 %v523, 8
    %v1293 = vpop.permute.xlu0 %1292
    %1294 = vrot.lane.b32.xlu0 %v524, 8
    %v1295 = vpop.permute.xlu0 %1294
    %1296 = vrot.lane.b32.xlu0 %v525, 8
    %v1297 = vpop.permute.xlu0 %1296
    %1298 = vrot.lane.b32.xlu0 %v526, 8
    %v1299 = vpop.permute.xlu0 %1298
    %1300 = vrot.lane.b32.xlu0 %v527, 8
    %v1301 = vpop.permute.xlu0 %1300
    %1302 = vrot.lane.b32.xlu0 %v528, 8
    %v1303 = vpop.permute.xlu0 %1302
    %1304 = vrot.lane.b32.xlu0 %v529, 8
    %v1305 = vpop.permute.xlu0 %1304
    %1306 = vrot.lane.b32.xlu0 %v530, 8
    %v1307 = vpop.permute.xlu0 %1306
    %1308 = vrot.lane.b32.xlu0 %v531, 8
    %v1309 = vpop.permute.xlu0 %1308
    %1310 = vrot.lane.b32.xlu0 %v532, 8
    %v1311 = vpop.permute.xlu0 %1310
    %1312 = vrot.lane.b32.xlu0 %v533, 8
    %v1313 = vpop.permute.xlu0 %1312
    %1314 = vrot.lane.b32.xlu0 %v534, 8
    %v1315 = vpop.permute.xlu0 %1314
    %1316 = vrot.lane.b32.xlu0 %v535, 8
    %v1317 = vpop.permute.xlu0 %1316
    %1318 = vrot.lane.b32.xlu0 %v536, 8
    %v1319 = vpop.permute.xlu0 %1318
    %1320 = vrot.lane.b32.xlu0 %v537, 8
    %v1321 = vpop.permute.xlu0 %1320
    %1322 = vrot.lane.b32.xlu0 %v538, 8
    %v1323 = vpop.permute.xlu0 %1322
    %1324 = vrot.lane.b32.xlu0 %v539, 8
    %v1325 = vpop.permute.xlu0 %1324
    %1326 = vrot.lane.b32.xlu0 %v540, 8
    %v1327 = vpop.permute.xlu0 %1326
    %1328 = vrot.lane.b32.xlu0 %v541, 8
    %v1329 = vpop.permute.xlu0 %1328
    %1330 = vrot.lane.b32.xlu0 %v542, 8
    %v1331 = vpop.permute.xlu0 %1330
    %1332 = vrot.lane.b32.xlu0 %v543, 8
    %v1333 = vpop.permute.xlu0 %1332
    %1334 = vrot.lane.b32.xlu0 %v544, 8
    %v1335 = vpop.permute.xlu0 %1334
    %1336 = vrot.lane.b32.xlu0 %v545, 8
    %v1337 = vpop.permute.xlu0 %1336
    %1338 = vrot.lane.b32.xlu0 %v546, 8
    %v1339 = vpop.permute.xlu0 %1338
    %1340 = vrot.lane.b32.xlu0 %v547, 8
    %v1341 = vpop.permute.xlu0 %1340
    %1342 = vrot.lane.b32.xlu0 %v548, 8
    %v1343 = vpop.permute.xlu0 %1342
    %1344 = vrot.lane.b32.xlu0 %v549, 8
    %v1345 = vpop.permute.xlu0 %1344
    %1346 = vrot.lane.b32.xlu0 %v550, 8
    %v1347 = vpop.permute.xlu0 %1346
    %1348 = vrot.lane.b32.xlu0 %v551, 8
    %v1349 = vpop.permute.xlu0 %1348
    %1350 = vrot.lane.b32.xlu0 %v552, 8
    %v1351 = vpop.permute.xlu0 %1350
    %1352 = vrot.lane.b32.xlu0 %v553, 8
    %v1353 = vpop.permute.xlu0 %1352
    %1354 = vrot.lane.b32.xlu0 %v554, 8
    %v1355 = vpop.permute.xlu0 %1354
    %1356 = vrot.lane.b32.xlu0 %v555, 8
    %v1357 = vpop.permute.xlu0 %1356
    %1358 = vrot.lane.b32.xlu0 %v556, 8
    %v1359 = vpop.permute.xlu0 %1358
    %1360 = vrot.lane.b32.xlu0 %v557, 8
    %v1361 = vpop.permute.xlu0 %1360
    %1362 = vrot.lane.b32.xlu0 %v558, 8
    %v1363 = vpop.permute.xlu0 %1362
    %1364 = vrot.lane.b32.xlu0 %v559, 8
    %v1365 = vpop.permute.xlu0 %1364
    %1366 = vrot.lane.b32.xlu0 %v560, 8
    %v1367 = vpop.permute.xlu0 %1366
    %1368 = vrot.lane.b32.xlu0 %v561, 8
    %v1369 = vpop.permute.xlu0 %1368
    %1370 = vrot.lane.b32.xlu0 %v562, 8
    %v1371 = vpop.permute.xlu0 %1370
    %1372 = vrot.lane.b32.xlu0 %v563, 8
    %v1373 = vpop.permute.xlu0 %1372
    %1374 = vrot.lane.b32.xlu0 %v564, 8
    %v1375 = vpop.permute.xlu0 %1374
    %1376 = vrot.lane.b32.xlu0 %v565, 8
    %v1377 = vpop.permute.xlu0 %1376
    %1378 = vrot.lane.b32.xlu0 %v566, 8
    %v1379 = vpop.permute.xlu0 %1378
    %1380 = vrot.lane.b32.xlu0 %v567, 8
    %v1381 = vpop.permute.xlu0 %1380
    %1382 = vrot.lane.b32.xlu0 %v568, 8
    %v1383 = vpop.permute.xlu0 %1382
    %1384 = vrot.lane.b32.xlu0 %v569, 8
    %v1385 = vpop.permute.xlu0 %1384
    %1386 = vrot.lane.b32.xlu0 %v570, 8
    %v1387 = vpop.permute.xlu0 %1386
    %1388 = vrot.lane.b32.xlu0 %v571, 8
    %v1389 = vpop.permute.xlu0 %1388
    %1390 = vrot.lane.b32.xlu0 %v572, 8
    %v1391 = vpop.permute.xlu0 %1390
    %1392 = vrot.lane.b32.xlu0 %v573, 8
    %v1393 = vpop.permute.xlu0 %1392
    %1394 = vrot.lane.b32.xlu0 %v574, 8
    %v1395 = vpop.permute.xlu0 %1394
    %1396 = vrot.lane.b32.xlu0 %v575, 8
    %v1397 = vpop.permute.xlu0 %1396
    %1398 = vrot.lane.b32.xlu0 %v576, 8
    %v1399 = vpop.permute.xlu0 %1398
    %1400 = vrot.lane.b32.xlu0 %v577, 8
    %v1401 = vpop.permute.xlu0 %1400
    %1402 = vrot.lane.b32.xlu0 %v578, 8
    %v1403 = vpop.permute.xlu0 %1402
    %1404 = vrot.lane.b32.xlu0 %v579, 8
    %v1405 = vpop.permute.xlu0 %1404
    %1406 = vrot.lane.b32.xlu0 %v580, 8
    %v1407 = vpop.permute.xlu0 %1406
    %1408 = vrot.lane.b32.xlu0 %v581, 8
    %v1409 = vpop.permute.xlu0 %1408
    %1410 = vrot.lane.b32.xlu0 %v582, 8
    %v1411 = vpop.permute.xlu0 %1410
    %1412 = vrot.lane.b32.xlu0 %v583, 8
    %v1413 = vpop.permute.xlu0 %1412
    %1414 = vrot.lane.b32.xlu0 %v584, 8
    %v1415 = vpop.permute.xlu0 %1414
    %1416 = vrot.lane.b32.xlu0 %v585, 8
    %v1417 = vpop.permute.xlu0 %1416
    %1418 = vrot.lane.b32.xlu0 %v586, 8
    %v1419 = vpop.permute.xlu0 %1418
    %1548 = vrot.lane.b32.xlu0 %v587, 12
    %v1549 = vpop.permute.xlu0 %1548
    %1550 = vrot.lane.b32.xlu0 %v588, 12
    %v1551 = vpop.permute.xlu0 %1550
    %1552 = vrot.lane.b32.xlu0 %v589, 12
    %v1553 = vpop.permute.xlu0 %1552
    %1554 = vrot.lane.b32.xlu0 %v590, 12
    %v1555 = vpop.permute.xlu0 %1554
    %1556 = vrot.lane.b32.xlu0 %v591, 12
    %v1557 = vpop.permute.xlu0 %1556
    %1558 = vrot.lane.b32.xlu0 %v592, 12
    %v1559 = vpop.permute.xlu0 %1558
    %1560 = vrot.lane.b32.xlu0 %v593, 12
    %v1561 = vpop.permute.xlu0 %1560
    %1562 = vrot.lane.b32.xlu0 %v594, 12
    %v1563 = vpop.permute.xlu0 %1562
    %1564 = vrot.lane.b32.xlu0 %v595, 12
    %v1565 = vpop.permute.xlu0 %1564
    %1566 = vrot.lane.b32.xlu0 %v596, 12
    %v1567 = vpop.permute.xlu0 %1566
    %1568 = vrot.lane.b32.xlu0 %v597, 12
    %v1569 = vpop.permute.xlu0 %1568
    %1570 = vrot.lane.b32.xlu0 %v598, 12
    %v1571 = vpop.permute.xlu0 %1570
    %1572 = vrot.lane.b32.xlu0 %v599, 12
    %v1573 = vpop.permute.xlu0 %1572
    %1574 = vrot.lane.b32.xlu0 %v600, 12
    %v1575 = vpop.permute.xlu0 %1574
    %1576 = vrot.lane.b32.xlu0 %v601, 12
    %v1577 = vpop.permute.xlu0 %1576
    %1578 = vrot.lane.b32.xlu0 %v602, 12
    %v1579 = vpop.permute.xlu0 %1578
    %1580 = vrot.lane.b32.xlu0 %v603, 12
    %v1581 = vpop.permute.xlu0 %1580
    %1582 = vrot.lane.b32.xlu0 %v604, 12
    %v1583 = vpop.permute.xlu0 %1582
    %1584 = vrot.lane.b32.xlu0 %v605, 12
    %v1585 = vpop.permute.xlu0 %1584
    %1586 = vrot.lane.b32.xlu0 %v606, 12
    %v1587 = vpop.permute.xlu0 %1586
    %1588 = vrot.lane.b32.xlu0 %v607, 12
    %v1589 = vpop.permute.xlu0 %1588
    %1590 = vrot.lane.b32.xlu0 %v608, 12
    %v1591 = vpop.permute.xlu0 %1590
    %1592 = vrot.lane.b32.xlu0 %v609, 12
    %v1593 = vpop.permute.xlu0 %1592
    %1594 = vrot.lane.b32.xlu0 %v610, 12
    %v1595 = vpop.permute.xlu0 %1594
    %1596 = vrot.lane.b32.xlu0 %v611, 12
    %v1597 = vpop.permute.xlu0 %1596
    %1598 = vrot.lane.b32.xlu0 %v612, 12
    %v1599 = vpop.permute.xlu0 %1598
    %1600 = vrot.lane.b32.xlu0 %v613, 12
    %v1601 = vpop.permute.xlu0 %1600
    %1602 = vrot.lane.b32.xlu0 %v614, 12
    %v1603 = vpop.permute.xlu0 %1602
    %1604 = vrot.lane.b32.xlu0 %v615, 12
    %v1605 = vpop.permute.xlu0 %1604
    %1606 = vrot.lane.b32.xlu0 %v616, 12
    %v1607 = vpop.permute.xlu0 %1606
    %1608 = vrot.lane.b32.xlu0 %v617, 12
    %v1609 = vpop.permute.xlu0 %1608
    %1610 = vrot.lane.b32.xlu0 %v618, 12
    %v1611 = vpop.permute.xlu0 %1610
    %1612 = vrot.lane.b32.xlu0 %v619, 12
    %v1613 = vpop.permute.xlu0 %1612
    %1614 = vrot.lane.b32.xlu0 %v620, 12
    %v1615 = vpop.permute.xlu0 %1614
    %1616 = vrot.lane.b32.xlu0 %v621, 12
    %v1617 = vpop.permute.xlu0 %1616
    %1618 = vrot.lane.b32.xlu0 %v622, 12
    %v1619 = vpop.permute.xlu0 %1618
    %1620 = vrot.lane.b32.xlu0 %v623, 12
    %v1621 = vpop.permute.xlu0 %1620
    %1622 = vrot.lane.b32.xlu0 %v624, 12
    %v1623 = vpop.permute.xlu0 %1622
    %1624 = vrot.lane.b32.xlu0 %v625, 12
    %v1625 = vpop.permute.xlu0 %1624
    %1626 = vrot.lane.b32.xlu0 %v626, 12
    %v1627 = vpop.permute.xlu0 %1626
    %1628 = vrot.lane.b32.xlu0 %v627, 12
    %v1629 = vpop.permute.xlu0 %1628
    %1630 = vrot.lane.b32.xlu0 %v628, 12
    %v1631 = vpop.permute.xlu0 %1630
    %1632 = vrot.lane.b32.xlu0 %v629, 12
    %v1633 = vpop.permute.xlu0 %1632
    %1634 = vrot.lane.b32.xlu0 %v630, 12
    %v1635 = vpop.permute.xlu0 %1634
    %1636 = vrot.lane.b32.xlu0 %v631, 12
    %v1637 = vpop.permute.xlu0 %1636
    %1638 = vrot.lane.b32.xlu0 %v632, 12
    %v1639 = vpop.permute.xlu0 %1638
    %1640 = vrot.lane.b32.xlu0 %v633, 12
    %v1641 = vpop.permute.xlu0 %1640
    %1642 = vrot.lane.b32.xlu0 %v634, 12
    %v1643 = vpop.permute.xlu0 %1642
    %1644 = vrot.lane.b32.xlu0 %v635, 12
    %v1645 = vpop.permute.xlu0 %1644
    %1646 = vrot.lane.b32.xlu0 %v636, 12
    %v1647 = vpop.permute.xlu0 %1646
    %1648 = vrot.lane.b32.xlu0 %v637, 12
    %v1649 = vpop.permute.xlu0 %1648
    %1650 = vrot.lane.b32.xlu0 %v638, 12
    %v1651 = vpop.permute.xlu0 %1650
    %1652 = vrot.lane.b32.xlu0 %v639, 12
    %v1653 = vpop.permute.xlu0 %1652
    %1654 = vrot.lane.b32.xlu0 %v640, 12
    %v1655 = vpop.permute.xlu0 %1654
    %1656 = vrot.lane.b32.xlu0 %v641, 12
    %v1657 = vpop.permute.xlu0 %1656
    %1658 = vrot.lane.b32.xlu0 %v642, 12
    %v1659 = vpop.permute.xlu0 %1658
    %1660 = vrot.lane.b32.xlu0 %v643, 12
    %v1661 = vpop.permute.xlu0 %1660
    %1662 = vrot.lane.b32.xlu0 %v644, 12
    %v1663 = vpop.permute.xlu0 %1662
    %1664 = vrot.lane.b32.xlu0 %v645, 12
    %v1665 = vpop.permute.xlu0 %1664
    %1666 = vrot.lane.b32.xlu0 %v646, 12
    %v1667 = vpop.permute.xlu0 %1666
    %1668 = vrot.lane.b32.xlu0 %v647, 12
    %v1669 = vpop.permute.xlu0 %1668
    %1670 = vrot.lane.b32.xlu0 %v648, 12
    %v1671 = vpop.permute.xlu0 %1670
    %1672 = vrot.lane.b32.xlu0 %v649, 12
    %v1673 = vpop.permute.xlu0 %1672
    %1674 = vrot.lane.b32.xlu0 %v650, 12
    %v1675 = vpop.permute.xlu0 %1674
    %1804 = vrot.lane.b32.xlu0 %v651, 16
    %v1805 = vpop.permute.xlu0 %1804
    %1806 = vrot.lane.b32.xlu0 %v652, 16
    %v1807 = vpop.permute.xlu0 %1806
    %1808 = vrot.lane.b32.xlu0 %v653, 16
    %v1809 = vpop.permute.xlu0 %1808
    %1810 = vrot.lane.b32.xlu0 %v654, 16
    %v1811 = vpop.permute.xlu0 %1810
    %1812 = vrot.lane.b32.xlu0 %v655, 16
    %v1813 = vpop.permute.xlu0 %1812
    %1814 = vrot.lane.b32.xlu0 %v656, 16
    %v1815 = vpop.permute.xlu0 %1814
    %1816 = vrot.lane.b32.xlu0 %v657, 16
    %v1817 = vpop.permute.xlu0 %1816
    %1818 = vrot.lane.b32.xlu0 %v658, 16
    %v1819 = vpop.permute.xlu0 %1818
    %1820 = vrot.lane.b32.xlu0 %v659, 16
    %v1821 = vpop.permute.xlu0 %1820
    %1822 = vrot.lane.b32.xlu0 %v660, 16
    %v1823 = vpop.permute.xlu0 %1822
    %1824 = vrot.lane.b32.xlu0 %v661, 16
    %v1825 = vpop.permute.xlu0 %1824
    %1826 = vrot.lane.b32.xlu0 %v662, 16
    %v1827 = vpop.permute.xlu0 %1826
    %1828 = vrot.lane.b32.xlu0 %v663, 16
    %v1829 = vpop.permute.xlu0 %1828
    %1830 = vrot.lane.b32.xlu0 %v664, 16
    %v1831 = vpop.permute.xlu0 %1830
    %1832 = vrot.lane.b32.xlu0 %v665, 16
    %v1833 = vpop.permute.xlu0 %1832
    %1834 = vrot.lane.b32.xlu0 %v666, 16
    %v1835 = vpop.permute.xlu0 %1834
    %1836 = vrot.lane.b32.xlu0 %v667, 16
    %v1837 = vpop.permute.xlu0 %1836
    %1838 = vrot.lane.b32.xlu0 %v668, 16
    %v1839 = vpop.permute.xlu0 %1838
    %1840 = vrot.lane.b32.xlu0 %v669, 16
    %v1841 = vpop.permute.xlu0 %1840
    %1842 = vrot.lane.b32.xlu0 %v670, 16
    %v1843 = vpop.permute.xlu0 %1842
    %1844 = vrot.lane.b32.xlu0 %v671, 16
    %v1845 = vpop.permute.xlu0 %1844
    %1846 = vrot.lane.b32.xlu0 %v672, 16
    %v1847 = vpop.permute.xlu0 %1846
    %1848 = vrot.lane.b32.xlu0 %v673, 16
    %v1849 = vpop.permute.xlu0 %1848
    %1850 = vrot.lane.b32.xlu0 %v674, 16
    %v1851 = vpop.permute.xlu0 %1850
    %1852 = vrot.lane.b32.xlu0 %v675, 16
    %v1853 = vpop.permute.xlu0 %1852
    %1854 = vrot.lane.b32.xlu0 %v676, 16
    %v1855 = vpop.permute.xlu0 %1854
    %1856 = vrot.lane.b32.xlu0 %v677, 16
    %v1857 = vpop.permute.xlu0 %1856
    %1858 = vrot.lane.b32.xlu0 %v678, 16
    %v1859 = vpop.permute.xlu0 %1858
    %1860 = vrot.lane.b32.xlu0 %v679, 16
    %v1861 = vpop.permute.xlu0 %1860
    %1862 = vrot.lane.b32.xlu0 %v680, 16
    %v1863 = vpop.permute.xlu0 %1862
    %1864 = vrot.lane.b32.xlu0 %v681, 16
    %v1865 = vpop.permute.xlu0 %1864
    %1866 = vrot.lane.b32.xlu0 %v682, 16
    %v1867 = vpop.permute.xlu0 %1866
    %1868 = vrot.lane.b32.xlu0 %v683, 16
    %v1869 = vpop.permute.xlu0 %1868
    %1870 = vrot.lane.b32.xlu0 %v684, 16
    %v1871 = vpop.permute.xlu0 %1870
    %1872 = vrot.lane.b32.xlu0 %v685, 16
    %v1873 = vpop.permute.xlu0 %1872
    %1874 = vrot.lane.b32.xlu0 %v686, 16
    %v1875 = vpop.permute.xlu0 %1874
    %1876 = vrot.lane.b32.xlu0 %v687, 16
    %v1877 = vpop.permute.xlu0 %1876
    %1878 = vrot.lane.b32.xlu0 %v688, 16
    %v1879 = vpop.permute.xlu0 %1878
    %1880 = vrot.lane.b32.xlu0 %v689, 16
    %v1881 = vpop.permute.xlu0 %1880
    %1882 = vrot.lane.b32.xlu0 %v690, 16
    %v1883 = vpop.permute.xlu0 %1882
    %1884 = vrot.lane.b32.xlu0 %v691, 16
    %v1885 = vpop.permute.xlu0 %1884
    %1886 = vrot.lane.b32.xlu0 %v692, 16
    %v1887 = vpop.permute.xlu0 %1886
    %1888 = vrot.lane.b32.xlu0 %v693, 16
    %v1889 = vpop.permute.xlu0 %1888
    %1890 = vrot.lane.b32.xlu0 %v694, 16
    %v1891 = vpop.permute.xlu0 %1890
    %1892 = vrot.lane.b32.xlu0 %v695, 16
    %v1893 = vpop.permute.xlu0 %1892
    %1894 = vrot.lane.b32.xlu0 %v696, 16
    %v1895 = vpop.permute.xlu0 %1894
    %1896 = vrot.lane.b32.xlu0 %v697, 16
    %v1897 = vpop.permute.xlu0 %1896
    %1898 = vrot.lane.b32.xlu0 %v698, 16
    %v1899 = vpop.permute.xlu0 %1898
    %1900 = vrot.lane.b32.xlu0 %v699, 16
    %v1901 = vpop.permute.xlu0 %1900
    %1902 = vrot.lane.b32.xlu0 %v700, 16
    %v1903 = vpop.permute.xlu0 %1902
    %1904 = vrot.lane.b32.xlu0 %v701, 16
    %v1905 = vpop.permute.xlu0 %1904
    %1906 = vrot.lane.b32.xlu0 %v702, 16
    %v1907 = vpop.permute.xlu0 %1906
    %1908 = vrot.lane.b32.xlu0 %v703, 16
    %v1909 = vpop.permute.xlu0 %1908
    %1910 = vrot.lane.b32.xlu0 %v704, 16
    %v1911 = vpop.permute.xlu0 %1910
    %1912 = vrot.lane.b32.xlu0 %v705, 16
    %v1913 = vpop.permute.xlu0 %1912
    %1914 = vrot.lane.b32.xlu0 %v706, 16
    %v1915 = vpop.permute.xlu0 %1914
    %1916 = vrot.lane.b32.xlu0 %v707, 16
    %v1917 = vpop.permute.xlu0 %1916
    %1918 = vrot.lane.b32.xlu0 %v708, 16
    %v1919 = vpop.permute.xlu0 %1918
    %1920 = vrot.lane.b32.xlu0 %v709, 16
    %v1921 = vpop.permute.xlu0 %1920
    %1922 = vrot.lane.b32.xlu0 %v710, 16
    %v1923 = vpop.permute.xlu0 %1922
    %1924 = vrot.lane.b32.xlu0 %v711, 16
    %v1925 = vpop.permute.xlu0 %1924
    %1926 = vrot.lane.b32.xlu0 %v712, 16
    %v1927 = vpop.permute.xlu0 %1926
    %1928 = vrot.lane.b32.xlu0 %v713, 16
    %v1929 = vpop.permute.xlu0 %1928
    %1930 = vrot.lane.b32.xlu0 %v714, 16
    %v1931 = vpop.permute.xlu0 %1930
    %2060 = vrot.lane.b32.xlu0 %v715, 20
    %v2061 = vpop.permute.xlu0 %2060
    %2062 = vrot.lane.b32.xlu0 %v716, 20
    %v2063 = vpop.permute.xlu0 %2062
    %2064 = vrot.lane.b32.xlu0 %v717, 20
    %v2065 = vpop.permute.xlu0 %2064
    %2066 = vrot.lane.b32.xlu0 %v718, 20
    %v2067 = vpop.permute.xlu0 %2066
    %2068 = vrot.lane.b32.xlu0 %v719, 20
    %v2069 = vpop.permute.xlu0 %2068
    %2070 = vrot.lane.b32.xlu0 %v720, 20
    %v2071 = vpop.permute.xlu0 %2070
    %2072 = vrot.lane.b32.xlu0 %v721, 20
    %v2073 = vpop.permute.xlu0 %2072
    %2074 = vrot.lane.b32.xlu0 %v722, 20
    %v2075 = vpop.permute.xlu0 %2074
    %2076 = vrot.lane.b32.xlu0 %v723, 20
    %v2077 = vpop.permute.xlu0 %2076
    %2078 = vrot.lane.b32.xlu0 %v724, 20
    %v2079 = vpop.permute.xlu0 %2078
    %2080 = vrot.lane.b32.xlu0 %v725, 20
    %v2081 = vpop.permute.xlu0 %2080
    %2082 = vrot.lane.b32.xlu0 %v726, 20
    %v2083 = vpop.permute.xlu0 %2082
    %2084 = vrot.lane.b32.xlu0 %v727, 20
    %v2085 = vpop.permute.xlu0 %2084
    %2086 = vrot.lane.b32.xlu0 %v728, 20
    %v2087 = vpop.permute.xlu0 %2086
    %2088 = vrot.lane.b32.xlu0 %v729, 20
    %v2089 = vpop.permute.xlu0 %2088
    %2090 = vrot.lane.b32.xlu0 %v730, 20
    %v2091 = vpop.permute.xlu0 %2090
    %2092 = vrot.lane.b32.xlu0 %v731, 20
    %v2093 = vpop.permute.xlu0 %2092
    %2094 = vrot.lane.b32.xlu0 %v732, 20
    %v2095 = vpop.permute.xlu0 %2094
    %2096 = vrot.lane.b32.xlu0 %v733, 20
    %v2097 = vpop.permute.xlu0 %2096
    %2098 = vrot.lane.b32.xlu0 %v734, 20
    %v2099 = vpop.permute.xlu0 %2098
    %2100 = vrot.lane.b32.xlu0 %v735, 20
    %v2101 = vpop.permute.xlu0 %2100
    %2102 = vrot.lane.b32.xlu0 %v736, 20
    %v2103 = vpop.permute.xlu0 %2102
    %2104 = vrot.lane.b32.xlu0 %v737, 20
    %v2105 = vpop.permute.xlu0 %2104
    %2106 = vrot.lane.b32.xlu0 %v738, 20
    %v2107 = vpop.permute.xlu0 %2106
    %2108 = vrot.lane.b32.xlu0 %v739, 20
    %v2109 = vpop.permute.xlu0 %2108
    %2110 = vrot.lane.b32.xlu0 %v740, 20
    %v2111 = vpop.permute.xlu0 %2110
    %2112 = vrot.lane.b32.xlu0 %v741, 20
    %v2113 = vpop.permute.xlu0 %2112
    %2114 = vrot.lane.b32.xlu0 %v742, 20
    %v2115 = vpop.permute.xlu0 %2114
    %2116 = vrot.lane.b32.xlu0 %v743, 20
    %v2117 = vpop.permute.xlu0 %2116
    %2118 = vrot.lane.b32.xlu0 %v744, 20
    %v2119 = vpop.permute.xlu0 %2118
    %2120 = vrot.lane.b32.xlu0 %v745, 20
    %v2121 = vpop.permute.xlu0 %2120
    %2122 = vrot.lane.b32.xlu0 %v746, 20
    %v2123 = vpop.permute.xlu0 %2122
    %2124 = vrot.lane.b32.xlu0 %v747, 20
    %v2125 = vpop.permute.xlu0 %2124
    %2126 = vrot.lane.b32.xlu0 %v748, 20
    %v2127 = vpop.permute.xlu0 %2126
    %2128 = vrot.lane.b32.xlu0 %v749, 20
    %v2129 = vpop.permute.xlu0 %2128
    %2130 = vrot.lane.b32.xlu0 %v750, 20
    %v2131 = vpop.permute.xlu0 %2130
    %2132 = vrot.lane.b32.xlu0 %v751, 20
    %v2133 = vpop.permute.xlu0 %2132
    %2134 = vrot.lane.b32.xlu0 %v752, 20
    %v2135 = vpop.permute.xlu0 %2134
    %2136 = vrot.lane.b32.xlu0 %v753, 20
    %v2137 = vpop.permute.xlu0 %2136
    %2138 = vrot.lane.b32.xlu0 %v754, 20
    %v2139 = vpop.permute.xlu0 %2138
    %2140 = vrot.lane.b32.xlu0 %v755, 20
    %v2141 = vpop.permute.xlu0 %2140
    %2142 = vrot.lane.b32.xlu0 %v756, 20
    %v2143 = vpop.permute.xlu0 %2142
    %2144 = vrot.lane.b32.xlu0 %v757, 20
    %v2145 = vpop.permute.xlu0 %2144
    %2146 = vrot.lane.b32.xlu0 %v758, 20
    %v2147 = vpop.permute.xlu0 %2146
    %2148 = vrot.lane.b32.xlu0 %v759, 20
    %v2149 = vpop.permute.xlu0 %2148
    %2150 = vrot.lane.b32.xlu0 %v760, 20
    %v2151 = vpop.permute.xlu0 %2150
    %2152 = vrot.lane.b32.xlu0 %v761, 20
    %v2153 = vpop.permute.xlu0 %2152
    %2154 = vrot.lane.b32.xlu0 %v762, 20
    %v2155 = vpop.permute.xlu0 %2154
    %2156 = vrot.lane.b32.xlu0 %v763, 20
    %v2157 = vpop.permute.xlu0 %2156
    %2158 = vrot.lane.b32.xlu0 %v764, 20
    %v2159 = vpop.permute.xlu0 %2158
    %2160 = vrot.lane.b32.xlu0 %v765, 20
    %v2161 = vpop.permute.xlu0 %2160
    %2162 = vrot.lane.b32.xlu0 %v766, 20
    %v2163 = vpop.permute.xlu0 %2162
    %2164 = vrot.lane.b32.xlu0 %v767, 20
    %v2165 = vpop.permute.xlu0 %2164
    %2166 = vrot.lane.b32.xlu0 %v768, 20
    %v2167 = vpop.permute.xlu0 %2166
    %2168 = vrot.lane.b32.xlu0 %v769, 20
    %v2169 = vpop.permute.xlu0 %2168
    %2170 = vrot.lane.b32.xlu0 %v770, 20
    %v2171 = vpop.permute.xlu0 %2170
    %2172 = vrot.lane.b32.xlu0 %v771, 20
    %v2173 = vpop.permute.xlu0 %2172
    %2174 = vrot.lane.b32.xlu0 %v772, 20
    %v2175 = vpop.permute.xlu0 %2174
    %2176 = vrot.lane.b32.xlu0 %v773, 20
    %v2177 = vpop.permute.xlu0 %2176
    %2178 = vrot.lane.b32.xlu0 %v774, 20
    %v2179 = vpop.permute.xlu0 %2178
    %2180 = vrot.lane.b32.xlu0 %v775, 20
    %v2181 = vpop.permute.xlu0 %2180
    %2182 = vrot.lane.b32.xlu0 %v776, 20
    %v2183 = vpop.permute.xlu0 %2182
    %2184 = vrot.lane.b32.xlu0 %v777, 20
    %v2185 = vpop.permute.xlu0 %2184
    %2186 = vrot.lane.b32.xlu0 %v778, 20
    %v2187 = vpop.permute.xlu0 %2186
    %2316 = vrot.lane.b32.xlu0 %v780, 24
    %v2317 = vpop.permute.xlu0 %2316
    %2318 = vrot.lane.b32.xlu0 %v781, 24
    %v2319 = vpop.permute.xlu0 %2318
    %2320 = vrot.lane.b32.xlu0 %v782, 24
    %v2321 = vpop.permute.xlu0 %2320
    %2322 = vrot.lane.b32.xlu0 %v783, 24
    %v2323 = vpop.permute.xlu0 %2322
    %2324 = vrot.lane.b32.xlu0 %v784, 24
    %v2325 = vpop.permute.xlu0 %2324
    %2326 = vrot.lane.b32.xlu0 %v785, 24
    %v2327 = vpop.permute.xlu0 %2326
    %2328 = vrot.lane.b32.xlu0 %v786, 24
    %v2329 = vpop.permute.xlu0 %2328
    %2330 = vrot.lane.b32.xlu0 %v787, 24
    %v2331 = vpop.permute.xlu0 %2330
    %2332 = vrot.lane.b32.xlu0 %v788, 24
    %v2333 = vpop.permute.xlu0 %2332
    %2334 = vrot.lane.b32.xlu0 %v789, 24
    %v2335 = vpop.permute.xlu0 %2334
    %2336 = vrot.lane.b32.xlu0 %v790, 24
    %v2337 = vpop.permute.xlu0 %2336
    %2338 = vrot.lane.b32.xlu0 %v791, 24
    %v2339 = vpop.permute.xlu0 %2338
    %2340 = vrot.lane.b32.xlu0 %v792, 24
    %v2341 = vpop.permute.xlu0 %2340
    %2342 = vrot.lane.b32.xlu0 %v793, 24
    %v2343 = vpop.permute.xlu0 %2342
    %2344 = vrot.lane.b32.xlu0 %v794, 24
    %v2345 = vpop.permute.xlu0 %2344
    %2346 = vrot.lane.b32.xlu0 %v795, 24
    %v2347 = vpop.permute.xlu0 %2346
    %2348 = vrot.lane.b32.xlu0 %v796, 24
    %v2349 = vpop.permute.xlu0 %2348
    %2350 = vrot.lane.b32.xlu0 %v797, 24
    %v2351 = vpop.permute.xlu0 %2350
    %2352 = vrot.lane.b32.xlu0 %v798, 24
    %v2353 = vpop.permute.xlu0 %2352
    %2354 = vrot.lane.b32.xlu0 %v799, 24
    %v2355 = vpop.permute.xlu0 %2354
    %2356 = vrot.lane.b32.xlu0 %v800, 24
    %v2357 = vpop.permute.xlu0 %2356
    %2358 = vrot.lane.b32.xlu0 %v801, 24
    %v2359 = vpop.permute.xlu0 %2358
    %2360 = vrot.lane.b32.xlu0 %v802, 24
    %v2361 = vpop.permute.xlu0 %2360
    %2362 = vrot.lane.b32.xlu0 %v803, 24
    %v2363 = vpop.permute.xlu0 %2362
    %2364 = vrot.lane.b32.xlu0 %v804, 24
    %v2365 = vpop.permute.xlu0 %2364
    %2366 = vrot.lane.b32.xlu0 %v805, 24
    %v2367 = vpop.permute.xlu0 %2366
    %2368 = vrot.lane.b32.xlu0 %v806, 24
    %v2369 = vpop.permute.xlu0 %2368
    %2370 = vrot.lane.b32.xlu0 %v807, 24
    %v2371 = vpop.permute.xlu0 %2370
    %2372 = vrot.lane.b32.xlu0 %v808, 24
    %v2373 = vpop.permute.xlu0 %2372
    %2374 = vrot.lane.b32.xlu0 %v809, 24
    %v2375 = vpop.permute.xlu0 %2374
    %2376 = vrot.lane.b32.xlu0 %v810, 24
    %v2377 = vpop.permute.xlu0 %2376
    %2378 = vrot.lane.b32.xlu0 %v811, 24
    %v2379 = vpop.permute.xlu0 %2378
    %2380 = vrot.lane.b32.xlu0 %v812, 24
    %v2381 = vpop.permute.xlu0 %2380
    %2382 = vrot.lane.b32.xlu0 %v813, 24
    %v2383 = vpop.permute.xlu0 %2382
    %2384 = vrot.lane.b32.xlu0 %v814, 24
    %v2385 = vpop.permute.xlu0 %2384
    %2386 = vrot.lane.b32.xlu0 %v815, 24
    %v2387 = vpop.permute.xlu0 %2386
    %2388 = vrot.lane.b32.xlu0 %v816, 24
    %v2389 = vpop.permute.xlu0 %2388
    %2390 = vrot.lane.b32.xlu0 %v817, 24
    %v2391 = vpop.permute.xlu0 %2390
    %2392 = vrot.lane.b32.xlu0 %v818, 24
    %v2393 = vpop.permute.xlu0 %2392
    %2394 = vrot.lane.b32.xlu0 %v819, 24
    %v2395 = vpop.permute.xlu0 %2394
    %2396 = vrot.lane.b32.xlu0 %v820, 24
    %v2397 = vpop.permute.xlu0 %2396
    %2398 = vrot.lane.b32.xlu0 %v821, 24
    %v2399 = vpop.permute.xlu0 %2398
    %2400 = vrot.lane.b32.xlu0 %v822, 24
    %v2401 = vpop.permute.xlu0 %2400
    %2402 = vrot.lane.b32.xlu0 %v823, 24
    %v2403 = vpop.permute.xlu0 %2402
    %2404 = vrot.lane.b32.xlu0 %v824, 24
    %v2405 = vpop.permute.xlu0 %2404
    %2406 = vrot.lane.b32.xlu0 %v825, 24
    %v2407 = vpop.permute.xlu0 %2406
    %2408 = vrot.lane.b32.xlu0 %v826, 24
    %v2409 = vpop.permute.xlu0 %2408
    %2410 = vrot.lane.b32.xlu0 %v827, 24
    %v2411 = vpop.permute.xlu0 %2410
    %2412 = vrot.lane.b32.xlu0 %v828, 24
    %v2413 = vpop.permute.xlu0 %2412
    %2414 = vrot.lane.b32.xlu0 %v829, 24
    %v2415 = vpop.permute.xlu0 %2414
    %2416 = vrot.lane.b32.xlu0 %v830, 24
    %v2417 = vpop.permute.xlu0 %2416
    %2418 = vrot.lane.b32.xlu0 %v831, 24
    %v2419 = vpop.permute.xlu0 %2418
    %2420 = vrot.lane.b32.xlu0 %v832, 24
    %v2421 = vpop.permute.xlu0 %2420
    %2422 = vrot.lane.b32.xlu0 %v833, 24
    %v2423 = vpop.permute.xlu0 %2422
    %2424 = vrot.lane.b32.xlu0 %v834, 24
    %v2425 = vpop.permute.xlu0 %2424
    %2426 = vrot.lane.b32.xlu0 %v835, 24
    %v2427 = vpop.permute.xlu0 %2426
    %2428 = vrot.lane.b32.xlu0 %v836, 24
    %v2429 = vpop.permute.xlu0 %2428
    %2430 = vrot.lane.b32.xlu0 %v837, 24
    %v2431 = vpop.permute.xlu0 %2430
    %2432 = vrot.lane.b32.xlu0 %v838, 24
    %v2433 = vpop.permute.xlu0 %2432
    %2434 = vrot.lane.b32.xlu0 %v839, 24
    %v2435 = vpop.permute.xlu0 %2434
    %2436 = vrot.lane.b32.xlu0 %v840, 24
    %v2437 = vpop.permute.xlu0 %2436
    %2438 = vrot.lane.b32.xlu0 %v841, 24
    %v2439 = vpop.permute.xlu0 %2438
    %2440 = vrot.lane.b32.xlu0 %v842, 24
    %v2441 = vpop.permute.xlu0 %2440
    %2442 = vrot.lane.b32.xlu0 %v843, 24
    %v2443 = vpop.permute.xlu0 %2442
    %2572 = vrot.lane.b32.xlu0 %v844, 28
    %v2573 = vpop.permute.xlu0 %2572
    %2574 = vrot.lane.b32.xlu0 %v845, 28
    %v2575 = vpop.permute.xlu0 %2574
    %2576 = vrot.lane.b32.xlu0 %v846, 28
    %v2577 = vpop.permute.xlu0 %2576
    %2578 = vrot.lane.b32.xlu0 %v847, 28
    %v2579 = vpop.permute.xlu0 %2578
    %2580 = vrot.lane.b32.xlu0 %v848, 28
    %v2581 = vpop.permute.xlu0 %2580
    %2582 = vrot.lane.b32.xlu0 %v849, 28
    %v2583 = vpop.permute.xlu0 %2582
    %2584 = vrot.lane.b32.xlu0 %v850, 28
    %v2585 = vpop.permute.xlu0 %2584
    %2586 = vrot.lane.b32.xlu0 %v851, 28
    %v2587 = vpop.permute.xlu0 %2586
    %2588 = vrot.lane.b32.xlu0 %v852, 28
    %v2589 = vpop.permute.xlu0 %2588
    %2590 = vrot.lane.b32.xlu0 %v853, 28
    %v2591 = vpop.permute.xlu0 %2590
    %2592 = vrot.lane.b32.xlu0 %v854, 28
    %v2593 = vpop.permute.xlu0 %2592
    %2594 = vrot.lane.b32.xlu0 %v855, 28
    %v2595 = vpop.permute.xlu0 %2594
    %2596 = vrot.lane.b32.xlu0 %v856, 28
    %v2597 = vpop.permute.xlu0 %2596
    %2598 = vrot.lane.b32.xlu0 %v857, 28
    %v2599 = vpop.permute.xlu0 %2598
    %2600 = vrot.lane.b32.xlu0 %v858, 28
    %v2601 = vpop.permute.xlu0 %2600
    %2602 = vrot.lane.b32.xlu0 %v859, 28
    %v2603 = vpop.permute.xlu0 %2602
    %2604 = vrot.lane.b32.xlu0 %v860, 28
    %v2605 = vpop.permute.xlu0 %2604
    %2606 = vrot.lane.b32.xlu0 %v861, 28
    %v2607 = vpop.permute.xlu0 %2606
    %2608 = vrot.lane.b32.xlu0 %v862, 28
    %v2609 = vpop.permute.xlu0 %2608
    %2610 = vrot.lane.b32.xlu0 %v863, 28
    %v2611 = vpop.permute.xlu0 %2610
    %2612 = vrot.lane.b32.xlu0 %v864, 28
    %v2613 = vpop.permute.xlu0 %2612
    %2614 = vrot.lane.b32.xlu0 %v865, 28
    %v2615 = vpop.permute.xlu0 %2614
    %2616 = vrot.lane.b32.xlu0 %v866, 28
    %v2617 = vpop.permute.xlu0 %2616
    %2618 = vrot.lane.b32.xlu0 %v867, 28
    %v2619 = vpop.permute.xlu0 %2618
    %2620 = vrot.lane.b32.xlu0 %v868, 28
    %v2621 = vpop.permute.xlu0 %2620
    %2622 = vrot.lane.b32.xlu0 %v869, 28
    %v2623 = vpop.permute.xlu0 %2622
    %2624 = vrot.lane.b32.xlu0 %v870, 28
    %v2625 = vpop.permute.xlu0 %2624
    %2626 = vrot.lane.b32.xlu0 %v871, 28
    %v2627 = vpop.permute.xlu0 %2626
    %2628 = vrot.lane.b32.xlu0 %v872, 28
    %v2629 = vpop.permute.xlu0 %2628
    %2630 = vrot.lane.b32.xlu0 %v873, 28
    %v2631 = vpop.permute.xlu0 %2630
    %2632 = vrot.lane.b32.xlu0 %v874, 28
    %v2633 = vpop.permute.xlu0 %2632
    %2634 = vrot.lane.b32.xlu0 %v875, 28
    %v2635 = vpop.permute.xlu0 %2634
    %2636 = vrot.lane.b32.xlu0 %v876, 28
    %v2637 = vpop.permute.xlu0 %2636
    %2638 = vrot.lane.b32.xlu0 %v877, 28
    %v2639 = vpop.permute.xlu0 %2638
    %2640 = vrot.lane.b32.xlu0 %v878, 28
    %v2641 = vpop.permute.xlu0 %2640
    %2642 = vrot.lane.b32.xlu0 %v879, 28
    %v2643 = vpop.permute.xlu0 %2642
    %2644 = vrot.lane.b32.xlu0 %v880, 28
    %v2645 = vpop.permute.xlu0 %2644
    %2646 = vrot.lane.b32.xlu0 %v881, 28
    %v2647 = vpop.permute.xlu0 %2646
    %2648 = vrot.lane.b32.xlu0 %v882, 28
    %v2649 = vpop.permute.xlu0 %2648
    %2650 = vrot.lane.b32.xlu0 %v883, 28
    %v2651 = vpop.permute.xlu0 %2650
    %2652 = vrot.lane.b32.xlu0 %v884, 28
    %v2653 = vpop.permute.xlu0 %2652
    %2654 = vrot.lane.b32.xlu0 %v885, 28
    %v2655 = vpop.permute.xlu0 %2654
    %2656 = vrot.lane.b32.xlu0 %v886, 28
    %v2657 = vpop.permute.xlu0 %2656
    %2658 = vrot.lane.b32.xlu0 %v887, 28
    %v2659 = vpop.permute.xlu0 %2658
    %2660 = vrot.lane.b32.xlu0 %v888, 28
    %v2661 = vpop.permute.xlu0 %2660
    %2662 = vrot.lane.b32.xlu0 %v889, 28
    %v2663 = vpop.permute.xlu0 %2662
    %2664 = vrot.lane.b32.xlu0 %v890, 28
    %v2665 = vpop.permute.xlu0 %2664
    %2666 = vrot.lane.b32.xlu0 %v891, 28
    %v2667 = vpop.permute.xlu0 %2666
    %2668 = vrot.lane.b32.xlu0 %v892, 28
    %v2669 = vpop.permute.xlu0 %2668
    %2670 = vrot.lane.b32.xlu0 %v893, 28
    %v2671 = vpop.permute.xlu0 %2670
    %2672 = vrot.lane.b32.xlu0 %v894, 28
    %v2673 = vpop.permute.xlu0 %2672
    %2674 = vrot.lane.b32.xlu0 %v895, 28
    %v2675 = vpop.permute.xlu0 %2674
    %2676 = vrot.lane.b32.xlu0 %v896, 28
    %v2677 = vpop.permute.xlu0 %2676
    %2678 = vrot.lane.b32.xlu0 %v897, 28
    %v2679 = vpop.permute.xlu0 %2678
    %2680 = vrot.lane.b32.xlu0 %v898, 28
    %v2681 = vpop.permute.xlu0 %2680
    %2682 = vrot.lane.b32.xlu0 %v899, 28
    %v2683 = vpop.permute.xlu0 %2682
    %2684 = vrot.lane.b32.xlu0 %v900, 28
    %v2685 = vpop.permute.xlu0 %2684
    %2686 = vrot.lane.b32.xlu0 %v901, 28
    %v2687 = vpop.permute.xlu0 %2686
    %2688 = vrot.lane.b32.xlu0 %v902, 28
    %v2689 = vpop.permute.xlu0 %2688
    %2690 = vrot.lane.b32.xlu0 %v903, 28
    %v2691 = vpop.permute.xlu0 %2690
    %2692 = vrot.lane.b32.xlu0 %v904, 28
    %v2693 = vpop.permute.xlu0 %2692
    %2694 = vrot.lane.b32.xlu0 %v905, 28
    %v2695 = vpop.permute.xlu0 %2694
    %2696 = vrot.lane.b32.xlu0 %v906, 28
    %v2697 = vpop.permute.xlu0 %2696
    %2698 = vrot.lane.b32.xlu0 %v907, 28
    %v2699 = vpop.permute.xlu0 %2698
    %2828 = vrot.lane.b32.xlu0 %v908, 32
    %v2829 = vpop.permute.xlu0 %2828
    %2830 = vrot.lane.b32.xlu0 %v909, 32
    %v2831 = vpop.permute.xlu0 %2830
    %2832 = vrot.lane.b32.xlu0 %v910, 32
    %v2833 = vpop.permute.xlu0 %2832
    %2834 = vrot.lane.b32.xlu0 %v911, 32
    %v2835 = vpop.permute.xlu0 %2834
    %2836 = vrot.lane.b32.xlu0 %v912, 32
    %v2837 = vpop.permute.xlu0 %2836
    %2838 = vrot.lane.b32.xlu0 %v913, 32
    %v2839 = vpop.permute.xlu0 %2838
    %2840 = vrot.lane.b32.xlu0 %v914, 32
    %v2841 = vpop.permute.xlu0 %2840
    %2842 = vrot.lane.b32.xlu0 %v915, 32
    %v2843 = vpop.permute.xlu0 %2842
    %2844 = vrot.lane.b32.xlu0 %v916, 32
    %v2845 = vpop.permute.xlu0 %2844
    %2846 = vrot.lane.b32.xlu0 %v917, 32
    %v2847 = vpop.permute.xlu0 %2846
    %2848 = vrot.lane.b32.xlu0 %v918, 32
    %v2849 = vpop.permute.xlu0 %2848
    %2850 = vrot.lane.b32.xlu0 %v919, 32
    %v2851 = vpop.permute.xlu0 %2850
    %2852 = vrot.lane.b32.xlu0 %v920, 32
    %v2853 = vpop.permute.xlu0 %2852
    %2854 = vrot.lane.b32.xlu0 %v921, 32
    %v2855 = vpop.permute.xlu0 %2854
    %2856 = vrot.lane.b32.xlu0 %v922, 32
    %v2857 = vpop.permute.xlu0 %2856
    %2858 = vrot.lane.b32.xlu0 %v923, 32
    %v2859 = vpop.permute.xlu0 %2858
    %2860 = vrot.lane.b32.xlu0 %v924, 32
    %v2861 = vpop.permute.xlu0 %2860
    %2862 = vrot.lane.b32.xlu0 %v925, 32
    %v2863 = vpop.permute.xlu0 %2862
    %2864 = vrot.lane.b32.xlu0 %v926, 32
    %v2865 = vpop.permute.xlu0 %2864
    %2866 = vrot.lane.b32.xlu0 %v927, 32
    %v2867 = vpop.permute.xlu0 %2866
    %2868 = vrot.lane.b32.xlu0 %v928, 32
    %v2869 = vpop.permute.xlu0 %2868
    %2870 = vrot.lane.b32.xlu0 %v929, 32
    %v2871 = vpop.permute.xlu0 %2870
    %2872 = vrot.lane.b32.xlu0 %v930, 32
    %v2873 = vpop.permute.xlu0 %2872
    %2874 = vrot.lane.b32.xlu0 %v931, 32
    %v2875 = vpop.permute.xlu0 %2874
    %2876 = vrot.lane.b32.xlu0 %v932, 32
    %v2877 = vpop.permute.xlu0 %2876
    %2878 = vrot.lane.b32.xlu0 %v933, 32
    %v2879 = vpop.permute.xlu0 %2878
    %2880 = vrot.lane.b32.xlu0 %v934, 32
    %v2881 = vpop.permute.xlu0 %2880
    %2882 = vrot.lane.b32.xlu0 %v935, 32
    %v2883 = vpop.permute.xlu0 %2882
    %2884 = vrot.lane.b32.xlu0 %v936, 32
    %v2885 = vpop.permute.xlu0 %2884
    %2886 = vrot.lane.b32.xlu0 %v937, 32
    %v2887 = vpop.permute.xlu0 %2886
    %2888 = vrot.lane.b32.xlu0 %v938, 32
    %v2889 = vpop.permute.xlu0 %2888
    %2890 = vrot.lane.b32.xlu0 %v939, 32
    %v2891 = vpop.permute.xlu0 %2890
    %2892 = vrot.lane.b32.xlu0 %v940, 32
    %v2893 = vpop.permute.xlu0 %2892
    %2894 = vrot.lane.b32.xlu0 %v941, 32
    %v2895 = vpop.permute.xlu0 %2894
    %2896 = vrot.lane.b32.xlu0 %v942, 32
    %v2897 = vpop.permute.xlu0 %2896
    %2898 = vrot.lane.b32.xlu0 %v943, 32
    %v2899 = vpop.permute.xlu0 %2898
    %2900 = vrot.lane.b32.xlu0 %v944, 32
    %v2901 = vpop.permute.xlu0 %2900
    %2902 = vrot.lane.b32.xlu0 %v945, 32
    %v2903 = vpop.permute.xlu0 %2902
    %2904 = vrot.lane.b32.xlu0 %v946, 32
    %v2905 = vpop.permute.xlu0 %2904
    %2906 = vrot.lane.b32.xlu0 %v947, 32
    %v2907 = vpop.permute.xlu0 %2906
    %2908 = vrot.lane.b32.xlu0 %v948, 32
    %v2909 = vpop.permute.xlu0 %2908
    %2910 = vrot.lane.b32.xlu0 %v949, 32
    %v2911 = vpop.permute.xlu0 %2910
    %2912 = vrot.lane.b32.xlu0 %v950, 32
    %v2913 = vpop.permute.xlu0 %2912
    %2914 = vrot.lane.b32.xlu0 %v951, 32
    %v2915 = vpop.permute.xlu0 %2914
    %2916 = vrot.lane.b32.xlu0 %v952, 32
    %v2917 = vpop.permute.xlu0 %2916
    %2918 = vrot.lane.b32.xlu0 %v953, 32
    %v2919 = vpop.permute.xlu0 %2918
    %2920 = vrot.lane.b32.xlu0 %v954, 32
    %v2921 = vpop.permute.xlu0 %2920
    %2922 = vrot.lane.b32.xlu0 %v955, 32
    %v2923 = vpop.permute.xlu0 %2922
    %2924 = vrot.lane.b32.xlu0 %v956, 32
    %v2925 = vpop.permute.xlu0 %2924
    %2926 = vrot.lane.b32.xlu0 %v957, 32
    %v2927 = vpop.permute.xlu0 %2926
    %2928 = vrot.lane.b32.xlu0 %v958, 32
    %v2929 = vpop.permute.xlu0 %2928
    %2930 = vrot.lane.b32.xlu0 %v959, 32
    %v2931 = vpop.permute.xlu0 %2930
    %2932 = vrot.lane.b32.xlu0 %v960, 32
    %v2933 = vpop.permute.xlu0 %2932
    %2934 = vrot.lane.b32.xlu0 %v961, 32
    %v2935 = vpop.permute.xlu0 %2934
    %2936 = vrot.lane.b32.xlu0 %v962, 32
    %v2937 = vpop.permute.xlu0 %2936
    %2938 = vrot.lane.b32.xlu0 %v963, 32
    %v2939 = vpop.permute.xlu0 %2938
    %2940 = vrot.lane.b32.xlu0 %v964, 32
    %v2941 = vpop.permute.xlu0 %2940
    %2942 = vrot.lane.b32.xlu0 %v965, 32
    %v2943 = vpop.permute.xlu0 %2942
    %2944 = vrot.lane.b32.xlu0 %v966, 32
    %v2945 = vpop.permute.xlu0 %2944
    %2946 = vrot.lane.b32.xlu0 %v967, 32
    %v2947 = vpop.permute.xlu0 %2946
    %2948 = vrot.lane.b32.xlu0 %v968, 32
    %v2949 = vpop.permute.xlu0 %2948
    %2950 = vrot.lane.b32.xlu0 %v969, 32
    %v2951 = vpop.permute.xlu0 %2950
    %2952 = vrot.lane.b32.xlu0 %v970, 32
    %v2953 = vpop.permute.xlu0 %2952
    %2954 = vrot.lane.b32.xlu0 %v971, 32
    %v2955 = vpop.permute.xlu0 %2954
    %v3020 = vsel %vm242, %v395, %v1037
    %v3021 = vsel %vm242, %v396, %v1039
    %v3022 = vsel %vm242, %v397, %v1041
    %v3023 = vsel %vm242, %v398, %v1043
    %v3024 = vsel %vm242, %v399, %v1045
    %v3025 = vsel %vm242, %v400, %v1047
    %v3026 = vsel %vm242, %v401, %v1049
    %v3027 = vsel %vm242, %v402, %v1051
    %v3028 = vsel %vm242, %v403, %v1053
    %v3029 = vsel %vm242, %v404, %v1055
    %v3030 = vsel %vm242, %v405, %v1057
    %v3031 = vsel %vm242, %v406, %v1059
    %v3032 = vsel %vm242, %v407, %v1061
    %v3033 = vsel %vm242, %v408, %v1063
    %v3034 = vsel %vm242, %v409, %v1065
    %v3035 = vsel %vm242, %v410, %v1067
    %v3036 = vsel %vm242, %v411, %v1069
    %v3037 = vsel %vm242, %v412, %v1071
    %v3038 = vsel %vm242, %v413, %v1073
    %v3039 = vsel %vm242, %v414, %v1075
    %v3040 = vsel %vm242, %v415, %v1077
    %v3041 = vsel %vm242, %v416, %v1079
    %v3042 = vsel %vm242, %v417, %v1081
    %v3043 = vsel %vm242, %v418, %v1083
    %v3044 = vsel %vm242, %v419, %v1085
    %v3045 = vsel %vm242, %v420, %v1087
    %v3046 = vsel %vm242, %v421, %v1089
    %v3047 = vsel %vm242, %v422, %v1091
    %v3048 = vsel %vm242, %v423, %v1093
    %v3049 = vsel %vm242, %v424, %v1095
    %v3050 = vsel %vm242, %v425, %v1097
    %v3051 = vsel %vm242, %v426, %v1099
    %v3052 = vsel %vm242, %v427, %v1101
    %v3053 = vsel %vm242, %v428, %v1103
    %v3054 = vsel %vm242, %v429, %v1105
    %v3055 = vsel %vm242, %v430, %v1107
    %v3056 = vsel %vm242, %v431, %v1109
    %v3057 = vsel %vm242, %v432, %v1111
    %v3058 = vsel %vm242, %v433, %v1113
    %v3059 = vsel %vm242, %v434, %v1115
    %v3060 = vsel %vm242, %v435, %v1117
    %v3061 = vsel %vm242, %v436, %v1119
    %v3062 = vsel %vm242, %v437, %v1121
    %v3063 = vsel %vm242, %v438, %v1123
    %v3064 = vsel %vm242, %v439, %v1125
    %v3065 = vsel %vm242, %v440, %v1127
    %v3066 = vsel %vm242, %v441, %v1129
    %v3067 = vsel %vm242, %v442, %v1131
    %v3068 = vsel %vm242, %v443, %v1133
    %v3069 = vsel %vm242, %v444, %v1135
    %v3070 = vsel %vm242, %v445, %v1137
    %v3071 = vsel %vm242, %v446, %v1139
    %v3072 = vsel %vm242, %v447, %v1141
    %v3073 = vsel %vm242, %v448, %v1143
    %v3074 = vsel %vm242, %v449, %v1145
    %v3075 = vsel %vm242, %v450, %v1147
    %v3076 = vsel %vm242, %v451, %v1149
    %v3077 = vsel %vm242, %v452, %v1151
    %v3078 = vsel %vm242, %v453, %v1153
    %v3079 = vsel %vm242, %v454, %v1155
    %v3080 = vsel %vm242, %v455, %v1157
    %v3081 = vsel %vm242, %v456, %v1159
    %v3082 = vsel %vm242, %v457, %v1161
    %v3083 = vsel %vm242, %v458, %v1163
    %vm3084 = vcmask 64512
    %v3085 = vsel %vm3084, %v3020, %v1293
    %v3086 = vsel %vm3084, %v3021, %v1295
    %v3087 = vsel %vm3084, %v3022, %v1297
    %v3088 = vsel %vm3084, %v3023, %v1299
    %v3089 = vsel %vm3084, %v3024, %v1301
    %v3090 = vsel %vm3084, %v3025, %v1303
    %v3091 = vsel %vm3084, %v3026, %v1305
    %v3092 = vsel %vm3084, %v3027, %v1307
    %v3093 = vsel %vm3084, %v3028, %v1309
    %v3094 = vsel %vm3084, %v3029, %v1311
    %v3095 = vsel %vm3084, %v3030, %v1313
    %v3096 = vsel %vm3084, %v3031, %v1315
    %v3097 = vsel %vm3084, %v3032, %v1317
    %v3098 = vsel %vm3084, %v3033, %v1319
    %v3099 = vsel %vm3084, %v3034, %v1321
    %v3100 = vsel %vm3084, %v3035, %v1323
    %v3101 = vsel %vm3084, %v3036, %v1325
    %v3102 = vsel %vm3084, %v3037, %v1327
    %v3103 = vsel %vm3084, %v3038, %v1329
    %v3104 = vsel %vm3084, %v3039, %v1331
    %v3105 = vsel %vm3084, %v3040, %v1333
    %v3106 = vsel %vm3084, %v3041, %v1335
    %v3107 = vsel %vm3084, %v3042, %v1337
    %v3108 = vsel %vm3084, %v3043, %v1339
    %v3109 = vsel %vm3084, %v3044, %v1341
    %v3110 = vsel %vm3084, %v3045, %v1343
    %v3111 = vsel %vm3084, %v3046, %v1345
    %v3112 = vsel %vm3084, %v3047, %v1347
    %v3113 = vsel %vm3084, %v3048, %v1349
    %v3114 = vsel %vm3084, %v3049, %v1351
    %v3115 = vsel %vm3084, %v3050, %v1353
    %v3116 = vsel %vm3084, %v3051, %v1355
    %v3117 = vsel %vm3084, %v3052, %v1357
    %v3118 = vsel %vm3084, %v3053, %v1359
    %v3119 = vsel %vm3084, %v3054, %v1361
    %v3120 = vsel %vm3084, %v3055, %v1363
    %v3121 = vsel %vm3084, %v3056, %v1365
    %v3122 = vsel %vm3084, %v3057, %v1367
    %v3123 = vsel %vm3084, %v3058, %v1369
    %v3124 = vsel %vm3084, %v3059, %v1371
    %v3125 = vsel %vm3084, %v3060, %v1373
    %v3126 = vsel %vm3084, %v3061, %v1375
    %v3127 = vsel %vm3084, %v3062, %v1377
    %v3128 = vsel %vm3084, %v3063, %v1379
    %v3129 = vsel %vm3084, %v3064, %v1381
    %v3130 = vsel %vm3084, %v3065, %v1383
    %v3131 = vsel %vm3084, %v3066, %v1385
    %v3132 = vsel %vm3084, %v3067, %v1387
    %v3133 = vsel %vm3084, %v3068, %v1389
    %v3134 = vsel %vm3084, %v3069, %v1391
    %v3135 = vsel %vm3084, %v3070, %v1393
    %v3136 = vsel %vm3084, %v3071, %v1395
    %v3137 = vsel %vm3084, %v3072, %v1397
    %v3138 = vsel %vm3084, %v3073, %v1399
    %v3139 = vsel %vm3084, %v3074, %v1401
    %v3140 = vsel %vm3084, %v3075, %v1403
    %v3141 = vsel %vm3084, %v3076, %v1405
    %v3142 = vsel %vm3084, %v3077, %v1407
    %v3143 = vsel %vm3084, %v3078, %v1409
    %v3144 = vsel %vm3084, %v3079, %v1411
    %v3145 = vsel %vm3084, %v3080, %v1413
    %v3146 = vsel %vm3084, %v3081, %v1415
    %v3147 = vsel %vm3084, %v3082, %v1417
    %v3148 = vsel %vm3084, %v3083, %v1419
    %vm3149 = vcmask 97280
    %v3150 = vsel %vm3149, %v3085, %v1549
    %v3151 = vsel %vm3149, %v3086, %v1551
    %v3152 = vsel %vm3149, %v3087, %v1553
    %v3153 = vsel %vm3149, %v3088, %v1555
    %v3154 = vsel %vm3149, %v3089, %v1557
    %v3155 = vsel %vm3149, %v3090, %v1559
    %v3156 = vsel %vm3149, %v3091, %v1561
    %v3157 = vsel %vm3149, %v3092, %v1563
    %v3158 = vsel %vm3149, %v3093, %v1565
    %v3159 = vsel %vm3149, %v3094, %v1567
    %v3160 = vsel %vm3149, %v3095, %v1569
    %v3161 = vsel %vm3149, %v3096, %v1571
    %v3162 = vsel %vm3149, %v3097, %v1573
    %v3163 = vsel %vm3149, %v3098, %v1575
    %v3164 = vsel %vm3149, %v3099, %v1577
    %v3165 = vsel %vm3149, %v3100, %v1579
    %v3166 = vsel %vm3149, %v3101, %v1581
    %v3167 = vsel %vm3149, %v3102, %v1583
    %v3168 = vsel %vm3149, %v3103, %v1585
    %v3169 = vsel %vm3149, %v3104, %v1587
    %v3170 = vsel %vm3149, %v3105, %v1589
    %v3171 = vsel %vm3149, %v3106, %v1591
    %v3172 = vsel %vm3149, %v3107, %v1593
    %v3173 = vsel %vm3149, %v3108, %v1595
    %v3174 = vsel %vm3149, %v3109, %v1597
    %v3175 = vsel %vm3149, %v3110, %v1599
    %v3176 = vsel %vm3149, %v3111, %v1601
    %v3177 = vsel %vm3149, %v3112, %v1603
    %v3178 = vsel %vm3149, %v3113, %v1605
    %v3179 = vsel %vm3149, %v3114, %v1607
    %v3180 = vsel %vm3149, %v3115, %v1609
    %v3181 = vsel %vm3149, %v3116, %v1611
    %v3182 = vsel %vm3149, %v3117, %v1613
    %v3183 = vsel %vm3149, %v3118, %v1615
    %v3184 = vsel %vm3149, %v3119, %v1617
    %v3185 = vsel %vm3149, %v3120, %v1619
    %v3186 = vsel %vm3149, %v3121, %v1621
    %v3187 = vsel %vm3149, %v3122, %v1623
    %v3188 = vsel %vm3149, %v3123, %v1625
    %v3189 = vsel %vm3149, %v3124, %v1627
    %v3190 = vsel %vm3149, %v3125, %v1629
    %v3191 = vsel %vm3149, %v3126, %v1631
    %v3192 = vsel %vm3149, %v3127, %v1633
    %v3193 = vsel %vm3149, %v3128, %v1635
    %v3194 = vsel %vm3149, %v3129, %v1637
    %v3195 = vsel %vm3149, %v3130, %v1639
    %v3196 = vsel %vm3149, %v3131, %v1641
    %v3197 = vsel %vm3149, %v3132, %v1643
    %v3198 = vsel %vm3149, %v3133, %v1645
    %v3199 = vsel %vm3149, %v3134, %v1647
    %v3200 = vsel %vm3149, %v3135, %v1649
    %v3201 = vsel %vm3149, %v3136, %v1651
    %v3202 = vsel %vm3149, %v3137, %v1653
    %v3203 = vsel %vm3149, %v3138, %v1655
    %v3204 = vsel %vm3149, %v3139, %v1657
    %v3205 = vsel %vm3149, %v3140, %v1659
    %v3206 = vsel %vm3149, %v3141, %v1661
    %v3207 = vsel %vm3149, %v3142, %v1663
    %v3208 = vsel %vm3149, %v3143, %v1665
    %v3209 = vsel %vm3149, %v3144, %v1667
    %v3210 = vsel %vm3149, %v3145, %v1669
    %v3211 = vsel %vm3149, %v3146, %v1671
    %v3212 = vsel %vm3149, %v3147, %v1673
    %v3213 = vsel %vm3149, %v3148, %v1675
    %vm3214 = vcmask 130048
    %v3215 = vsel %vm3214, %v3150, %v1805
    %v3216 = vsel %vm3214, %v3151, %v1807
    %v3217 = vsel %vm3214, %v3152, %v1809
    %v3218 = vsel %vm3214, %v3153, %v1811
    %v3219 = vsel %vm3214, %v3154, %v1813
    %v3220 = vsel %vm3214, %v3155, %v1815
    %v3221 = vsel %vm3214, %v3156, %v1817
    %v3222 = vsel %vm3214, %v3157, %v1819
    %v3223 = vsel %vm3214, %v3158, %v1821
    %v3224 = vsel %vm3214, %v3159, %v1823
    %v3225 = vsel %vm3214, %v3160, %v1825
    %v3226 = vsel %vm3214, %v3161, %v1827
    %v3227 = vsel %vm3214, %v3162, %v1829
    %v3228 = vsel %vm3214, %v3163, %v1831
    %v3229 = vsel %vm3214, %v3164, %v1833
    %v3230 = vsel %vm3214, %v3165, %v1835
    %v3231 = vsel %vm3214, %v3166, %v1837
    %v3232 = vsel %vm3214, %v3167, %v1839
    %v3233 = vsel %vm3214, %v3168, %v1841
    %v3234 = vsel %vm3214, %v3169, %v1843
    %v3235 = vsel %vm3214, %v3170, %v1845
    %v3236 = vsel %vm3214, %v3171, %v1847
    %v3237 = vsel %vm3214, %v3172, %v1849
    %v3238 = vsel %vm3214, %v3173, %v1851
    %v3239 = vsel %vm3214, %v3174, %v1853
    %v3240 = vsel %vm3214, %v3175, %v1855
    %v3241 = vsel %vm3214, %v3176, %v1857
    %v3242 = vsel %vm3214, %v3177, %v1859
    %v3243 = vsel %vm3214, %v3178, %v1861
    %v3244 = vsel %vm3214, %v3179, %v1863
    %v3245 = vsel %vm3214, %v3180, %v1865
    %v3246 = vsel %vm3214, %v3181, %v1867
    %v3247 = vsel %vm3214, %v3182, %v1869
    %v3248 = vsel %vm3214, %v3183, %v1871
    %v3249 = vsel %vm3214, %v3184, %v1873
    %v3250 = vsel %vm3214, %v3185, %v1875
    %v3251 = vsel %vm3214, %v3186, %v1877
    %v3252 = vsel %vm3214, %v3187, %v1879
    %v3253 = vsel %vm3214, %v3188, %v1881
    %v3254 = vsel %vm3214, %v3189, %v1883
    %v3255 = vsel %vm3214, %v3190, %v1885
    %v3256 = vsel %vm3214, %v3191, %v1887
    %v3257 = vsel %vm3214, %v3192, %v1889
    %v3258 = vsel %vm3214, %v3193, %v1891
    %v3259 = vsel %vm3214, %v3194, %v1893
    %v3260 = vsel %vm3214, %v3195, %v1895
    %v3261 = vsel %vm3214, %v3196, %v1897
    %v3262 = vsel %vm3214, %v3197, %v1899
    %v3263 = vsel %vm3214, %v3198, %v1901
    %v3264 = vsel %vm3214, %v3199, %v1903
    %v3265 = vsel %vm3214, %v3200, %v1905
    %v3266 = vsel %vm3214, %v3201, %v1907
    %v3267 = vsel %vm3214, %v3202, %v1909
    %v3268 = vsel %vm3214, %v3203, %v1911
    %v3269 = vsel %vm3214, %v3204, %v1913
    %v3270 = vsel %vm3214, %v3205, %v1915
    %v3271 = vsel %vm3214, %v3206, %v1917
    %v3272 = vsel %vm3214, %v3207, %v1919
    %v3273 = vsel %vm3214, %v3208, %v1921
    %v3274 = vsel %vm3214, %v3209, %v1923
    %v3275 = vsel %vm3214, %v3210, %v1925
    %v3276 = vsel %vm3214, %v3211, %v1927
    %v3277 = vsel %vm3214, %v3212, %v1929
    %v3278 = vsel %vm3214, %v3213, %v1931
    %vm3279 = vcmask 162816
    %v3280 = vsel %vm3279, %v3215, %v2061
    %v3281 = vsel %vm3279, %v3216, %v2063
    %v3282 = vsel %vm3279, %v3217, %v2065
    %v3283 = vsel %vm3279, %v3218, %v2067
    %v3284 = vsel %vm3279, %v3219, %v2069
    %v3285 = vsel %vm3279, %v3220, %v2071
    %v3286 = vsel %vm3279, %v3221, %v2073
    %v3287 = vsel %vm3279, %v3222, %v2075
    %v3288 = vsel %vm3279, %v3223, %v2077
    %v3289 = vsel %vm3279, %v3224, %v2079
    %v3290 = vsel %vm3279, %v3225, %v2081
    %v3291 = vsel %vm3279, %v3226, %v2083
    %v3292 = vsel %vm3279, %v3227, %v2085
    %v3293 = vsel %vm3279, %v3228, %v2087
    %v3294 = vsel %vm3279, %v3229, %v2089
    %v3295 = vsel %vm3279, %v3230, %v2091
    %v3296 = vsel %vm3279, %v3231, %v2093
    %v3297 = vsel %vm3279, %v3232, %v2095
    %v3298 = vsel %vm3279, %v3233, %v2097
    %v3299 = vsel %vm3279, %v3234, %v2099
    %v3300 = vsel %vm3279, %v3235, %v2101
    %v3301 = vsel %vm3279, %v3236, %v2103
    %v3302 = vsel %vm3279, %v3237, %v2105
    %v3303 = vsel %vm3279, %v3238, %v2107
    %v3304 = vsel %vm3279, %v3239, %v2109
    %v3305 = vsel %vm3279, %v3240, %v2111
    %v3306 = vsel %vm3279, %v3241, %v2113
    %v3307 = vsel %vm3279, %v3242, %v2115
    %v3308 = vsel %vm3279, %v3243, %v2117
    %v3309 = vsel %vm3279, %v3244, %v2119
    %v3310 = vsel %vm3279, %v3245, %v2121
    %v3311 = vsel %vm3279, %v3246, %v2123
    %v3312 = vsel %vm3279, %v3247, %v2125
    %v3313 = vsel %vm3279, %v3248, %v2127
    %v3314 = vsel %vm3279, %v3249, %v2129
    %v3315 = vsel %vm3279, %v3250, %v2131
    %v3316 = vsel %vm3279, %v3251, %v2133
    %v3317 = vsel %vm3279, %v3252, %v2135
    %v3318 = vsel %vm3279, %v3253, %v2137
    %v3319 = vsel %vm3279, %v3254, %v2139
    %v3320 = vsel %vm3279, %v3255, %v2141
    %v3321 = vsel %vm3279, %v3256, %v2143
    %v3322 = vsel %vm3279, %v3257, %v2145
    %v3323 = vsel %vm3279, %v3258, %v2147
    %v3324 = vsel %vm3279, %v3259, %v2149
    %v3325 = vsel %vm3279, %v3260, %v2151
    %v3326 = vsel %vm3279, %v3261, %v2153
    %v3327 = vsel %vm3279, %v3262, %v2155
    %v3328 = vsel %vm3279, %v3263, %v2157
    %v3329 = vsel %vm3279, %v3264, %v2159
    %v3330 = vsel %vm3279, %v3265, %v2161
    %v3331 = vsel %vm3279, %v3266, %v2163
    %v3332 = vsel %vm3279, %v3267, %v2165
    %v3333 = vsel %vm3279, %v3268, %v2167
    %v3334 = vsel %vm3279, %v3269, %v2169
    %v3335 = vsel %vm3279, %v3270, %v2171
    %v3336 = vsel %vm3279, %v3271, %v2173
    %v3337 = vsel %vm3279, %v3272, %v2175
    %v3338 = vsel %vm3279, %v3273, %v2177
    %v3339 = vsel %vm3279, %v3274, %v2179
    %v3340 = vsel %vm3279, %v3275, %v2181
    %v3341 = vsel %vm3279, %v3276, %v2183
    %v3342 = vsel %vm3279, %v3277, %v2185
    %v3343 = vsel %vm3279, %v3278, %v2187
    %vm3344 = vcmask 195584
    %v3345 = vsel %vm3344, %v3280, %v2317
    %v3346 = vsel %vm3344, %v3281, %v2319
    %v3347 = vsel %vm3344, %v3282, %v2321
    %v3348 = vsel %vm3344, %v3283, %v2323
    %v3349 = vsel %vm3344, %v3284, %v2325
    %v3350 = vsel %vm3344, %v3285, %v2327
    %v3351 = vsel %vm3344, %v3286, %v2329
    %v3352 = vsel %vm3344, %v3287, %v2331
    %v3353 = vsel %vm3344, %v3288, %v2333
    %v3354 = vsel %vm3344, %v3289, %v2335
    %v3355 = vsel %vm3344, %v3290, %v2337
    %v3356 = vsel %vm3344, %v3291, %v2339
    %v3357 = vsel %vm3344, %v3292, %v2341
    %v3358 = vsel %vm3344, %v3293, %v2343
    %v3359 = vsel %vm3344, %v3294, %v2345
    %v3360 = vsel %vm3344, %v3295, %v2347
    %v3361 = vsel %vm3344, %v3296, %v2349
    %v3362 = vsel %vm3344, %v3297, %v2351
    %v3363 = vsel %vm3344, %v3298, %v2353
    %v3364 = vsel %vm3344, %v3299, %v2355
    %v3365 = vsel %vm3344, %v3300, %v2357
    %v3366 = vsel %vm3344, %v3301, %v2359
    %v3367 = vsel %vm3344, %v3302, %v2361
    %v3368 = vsel %vm3344, %v3303, %v2363
    %v3369 = vsel %vm3344, %v3304, %v2365
    %v3370 = vsel %vm3344, %v3305, %v2367
    %v3371 = vsel %vm3344, %v3306, %v2369
    %v3372 = vsel %vm3344, %v3307, %v2371
    %v3373 = vsel %vm3344, %v3308, %v2373
    %v3374 = vsel %vm3344, %v3309, %v2375
    %v3375 = vsel %vm3344, %v3310, %v2377
    %v3376 = vsel %vm3344, %v3311, %v2379
    %v3377 = vsel %vm3344, %v3312, %v2381
    %v3378 = vsel %vm3344, %v3313, %v2383
    %v3379 = vsel %vm3344, %v3314, %v2385
    %v3380 = vsel %vm3344, %v3315, %v2387
    %v3381 = vsel %vm3344, %v3316, %v2389
    %v3382 = vsel %vm3344, %v3317, %v2391
    %v3383 = vsel %vm3344, %v3318, %v2393
    %v3384 = vsel %vm3344, %v3319, %v2395
    %v3385 = vsel %vm3344, %v3320, %v2397
    %v3386 = vsel %vm3344, %v3321, %v2399
    %v3387 = vsel %vm3344, %v3322, %v2401
    %v3388 = vsel %vm3344, %v3323, %v2403
    %v3389 = vsel %vm3344, %v3324, %v2405
    %v3390 = vsel %vm3344, %v3325, %v2407
    %v3391 = vsel %vm3344, %v3326, %v2409
    %v3392 = vsel %vm3344, %v3327, %v2411
    %v3393 = vsel %vm3344, %v3328, %v2413
    %v3394 = vsel %vm3344, %v3329, %v2415
    %v3395 = vsel %vm3344, %v3330, %v2417
    %v3396 = vsel %vm3344, %v3331, %v2419
    %v3397 = vsel %vm3344, %v3332, %v2421
    %v3398 = vsel %vm3344, %v3333, %v2423
    %v3399 = vsel %vm3344, %v3334, %v2425
    %v3400 = vsel %vm3344, %v3335, %v2427
    %v3401 = vsel %vm3344, %v3336, %v2429
    %v3402 = vsel %vm3344, %v3337, %v2431
    %v3403 = vsel %vm3344, %v3338, %v2433
    %v3404 = vsel %vm3344, %v3339, %v2435
    %v3405 = vsel %vm3344, %v3340, %v2437
    %v3406 = vsel %vm3344, %v3341, %v2439
    %v3407 = vsel %vm3344, %v3342, %v2441
    %v3408 = vsel %vm3344, %v3343, %v2443
    %vm3409 = vcmask 228352
    %v3410 = vsel %vm3409, %v3345, %v2573
    %v3411 = vsel %vm3409, %v3346, %v2575
    %v3412 = vsel %vm3409, %v3347, %v2577
    %v3413 = vsel %vm3409, %v3348, %v2579
    %v3414 = vsel %vm3409, %v3349, %v2581
    %v3415 = vsel %vm3409, %v3350, %v2583
    %v3416 = vsel %vm3409, %v3351, %v2585
    %v3417 = vsel %vm3409, %v3352, %v2587
    %v3418 = vsel %vm3409, %v3353, %v2589
    %v3419 = vsel %vm3409, %v3354, %v2591
    %v3420 = vsel %vm3409, %v3355, %v2593
    %v3421 = vsel %vm3409, %v3356, %v2595
    %v3422 = vsel %vm3409, %v3357, %v2597
    %v3423 = vsel %vm3409, %v3358, %v2599
    %v3424 = vsel %vm3409, %v3359, %v2601
    %v3425 = vsel %vm3409, %v3360, %v2603
    %v3426 = vsel %vm3409, %v3361, %v2605
    %v3427 = vsel %vm3409, %v3362, %v2607
    %v3428 = vsel %vm3409, %v3363, %v2609
    %v3429 = vsel %vm3409, %v3364, %v2611
    %v3430 = vsel %vm3409, %v3365, %v2613
    %v3431 = vsel %vm3409, %v3366, %v2615
    %v3432 = vsel %vm3409, %v3367, %v2617
    %v3433 = vsel %vm3409, %v3368, %v2619
    %v3434 = vsel %vm3409, %v3369, %v2621
    %v3435 = vsel %vm3409, %v3370, %v2623
    %v3436 = vsel %vm3409, %v3371, %v2625
    %v3437 = vsel %vm3409, %v3372, %v2627
    %v3438 = vsel %vm3409, %v3373, %v2629
    %v3439 = vsel %vm3409, %v3374, %v2631
    %v3440 = vsel %vm3409, %v3375, %v2633
    %v3441 = vsel %vm3409, %v3376, %v2635
    %v3442 = vsel %vm3409, %v3377, %v2637
    %v3443 = vsel %vm3409, %v3378, %v2639
    %v3444 = vsel %vm3409, %v3379, %v2641
    %v3445 = vsel %vm3409, %v3380, %v2643
    %v3446 = vsel %vm3409, %v3381, %v2645
    %v3447 = vsel %vm3409, %v3382, %v2647
    %v3448 = vsel %vm3409, %v3383, %v2649
    %v3449 = vsel %vm3409, %v3384, %v2651
    %v3450 = vsel %vm3409, %v3385, %v2653
    %v3451 = vsel %vm3409, %v3386, %v2655
    %v3452 = vsel %vm3409, %v3387, %v2657
    %v3453 = vsel %vm3409, %v3388, %v2659
    %v3454 = vsel %vm3409, %v3389, %v2661
    %v3455 = vsel %vm3409, %v3390, %v2663
    %v3456 = vsel %vm3409, %v3391, %v2665
    %v3457 = vsel %vm3409, %v3392, %v2667
    %v3458 = vsel %vm3409, %v3393, %v2669
    %v3459 = vsel %vm3409, %v3394, %v2671
    %v3460 = vsel %vm3409, %v3395, %v2673
    %v3461 = vsel %vm3409, %v3396, %v2675
    %v3462 = vsel %vm3409, %v3397, %v2677
    %v3463 = vsel %vm3409, %v3398, %v2679
    %v3464 = vsel %vm3409, %v3399, %v2681
    %v3465 = vsel %vm3409, %v3400, %v2683
    %v3466 = vsel %vm3409, %v3401, %v2685
    %v3467 = vsel %vm3409, %v3402, %v2687
    %v3468 = vsel %vm3409, %v3403, %v2689
    %v3469 = vsel %vm3409, %v3404, %v2691
    %v3470 = vsel %vm3409, %v3405, %v2693
    %v3471 = vsel %vm3409, %v3406, %v2695
    %v3472 = vsel %vm3409, %v3407, %v2697
    %v3473 = vsel %vm3409, %v3408, %v2699
    %vm3474 = vcmask 261120
    %v3475 = vsel %vm3474, %v3410, %v2829
    %v3476 = vsel %vm3474, %v3411, %v2831
    %v3477 = vsel %vm3474, %v3412, %v2833
    %v3478 = vsel %vm3474, %v3413, %v2835
    %v3479 = vsel %vm3474, %v3414, %v2837
    %v3480 = vsel %vm3474, %v3415, %v2839
    %v3481 = vsel %vm3474, %v3416, %v2841
    %v3482 = vsel %vm3474, %v3417, %v2843
    %v3483 = vsel %vm3474, %v3418, %v2845
    %v3484 = vsel %vm3474, %v3419, %v2847
    %v3485 = vsel %vm3474, %v3420, %v2849
    %v3486 = vsel %vm3474, %v3421, %v2851
    %v3487 = vsel %vm3474, %v3422, %v2853
    %v3488 = vsel %vm3474, %v3423, %v2855
    %v3489 = vsel %vm3474, %v3424, %v2857
    %v3490 = vsel %vm3474, %v3425, %v2859
    %v3491 = vsel %vm3474, %v3426, %v2861
    %v3492 = vsel %vm3474, %v3427, %v2863
    %v3493 = vsel %vm3474, %v3428, %v2865
    %v3494 = vsel %vm3474, %v3429, %v2867
    %v3495 = vsel %vm3474, %v3430, %v2869
    %v3496 = vsel %vm3474, %v3431, %v2871
    %v3497 = vsel %vm3474, %v3432, %v2873
    %v3498 = vsel %vm3474, %v3433, %v2875
    %v3499 = vsel %vm3474, %v3434, %v2877
    %v3500 = vsel %vm3474, %v3435, %v2879
    %v3501 = vsel %vm3474, %v3436, %v2881
    %v3502 = vsel %vm3474, %v3437, %v2883
    %v3503 = vsel %vm3474, %v3438, %v2885
    %v3504 = vsel %vm3474, %v3439, %v2887
    %v3505 = vsel %vm3474, %v3440, %v2889
    %v3506 = vsel %vm3474, %v3441, %v2891
    %v3507 = vsel %vm3474, %v3442, %v2893
    %v3508 = vsel %vm3474, %v3443, %v2895
    %v3509 = vsel %vm3474, %v3444, %v2897
    %v3510 = vsel %vm3474, %v3445, %v2899
    %v3511 = vsel %vm3474, %v3446, %v2901
    %v3512 = vsel %vm3474, %v3447, %v2903
    %v3513 = vsel %vm3474, %v3448, %v2905
    %v3514 = vsel %vm3474, %v3449, %v2907
    %v3515 = vsel %vm3474, %v3450, %v2909
    %v3516 = vsel %vm3474, %v3451, %v2911
    %v3517 = vsel %vm3474, %v3452, %v2913
    %v3518 = vsel %vm3474, %v3453, %v2915
    %v3519 = vsel %vm3474, %v3454, %v2917
    %v3520 = vsel %vm3474, %v3455, %v2919
    %v3521 = vsel %vm3474, %v3456, %v2921
    %v3522 = vsel %vm3474, %v3457, %v2923
    %v3523 = vsel %vm3474, %v3458, %v2925
    %v3524 = vsel %vm3474, %v3459, %v2927
    %v3525 = vsel %vm3474, %v3460, %v2929
    %v3526 = vsel %vm3474, %v3461, %v2931
    %v3527 = vsel %vm3474, %v3462, %v2933
    %v3528 = vsel %vm3474, %v3463, %v2935
    %v3529 = vsel %vm3474, %v3464, %v2937
    %v3530 = vsel %vm3474, %v3465, %v2939
    %v3531 = vsel %vm3474, %v3466, %v2941
    %v3532 = vsel %vm3474, %v3467, %v2943
    %v3533 = vsel %vm3474, %v3468, %v2945
    %v3534 = vsel %vm3474, %v3469, %v2947
    %v3535 = vsel %vm3474, %v3470, %v2949
    %v3536 = vsel %vm3474, %v3471, %v2951
    %v3537 = vsel %vm3474, %v3472, %v2953
    %v3538 = vsel %vm3474, %v3473, %v2955
    %v3539 = vld [vmem:[%s4] sm:$0xff]
    %v3540 = vld [vmem:[%s4 + $0x8] sm:$0xff]
    %v3541 = vld [vmem:[%s4 + $0x10] sm:$0xff]
    %v3542 = vld [vmem:[%s4 + $0x18] sm:$0xff]
    %v3543 = vld [vmem:[%s4 + $0x20] sm:$0xf]
    %vm3544 = vcmask 293888
    %v3546 = vsel %vm3544, %v3475, 0
    %v3549 = vsel %vm3544, %v3476, 0
    %v3552 = vsel %vm3544, %v3477, 0
    %v3555 = vsel %vm3544, %v3478, 0
    %v3558 = vsel %vm3544, %v3479, 0
    %v3561 = vsel %vm3544, %v3480, 0
    %v3564 = vsel %vm3544, %v3481, 0
    %v3567 = vsel %vm3544, %v3482, 0
    %v3570 = vsel %vm3544, %v3483, 0
    %v3573 = vsel %vm3544, %v3484, 0
    %v3576 = vsel %vm3544, %v3485, 0
    %v3579 = vsel %vm3544, %v3486, 0
    %v3582 = vsel %vm3544, %v3487, 0
    %v3585 = vsel %vm3544, %v3488, 0
    %v3588 = vsel %vm3544, %v3489, 0
    %v3591 = vsel %vm3544, %v3490, 0
    %v3594 = vsel %vm3544, %v3491, 0
    %v3597 = vsel %vm3544, %v3492, 0
    %v3600 = vsel %vm3544, %v3493, 0
    %v3603 = vsel %vm3544, %v3494, 0
    %v3606 = vsel %vm3544, %v3495, 0
    %v3609 = vsel %vm3544, %v3496, 0
    %v3612 = vsel %vm3544, %v3497, 0
    %v3615 = vsel %vm3544, %v3498, 0
    %v3618 = vsel %vm3544, %v3499, 0
    %v3621 = vsel %vm3544, %v3500, 0
    %v3624 = vsel %vm3544, %v3501, 0
    %v3627 = vsel %vm3544, %v3502, 0
    %v3630 = vsel %vm3544, %v3503, 0
    %v3633 = vsel %vm3544, %v3504, 0
    %v3636 = vsel %vm3544, %v3505, 0
    %v3639 = vsel %vm3544, %v3506, 0
    %v3642 = vsel %vm3544, %v3507, 0
    %v3645 = vsel %vm3544, %v3508, 0
    %v3648 = vsel %vm3544, %v3509, 0
    %v3651 = vsel %vm3544, %v3510, 0
    %v3654 = vsel %vm3544, %v3511, 0
    %v3657 = vsel %vm3544, %v3512, 0
    %v3660 = vsel %vm3544, %v3513, 0
    %v3663 = vsel %vm3544, %v3514, 0
    %v3666 = vsel %vm3544, %v3515, 0
    %v3669 = vsel %vm3544, %v3516, 0
    %v3672 = vsel %vm3544, %v3517, 0
    %v3675 = vsel %vm3544, %v3518, 0
    %v3678 = vsel %vm3544, %v3519, 0
    %v3681 = vsel %vm3544, %v3520, 0
    %v3684 = vsel %vm3544, %v3521, 0
    %v3687 = vsel %vm3544, %v3522, 0
    %v3690 = vsel %vm3544, %v3523, 0
    %v3693 = vsel %vm3544, %v3524, 0
    %v3696 = vsel %vm3544, %v3525, 0
    %v3699 = vsel %vm3544, %v3526, 0
    %v3702 = vsel %vm3544, %v3527, 0
    %v3705 = vsel %vm3544, %v3528, 0
    %v3708 = vsel %vm3544, %v3529, 0
    %v3711 = vsel %vm3544, %v3530, 0
    %v3714 = vsel %vm3544, %v3531, 0
    %v3717 = vsel %vm3544, %v3532, 0
    %v3720 = vsel %vm3544, %v3533, 0
    %v3723 = vsel %vm3544, %v3534, 0
    %v3726 = vsel %vm3544, %v3535, 0
    %v3729 = vsel %vm3544, %v3536, 0
    %v3732 = vsel %vm3544, %v3537, 0
    %v3735 = vsel %vm3544, %v3538, 0
    %vm3737 = vcmask 1043456
    %v3739 = vsel %vm3737, %v3543, 0
    %3741 = vmatpush.msra.mxu0 0.0
    %3742 = vmatpush.msra.mxu0 0.0
    %3743 = vmatpush.msra.mxu0 0.0
    %3744 = vmatpush.msra.mxu0 0.0
    %3745 = vmatpush.msra.mxu0 0.0
    %3746 = vmatpush.msra.mxu0 0.0
    %3747 = vmatpush.msra.mxu0 0.0
    %3748 = vmatpush.msra.mxu0 0.0
    %3749 = vmatpush.msra.mxu0 0.0
    %3750 = vmatpush.msra.mxu0 0.0
    %3751 = vmatpush.msra.mxu0 0.0
    %3752 = vmatpush.msra.mxu0 %v3739
    %3753 = vmatpush.msra.mxu0 %v3542
    %3754 = vmatpush.msra.mxu0 %v3541
    %3755 = vmatpush.msra.mxu0 %v3540
    %3756 = vmatpush.msra.mxu0 %v3539
    %3757 = vmatmul.f32.gmra.mxu0 %v3546
    %v3758 = vpop.f32.mrf.mxu0
    %v3759 = vadd.f32 0.0, %v3758
    %3760 = vmatmul.f32.gmra.mxu0 %v3549
    %v3761 = vpop.f32.mrf.mxu0
    %v3762 = vadd.f32 0.0, %v3761
    %3763 = vmatmul.f32.gmra.mxu0 %v3552
    %v3764 = vpop.f32.mrf.mxu0
    %v3765 = vadd.f32 0.0, %v3764
    %3766 = vmatmul.f32.gmra.mxu0 %v3555
    %v3767 = vpop.f32.mrf.mxu0
    %v3768 = vadd.f32 0.0, %v3767
    %3769 = vmatmul.f32.gmra.mxu0 %v3558
    %v3770 = vpop.f32.mrf.mxu0
    %v3771 = vadd.f32 0.0, %v3770
    %3772 = vmatmul.f32.gmra.mxu0 %v3561
    %v3773 = vpop.f32.mrf.mxu0
    %v3774 = vadd.f32 0.0, %v3773
    %3775 = vmatmul.f32.gmra.mxu0 %v3564
    %v3776 = vpop.f32.mrf.mxu0
    %v3777 = vadd.f32 0.0, %v3776
    %3778 = vmatmul.f32.gmra.mxu0 %v3567
    %v3779 = vpop.f32.mrf.mxu0
    %v3780 = vadd.f32 0.0, %v3779
    %3781 = vmatmul.f32.gmra.mxu0 %v3570
    %v3782 = vpop.f32.mrf.mxu0
    %v3783 = vadd.f32 0.0, %v3782
    %3784 = vmatmul.f32.gmra.mxu0 %v3573
    %v3785 = vpop.f32.mrf.mxu0
    %v3786 = vadd.f32 0.0, %v3785
    %3787 = vmatmul.f32.gmra.mxu0 %v3576
    %v3788 = vpop.f32.mrf.mxu0
    %v3789 = vadd.f32 0.0, %v3788
    %3790 = vmatmul.f32.gmra.mxu0 %v3579
    %v3791 = vpop.f32.mrf.mxu0
    %v3792 = vadd.f32 0.0, %v3791
    %3793 = vmatmul.f32.gmra.mxu0 %v3582
    %v3794 = vpop.f32.mrf.mxu0
    %v3795 = vadd.f32 0.0, %v3794
    %3796 = vmatmul.f32.gmra.mxu0 %v3585
    %v3797 = vpop.f32.mrf.mxu0
    %v3798 = vadd.f32 0.0, %v3797
    %3799 = vmatmul.f32.gmra.mxu0 %v3588
    %v3800 = vpop.f32.mrf.mxu0
    %v3801 = vadd.f32 0.0, %v3800
    %3802 = vmatmul.f32.gmra.mxu0 %v3591
    %v3803 = vpop.f32.mrf.mxu0
    %v3804 = vadd.f32 0.0, %v3803
    %3805 = vmatmul.f32.gmra.mxu0 %v3594
    %v3806 = vpop.f32.mrf.mxu0
    %v3807 = vadd.f32 0.0, %v3806
    %3808 = vmatmul.f32.gmra.mxu0 %v3597
    %v3809 = vpop.f32.mrf.mxu0
    %v3810 = vadd.f32 0.0, %v3809
    %3811 = vmatmul.f32.gmra.mxu0 %v3600
    %v3812 = vpop.f32.mrf.mxu0
    %v3813 = vadd.f32 0.0, %v3812
    %3814 = vmatmul.f32.gmra.mxu0 %v3603
    %v3815 = vpop.f32.mrf.mxu0
    %v3816 = vadd.f32 0.0, %v3815
    %3817 = vmatmul.f32.gmra.mxu0 %v3606
    %v3818 = vpop.f32.mrf.mxu0
    %v3819 = vadd.f32 0.0, %v3818
    %3820 = vmatmul.f32.gmra.mxu0 %v3609
    %v3821 = vpop.f32.mrf.mxu0
    %v3822 = vadd.f32 0.0, %v3821
    %3823 = vmatmul.f32.gmra.mxu0 %v3612
    %v3824 = vpop.f32.mrf.mxu0
    %v3825 = vadd.f32 0.0, %v3824
    %3826 = vmatmul.f32.gmra.mxu0 %v3615
    %v3827 = vpop.f32.mrf.mxu0
    %v3828 = vadd.f32 0.0, %v3827
    %3829 = vmatmul.f32.gmra.mxu0 %v3618
    %v3830 = vpop.f32.mrf.mxu0
    %v3831 = vadd.f32 0.0, %v3830
    %3832 = vmatmul.f32.gmra.mxu0 %v3621
    %v3833 = vpop.f32.mrf.mxu0
    %v3834 = vadd.f32 0.0, %v3833
    %3835 = vmatmul.f32.gmra.mxu0 %v3624
    %v3836 = vpop.f32.mrf.mxu0
    %v3837 = vadd.f32 0.0, %v3836
    %3838 = vmatmul.f32.gmra.mxu0 %v3627
    %v3839 = vpop.f32.mrf.mxu0
    %v3840 = vadd.f32 0.0, %v3839
    %3841 = vmatmul.f32.gmra.mxu0 %v3630
    %v3842 = vpop.f32.mrf.mxu0
    %v3843 = vadd.f32 0.0, %v3842
    %3844 = vmatmul.f32.gmra.mxu0 %v3633
    %v3845 = vpop.f32.mrf.mxu0
    %v3846 = vadd.f32 0.0, %v3845
    %3847 = vmatmul.f32.gmra.mxu0 %v3636
    %v3848 = vpop.f32.mrf.mxu0
    %v3849 = vadd.f32 0.0, %v3848
    %3850 = vmatmul.f32.gmra.mxu0 %v3639
    %v3851 = vpop.f32.mrf.mxu0
    %v3852 = vadd.f32 0.0, %v3851
    %3853 = vmatmul.f32.gmra.mxu0 %v3642
    %v3854 = vpop.f32.mrf.mxu0
    %v3855 = vadd.f32 0.0, %v3854
    %3856 = vmatmul.f32.gmra.mxu0 %v3645
    %v3857 = vpop.f32.mrf.mxu0
    %v3858 = vadd.f32 0.0, %v3857
    %3859 = vmatmul.f32.gmra.mxu0 %v3648
    %v3860 = vpop.f32.mrf.mxu0
    %v3861 = vadd.f32 0.0, %v3860
    %3862 = vmatmul.f32.gmra.mxu0 %v3651
    %v3863 = vpop.f32.mrf.mxu0
    %v3864 = vadd.f32 0.0, %v3863
    %3865 = vmatmul.f32.gmra.mxu0 %v3654
    %v3866 = vpop.f32.mrf.mxu0
    %v3867 = vadd.f32 0.0, %v3866
    %3868 = vmatmul.f32.gmra.mxu0 %v3657
    %v3869 = vpop.f32.mrf.mxu0
    %v3870 = vadd.f32 0.0, %v3869
    %3871 = vmatmul.f32.gmra.mxu0 %v3660
    %v3872 = vpop.f32.mrf.mxu0
    %v3873 = vadd.f32 0.0, %v3872
    %3874 = vmatmul.f32.gmra.mxu0 %v3663
    %v3875 = vpop.f32.mrf.mxu0
    %v3876 = vadd.f32 0.0, %v3875
    %3877 = vmatmul.f32.gmra.mxu0 %v3666
    %v3878 = vpop.f32.mrf.mxu0
    %v3879 = vadd.f32 0.0, %v3878
    %3880 = vmatmul.f32.gmra.mxu0 %v3669
    %v3881 = vpop.f32.mrf.mxu0
    %v3882 = vadd.f32 0.0, %v3881
    %3883 = vmatmul.f32.gmra.mxu0 %v3672
    %v3884 = vpop.f32.mrf.mxu0
    %v3885 = vadd.f32 0.0, %v3884
    %3886 = vmatmul.f32.gmra.mxu0 %v3675
    %v3887 = vpop.f32.mrf.mxu0
    %v3888 = vadd.f32 0.0, %v3887
    %3889 = vmatmul.f32.gmra.mxu0 %v3678
    %v3890 = vpop.f32.mrf.mxu0
    %v3891 = vadd.f32 0.0, %v3890
    %3892 = vmatmul.f32.gmra.mxu0 %v3681
    %v3893 = vpop.f32.mrf.mxu0
    %v3894 = vadd.f32 0.0, %v3893
    %3895 = vmatmul.f32.gmra.mxu0 %v3684
    %v3896 = vpop.f32.mrf.mxu0
    %v3897 = vadd.f32 0.0, %v3896
    %3898 = vmatmul.f32.gmra.mxu0 %v3687
    %v3899 = vpop.f32.mrf.mxu0
    %v3900 = vadd.f32 0.0, %v3899
    %3901 = vmatmul.f32.gmra.mxu0 %v3690
    %v3902 = vpop.f32.mrf.mxu0
    %v3903 = vadd.f32 0.0, %v3902
    %3904 = vmatmul.f32.gmra.mxu0 %v3693
    %v3905 = vpop.f32.mrf.mxu0
    %v3906 = vadd.f32 0.0, %v3905
    %3907 = vmatmul.f32.gmra.mxu0 %v3696
    %v3908 = vpop.f32.mrf.mxu0
    %v3909 = vadd.f32 0.0, %v3908
    %3910 = vmatmul.f32.gmra.mxu0 %v3699
    %v3911 = vpop.f32.mrf.mxu0
    %v3912 = vadd.f32 0.0, %v3911
    %3913 = vmatmul.f32.gmra.mxu0 %v3702
    %v3914 = vpop.f32.mrf.mxu0
    %v3915 = vadd.f32 0.0, %v3914
    %3916 = vmatmul.f32.gmra.mxu0 %v3705
    %v3917 = vpop.f32.mrf.mxu0
    %v3918 = vadd.f32 0.0, %v3917
    %3919 = vmatmul.f32.gmra.mxu0 %v3708
    %v3920 = vpop.f32.mrf.mxu0
    %v3921 = vadd.f32 0.0, %v3920
    %3922 = vmatmul.f32.gmra.mxu0 %v3711
    %v3923 = vpop.f32.mrf.mxu0
    %v3924 = vadd.f32 0.0, %v3923
    %3925 = vmatmul.f32.gmra.mxu0 %v3714
    %v3926 = vpop.f32.mrf.mxu0
    %v3927 = vadd.f32 0.0, %v3926
    %3928 = vmatmul.f32.gmra.mxu0 %v3717
    %v3929 = vpop.f32.mrf.mxu0
    %v3930 = vadd.f32 0.0, %v3929
    %3931 = vmatmul.f32.gmra.mxu0 %v3720
    %v3932 = vpop.f32.mrf.mxu0
    %v3933 = vadd.f32 0.0, %v3932
    %3934 = vmatmul.f32.gmra.mxu0 %v3723
    %v3935 = vpop.f32.mrf.mxu0
    %v3936 = vadd.f32 0.0, %v3935
    %3937 = vmatmul.f32.gmra.mxu0 %v3726
    %v3938 = vpop.f32.mrf.mxu0
    %v3939 = vadd.f32 0.0, %v3938
    %3940 = vmatmul.f32.gmra.mxu0 %v3729
    %v3941 = vpop.f32.mrf.mxu0
    %v3942 = vadd.f32 0.0, %v3941
    %3943 = vmatmul.f32.gmra.mxu0 %v3732
    %v3944 = vpop.f32.mrf.mxu0
    %v3945 = vadd.f32 0.0, %v3944
    %3946 = vmatmul.f32.gmra.mxu0 %v3735
    %v3947 = vpop.f32.mrf.mxu0
    %v3948 = vadd.f32 0.0, %v3947
    %3949 = vdwg.mxu0
    %vm3950 = vcmp.gt.f32.partialorder %v3759, 0.0
    %vm3951 = vcmp.gt.f32.partialorder %v3762, 0.0
    %vm3952 = vcmp.gt.f32.partialorder %v3765, 0.0
    %vm3953 = vcmp.gt.f32.partialorder %v3768, 0.0
    %vm3954 = vcmp.gt.f32.partialorder %v3771, 0.0
    %vm3955 = vcmp.gt.f32.partialorder %v3774, 0.0
    %vm3956 = vcmp.gt.f32.partialorder %v3777, 0.0
    %vm3957 = vcmp.gt.f32.partialorder %v3780, 0.0
    %vm3958 = vcmp.gt.f32.partialorder %v3783, 0.0
    %vm3959 = vcmp.gt.f32.partialorder %v3786, 0.0
    %vm3960 = vcmp.gt.f32.partialorder %v3789, 0.0
    %vm3961 = vcmp.gt.f32.partialorder %v3792, 0.0
    %vm3962 = vcmp.gt.f32.partialorder %v3795, 0.0
    %vm3963 = vcmp.gt.f32.partialorder %v3798, 0.0
    %vm3964 = vcmp.gt.f32.partialorder %v3801, 0.0
    %vm3965 = vcmp.gt.f32.partialorder %v3804, 0.0
    %vm3966 = vcmp.gt.f32.partialorder %v3807, 0.0
    %vm3967 = vcmp.gt.f32.partialorder %v3810, 0.0
    %vm3968 = vcmp.gt.f32.partialorder %v3813, 0.0
    %vm3969 = vcmp.gt.f32.partialorder %v3816, 0.0
    %vm3970 = vcmp.gt.f32.partialorder %v3819, 0.0
    %vm3971 = vcmp.gt.f32.partialorder %v3822, 0.0
    %vm3972 = vcmp.gt.f32.partialorder %v3825, 0.0
    %vm3973 = vcmp.gt.f32.partialorder %v3828, 0.0
    %vm3974 = vcmp.gt.f32.partialorder %v3831, 0.0
    %vm3975 = vcmp.gt.f32.partialorder %v3834, 0.0
    %vm3976 = vcmp.gt.f32.partialorder %v3837, 0.0
    %vm3977 = vcmp.gt.f32.partialorder %v3840, 0.0
    %vm3978 = vcmp.gt.f32.partialorder %v3843, 0.0
    %vm3979 = vcmp.gt.f32.partialorder %v3846, 0.0
    %vm3980 = vcmp.gt.f32.partialorder %v3849, 0.0
    %vm3981 = vcmp.gt.f32.partialorder %v3852, 0.0
    %vm3982 = vcmp.gt.f32.partialorder %v3855, 0.0
    %vm3983 = vcmp.gt.f32.partialorder %v3858, 0.0
    %vm3984 = vcmp.gt.f32.partialorder %v3861, 0.0
    %vm3985 = vcmp.gt.f32.partialorder %v3864, 0.0
    %vm3986 = vcmp.gt.f32.partialorder %v3867, 0.0
    %vm3987 = vcmp.gt.f32.partialorder %v3870, 0.0
    %vm3988 = vcmp.gt.f32.partialorder %v3873, 0.0
    %vm3989 = vcmp.gt.f32.partialorder %v3876, 0.0
    %vm3990 = vcmp.gt.f32.partialorder %v3879, 0.0
    %vm3991 = vcmp.gt.f32.partialorder %v3882, 0.0
    %vm3992 = vcmp.gt.f32.partialorder %v3885, 0.0
    %vm3993 = vcmp.gt.f32.partialorder %v3888, 0.0
    %vm3994 = vcmp.gt.f32.partialorder %v3891, 0.0
    %vm3995 = vcmp.gt.f32.partialorder %v3894, 0.0
    %vm3996 = vcmp.gt.f32.partialorder %v3897, 0.0
    %vm3997 = vcmp.gt.f32.partialorder %v3900, 0.0
    %vm3998 = vcmp.gt.f32.partialorder %v3903, 0.0
    %vm3999 = vcmp.gt.f32.partialorder %v3906, 0.0
    %vm4000 = vcmp.gt.f32.partialorder %v3909, 0.0
    %vm4001 = vcmp.gt.f32.partialorder %v3912, 0.0
    %vm4002 = vcmp.gt.f32.partialorder %v3915, 0.0
    %vm4003 = vcmp.gt.f32.partialorder %v3918, 0.0
    %vm4004 = vcmp.gt.f32.partialorder %v3921, 0.0
    %vm4005 = vcmp.gt.f32.partialorder %v3924, 0.0
    %vm4006 = vcmp.gt.f32.partialorder %v3927, 0.0
    %vm4007 = vcmp.gt.f32.partialorder %v3930, 0.0
    %vm4008 = vcmp.gt.f32.partialorder %v3933, 0.0
    %vm4009 = vcmp.gt.f32.partialorder %v3936, 0.0
    %vm4010 = vcmp.gt.f32.partialorder %v3939, 0.0
    %vm4011 = vcmp.gt.f32.partialorder %v3942, 0.0
    %vm4012 = vcmp.gt.f32.partialorder %v3945, 0.0
    %vm4013 = vcmp.gt.f32.partialorder %v3948, 0.0
    %v4014 = vld [vmem:[%s5] sm:$0x1]
    %v4016 = vperm.slane %v4014, 0
    %v4018 = vmul.f32 %v4016, %v3759
    %v4019 = vmul.f32 %v4016, %v3762
    %v4020 = vmul.f32 %v4016, %v3765
    %v4021 = vmul.f32 %v4016, %v3768
    %v4022 = vmul.f32 %v4016, %v3771
    %v4023 = vmul.f32 %v4016, %v3774
    %v4024 = vmul.f32 %v4016, %v3777
    %v4025 = vmul.f32 %v4016, %v3780
    %v4026 = vmul.f32 %v4016, %v3783
    %v4027 = vmul.f32 %v4016, %v3786
    %v4028 = vmul.f32 %v4016, %v3789
    %v4029 = vmul.f32 %v4016, %v3792
    %v4030 = vmul.f32 %v4016, %v3795
    %v4031 = vmul.f32 %v4016, %v3798
    %v4032 = vmul.f32 %v4016, %v3801
    %v4033 = vmul.f32 %v4016, %v3804
    %v4034 = vmul.f32 %v4016, %v3807
    %v4035 = vmul.f32 %v4016, %v3810
    %v4036 = vmul.f32 %v4016, %v3813
    %v4037 = vmul.f32 %v4016, %v3816
    %v4038 = vmul.f32 %v4016, %v3819
    %v4039 = vmul.f32 %v4016, %v3822
    %v4040 = vmul.f32 %v4016, %v3825
    %v4041 = vmul.f32 %v4016, %v3828
    %v4042 = vmul.f32 %v4016, %v3831
    %v4043 = vmul.f32 %v4016, %v3834
    %v4044 = vmul.f32 %v4016, %v3837
    %v4045 = vmul.f32 %v4016, %v3840
    %v4046 = vmul.f32 %v4016, %v3843
    %v4047 = vmul.f32 %v4016, %v3846
    %v4048 = vmul.f32 %v4016, %v3849
    %v4049 = vmul.f32 %v4016, %v3852
    %v4050 = vmul.f32 %v4016, %v3855
    %v4051 = vmul.f32 %v4016, %v3858
    %v4052 = vmul.f32 %v4016, %v3861
    %v4053 = vmul.f32 %v4016, %v3864
    %v4054 = vmul.f32 %v4016, %v3867
    %v4055 = vmul.f32 %v4016, %v3870
    %v4056 = vmul.f32 %v4016, %v3873
    %v4057 = vmul.f32 %v4016, %v3876
    %v4058 = vmul.f32 %v4016, %v3879
    %v4059 = vmul.f32 %v4016, %v3882
    %v4060 = vmul.f32 %v4016, %v3885
    %v4061 = vmul.f32 %v4016, %v3888
    %v4062 = vmul.f32 %v4016, %v3891
    %v4063 = vmul.f32 %v4016, %v3894
    %v4064 = vmul.f32 %v4016, %v3897
    %v4065 = vmul.f32 %v4016, %v3900
    %v4066 = vmul.f32 %v4016, %v3903
    %v4067 = vmul.f32 %v4016, %v3906
    %v4068 = vmul.f32 %v4016, %v3909
    %v4069 = vmul.f32 %v4016, %v3912
    %v4070 = vmul.f32 %v4016, %v3915
    %v4071 = vmul.f32 %v4016, %v3918
    %v4072 = vmul.f32 %v4016, %v3921
    %v4073 = vmul.f32 %v4016, %v3924
    %v4074 = vmul.f32 %v4016, %v3927
    %v4075 = vmul.f32 %v4016, %v3930
    %v4076 = vmul.f32 %v4016, %v3933
    %v4077 = vmul.f32 %v4016, %v3936
    %v4078 = vmul.f32 %v4016, %v3939
    %v4079 = vmul.f32 %v4016, %v3942
    %v4080 = vmul.f32 %v4016, %v3945
    %v4081 = vmul.f32 %v4016, %v3948
    %v4082 = vsel %vm3950, %v3759, %v4018
    %v4083 = vsel %vm3951, %v3762, %v4019
    %v4084 = vsel %vm3952, %v3765, %v4020
    %v4085 = vsel %vm3953, %v3768, %v4021
    %v4086 = vsel %vm3954, %v3771, %v4022
    %v4087 = vsel %vm3955, %v3774, %v4023
    %v4088 = vsel %vm3956, %v3777, %v4024
    %v4089 = vsel %vm3957, %v3780, %v4025
    %v4090 = vsel %vm3958, %v3783, %v4026
    %v4091 = vsel %vm3959, %v3786, %v4027
    %v4092 = vsel %vm3960, %v3789, %v4028
    %v4093 = vsel %vm3961, %v3792, %v4029
    %v4094 = vsel %vm3962, %v3795, %v4030
    %v4095 = vsel %vm3963, %v3798, %v4031
    %v4096 = vsel %vm3964, %v3801, %v4032
    %v4097 = vsel %vm3965, %v3804, %v4033
    %v4098 = vsel %vm3966, %v3807, %v4034
    %v4099 = vsel %vm3967, %v3810, %v4035
    %v4100 = vsel %vm3968, %v3813, %v4036
    %v4101 = vsel %vm3969, %v3816, %v4037
    %v4102 = vsel %vm3970, %v3819, %v4038
    %v4103 = vsel %vm3971, %v3822, %v4039
    %v4104 = vsel %vm3972, %v3825, %v4040
    %v4105 = vsel %vm3973, %v3828, %v4041
    %v4106 = vsel %vm3974, %v3831, %v4042
    %v4107 = vsel %vm3975, %v3834, %v4043
    %v4108 = vsel %vm3976, %v3837, %v4044
    %v4109 = vsel %vm3977, %v3840, %v4045
    %v4110 = vsel %vm3978, %v3843, %v4046
    %v4111 = vsel %vm3979, %v3846, %v4047
    %v4112 = vsel %vm3980, %v3849, %v4048
    %v4113 = vsel %vm3981, %v3852, %v4049
    %v4114 = vsel %vm3982, %v3855, %v4050
    %v4115 = vsel %vm3983, %v3858, %v4051
    %v4116 = vsel %vm3984, %v3861, %v4052
    %v4117 = vsel %vm3985, %v3864, %v4053
    %v4118 = vsel %vm3986, %v3867, %v4054
    %v4119 = vsel %vm3987, %v3870, %v4055
    %v4120 = vsel %vm3988, %v3873, %v4056
    %v4121 = vsel %vm3989, %v3876, %v4057
    %v4122 = vsel %vm3990, %v3879, %v4058
    %v4123 = vsel %vm3991, %v3882, %v4059
    %v4124 = vsel %vm3992, %v3885, %v4060
    %v4125 = vsel %vm3993, %v3888, %v4061
    %v4126 = vsel %vm3994, %v3891, %v4062
    %v4127 = vsel %vm3995, %v3894, %v4063
    %v4128 = vsel %vm3996, %v3897, %v4064
    %v4129 = vsel %vm3997, %v3900, %v4065
    %v4130 = vsel %vm3998, %v3903, %v4066
    %v4131 = vsel %vm3999, %v3906, %v4067
    %v4132 = vsel %vm4000, %v3909, %v4068
    %v4133 = vsel %vm4001, %v3912, %v4069
    %v4134 = vsel %vm4002, %v3915, %v4070
    %v4135 = vsel %vm4003, %v3918, %v4071
    %v4136 = vsel %vm4004, %v3921, %v4072
    %v4137 = vsel %vm4005, %v3924, %v4073
    %v4138 = vsel %vm4006, %v3927, %v4074
    %v4139 = vsel %vm4007, %v3930, %v4075
    %v4140 = vsel %vm4008, %v3933, %v4076
    %v4141 = vsel %vm4009, %v3936, %v4077
    %v4142 = vsel %vm4010, %v3939, %v4078
    %v4143 = vsel %vm4011, %v3942, %v4079
    %v4144 = vsel %vm4012, %v3945, %v4080
    %v4145 = vsel %vm4013, %v3948, %v4081
    %4146 = vst.msk [vmem:[#allocation3] sm:$0xff] %vm3084, 0.0
    %4147 = vst.msk [vmem:[#allocation3 + $0x8] sm:$0xff] %vm3084, 0.0
    %vm4148 = vcmask 58368
    %4149 = vst.msk [vmem:[#allocation3 + $0x10] sm:$0x3] %vm4148, 0.0
    %4150 = vst.msk [vmem:[#allocation3 + $0x1b0] sm:$0xff] %vm3084, 0.0
    %4151 = vst.msk [vmem:[#allocation3 + $0x1b8] sm:$0xff] %vm3084, 0.0
    %4152 = vst.msk [vmem:[#allocation3 + $0x1c0] sm:$0x3] %vm4148, 0.0
    %s4153 = scalar_lea.vmem [#allocation3], 408
    %4154 = vst.msk [vmem:[%s4153] sm:$0xff] %vm3084, 0.0
    %4155 = vst.msk [vmem:[%s4153 + $0x8] sm:$0xff] %vm3084, 0.0
    %4156 = vst.msk [vmem:[%s4153 + $0x10] sm:$0x3] %vm4148, 0.0
    %4157 = vst.msk [vmem:[%s4153 + $0x1b0] sm:$0xff] %vm3084, 0.0
    %4158 = vst.msk [vmem:[%s4153 + $0x1b8] sm:$0xff] %vm3084, 0.0
    %4159 = vst.msk [vmem:[%s4153 + $0x1c0] sm:$0x3] %vm4148, 0.0
    %vm4160 = vcmask 57344
    %4161 = vst.msk [vmem:[#allocation3] sm:$0x1] %vm4160, 0.0
    %4162 = vst.msk [vmem:[#allocation3 + $0x18] sm:$0x1] %vm4160, 0.0
    %4163 = vst.msk [vmem:[#allocation3 + $0x30] sm:$0x1] %vm4160, 0.0
    %4164 = vst.msk [vmem:[#allocation3 + $0x48] sm:$0x1] %vm4160, 0.0
    %4165 = vst.msk [vmem:[#allocation3 + $0x60] sm:$0x1] %vm4160, 0.0
    %4166 = vst.msk [vmem:[#allocation3 + $0x78] sm:$0x1] %vm4160, 0.0
    %4167 = vst.msk [vmem:[#allocation3 + $0x90] sm:$0x1] %vm4160, 0.0
    %4168 = vst.msk [vmem:[#allocation3 + $0xa8] sm:$0x1] %vm4160, 0.0
    %4169 = vst.msk [vmem:[#allocation3 + $0xc0] sm:$0x1] %vm4160, 0.0
    %4170 = vst.msk [vmem:[#allocation3 + $0xd8] sm:$0x1] %vm4160, 0.0
    %4171 = vst.msk [vmem:[#allocation3 + $0xf0] sm:$0x1] %vm4160, 0.0
    %4172 = vst.msk [vmem:[#allocation3 + $0x108] sm:$0x1] %vm4160, 0.0
    %4173 = vst.msk [vmem:[#allocation3 + $0x120] sm:$0x1] %vm4160, 0.0
    %4174 = vst.msk [vmem:[#allocation3 + $0x138] sm:$0x1] %vm4160, 0.0
    %4175 = vst.msk [vmem:[#allocation3 + $0x150] sm:$0x1] %vm4160, 0.0
    %4176 = vst.msk [vmem:[#allocation3 + $0x168] sm:$0x1] %vm4160, 0.0
    %4177 = vst.msk [vmem:[#allocation3 + $0x180] sm:$0x1] %vm4160, 0.0
    %4178 = vst.msk [vmem:[#allocation3 + $0x198] sm:$0x1] %vm4160, 0.0
    %4179 = vst.msk [vmem:[#allocation3 + $0x1b0] sm:$0x1] %vm4160, 0.0
    %4180 = vst.msk [vmem:[#allocation3 + $0x1c8] sm:$0x1] %vm4160, 0.0
    %4181 = vst.msk [vmem:[#allocation3 + $0x1e0] sm:$0x1] %vm4160, 0.0
    %4182 = vst.msk [vmem:[#allocation3 + $0x1f8] sm:$0x1] %vm4160, 0.0
    %4183 = vst.msk [vmem:[#allocation3 + $0x210] sm:$0x1] %vm4160, 0.0
    %4184 = vst.msk [vmem:[#allocation3 + $0x228] sm:$0x1] %vm4160, 0.0
    %4185 = vst.msk [vmem:[#allocation3 + $0x240] sm:$0x1] %vm4160, 0.0
    %4186 = vst.msk [vmem:[#allocation3 + $0x258] sm:$0x1] %vm4160, 0.0
    %4187 = vst.msk [vmem:[#allocation3 + $0x270] sm:$0x1] %vm4160, 0.0
    %4188 = vst.msk [vmem:[#allocation3 + $0x288] sm:$0x1] %vm4160, 0.0
    %4189 = vst.msk [vmem:[#allocation3 + $0x2a0] sm:$0x1] %vm4160, 0.0
    %4190 = vst.msk [vmem:[#allocation3 + $0x2b8] sm:$0x1] %vm4160, 0.0
    %4191 = vst.msk [vmem:[#allocation3 + $0x2d0] sm:$0x1] %vm4160, 0.0
    %4192 = vst.msk [vmem:[#allocation3 + $0x2e8] sm:$0x1] %vm4160, 0.0
    %4193 = vst.msk [vmem:[#allocation3 + $0x300] sm:$0x1] %vm4160, 0.0
    %4194 = vst.msk [vmem:[#allocation3 + $0x318] sm:$0x1] %vm4160, 0.0
    %4195 = vst.msk [vmem:[#allocation3 + $0x330] sm:$0x1] %vm4160, 0.0
    %4196 = vst.msk [vmem:[#allocation3 + $0x348] sm:$0x1] %vm4160, 0.0
    %4197 = vst.msk [vmem:[#allocation3 + $0x11] sm:$0x1] %vm4160, 0.0
    %4198 = vst.msk [vmem:[#allocation3 + $0x29] sm:$0x1] %vm4160, 0.0
    %4199 = vst.msk [vmem:[#allocation3 + $0x41] sm:$0x1] %vm4160, 0.0
    %4200 = vst.msk [vmem:[#allocation3 + $0x59] sm:$0x1] %vm4160, 0.0
    %4201 = vst.msk [vmem:[#allocation3 + $0x71] sm:$0x1] %vm4160, 0.0
    %4202 = vst.msk [vmem:[#allocation3 + $0x89] sm:$0x1] %vm4160, 0.0
    %4203 = vst.msk [vmem:[#allocation3 + $0xa1] sm:$0x1] %vm4160, 0.0
    %4204 = vst.msk [vmem:[#allocation3 + $0xb9] sm:$0x1] %vm4160, 0.0
    %4205 = vst.msk [vmem:[#allocation3 + $0xd1] sm:$0x1] %vm4160, 0.0
    %4206 = vst.msk [vmem:[#allocation3 + $0xe9] sm:$0x1] %vm4160, 0.0
    %4207 = vst.msk [vmem:[#allocation3 + $0x101] sm:$0x1] %vm4160, 0.0
    %4208 = vst.msk [vmem:[#allocation3 + $0x119] sm:$0x1] %vm4160, 0.0
    %4209 = vst.msk [vmem:[#allocation3 + $0x131] sm:$0x1] %vm4160, 0.0
    %4210 = vst.msk [vmem:[#allocation3 + $0x149] sm:$0x1] %vm4160, 0.0
    %4211 = vst.msk [vmem:[#allocation3 + $0x161] sm:$0x1] %vm4160, 0.0
    %4212 = vst.msk [vmem:[#allocation3 + $0x179] sm:$0x1] %vm4160, 0.0
    %4213 = vst.msk [vmem:[#allocation3 + $0x191] sm:$0x1] %vm4160, 0.0
    %4214 = vst.msk [vmem:[#allocation3 + $0x1a9] sm:$0x1] %vm4160, 0.0
    %4215 = vst.msk [vmem:[#allocation3 + $0x1c1] sm:$0x1] %vm4160, 0.0
    %4216 = vst.msk [vmem:[#allocation3 + $0x1d9] sm:$0x1] %vm4160, 0.0
    %4217 = vst.msk [vmem:[#allocation3 + $0x1f1] sm:$0x1] %vm4160, 0.0
    %4218 = vst.msk [vmem:[#allocation3 + $0x209] sm:$0x1] %vm4160, 0.0
    %4219 = vst.msk [vmem:[#allocation3 + $0x221] sm:$0x1] %vm4160, 0.0
    %4220 = vst.msk [vmem:[#allocation3 + $0x239] sm:$0x1] %vm4160, 0.0
    %4221 = vst.msk [vmem:[#allocation3 + $0x251] sm:$0x1] %vm4160, 0.0
    %4222 = vst.msk [vmem:[#allocation3 + $0x269] sm:$0x1] %vm4160, 0.0
    %4223 = vst.msk [vmem:[#allocation3 + $0x281] sm:$0x1] %vm4160, 0.0
    %4224 = vst.msk [vmem:[#allocation3 + $0x299] sm:$0x1] %vm4160, 0.0
    %4225 = vst.msk [vmem:[#allocation3 + $0x2b1] sm:$0x1] %vm4160, 0.0
    %4226 = vst.msk [vmem:[#allocation3 + $0x2c9] sm:$0x1] %vm4160, 0.0
    %4227 = vst.msk [vmem:[#allocation3 + $0x2e1] sm:$0x1] %vm4160, 0.0
    %4228 = vst.msk [vmem:[#allocation3 + $0x2f9] sm:$0x1] %vm4160, 0.0
    %4229 = vst.msk [vmem:[#allocation3 + $0x311] sm:$0x1] %vm4160, 0.0
    %4230 = vst.msk [vmem:[#allocation3 + $0x329] sm:$0x1] %vm4160, 0.0
    %4231 = vst.msk [vmem:[#allocation3 + $0x341] sm:$0x1] %vm4160, 0.0
    %4232 = vst.msk [vmem:[#allocation3 + $0x359] sm:$0x1] %vm4160, 0.0
    %s4233 = scalar_lea.vmem [#allocation3], 24
    %4234 = vst.msk [vmem:[%s4233 + $0x1] sm:$0xff] %vm3084, %v4082
    %4235 = vst.msk [vmem:[%s4233 + $0x9] sm:$0xff] %vm3084, %v4083
    %4236 = vst.msk [vmem:[%s4233 + $0x19] sm:$0xff] %vm3084, %v4084
    %4237 = vst.msk [vmem:[%s4233 + $0x21] sm:$0xff] %vm3084, %v4085
    %4238 = vst.msk [vmem:[%s4233 + $0x31] sm:$0xff] %vm3084, %v4086
    %4239 = vst.msk [vmem:[%s4233 + $0x39] sm:$0xff] %vm3084, %v4087
    %4240 = vst.msk [vmem:[%s4233 + $0x49] sm:$0xff] %vm3084, %v4088
    %4241 = vst.msk [vmem:[%s4233 + $0x51] sm:$0xff] %vm3084, %v4089
    %4242 = vst.msk [vmem:[%s4233 + $0x61] sm:$0xff] %vm3084, %v4090
    %4243 = vst.msk [vmem:[%s4233 + $0x69] sm:$0xff] %vm3084, %v4091
    %4244 = vst.msk [vmem:[%s4233 + $0x79] sm:$0xff] %vm3084, %v4092
    %4245 = vst.msk [vmem:[%s4233 + $0x81] sm:$0xff] %vm3084, %v4093
    %4246 = vst.msk [vmem:[%s4233 + $0x91] sm:$0xff] %vm3084, %v4094
    %4247 = vst.msk [vmem:[%s4233 + $0x99] sm:$0xff] %vm3084, %v4095
    %4248 = vst.msk [vmem:[%s4233 + $0xa9] sm:$0xff] %vm3084, %v4096
    %4249 = vst.msk [vmem:[%s4233 + $0xb1] sm:$0xff] %vm3084, %v4097
    %4250 = vst.msk [vmem:[%s4233 + $0xc1] sm:$0xff] %vm3084, %v4098
    %4251 = vst.msk [vmem:[%s4233 + $0xc9] sm:$0xff] %vm3084, %v4099
    %4252 = vst.msk [vmem:[%s4233 + $0xd9] sm:$0xff] %vm3084, %v4100
    %4253 = vst.msk [vmem:[%s4233 + $0xe1] sm:$0xff] %vm3084, %v4101
    %4254 = vst.msk [vmem:[%s4233 + $0xf1] sm:$0xff] %vm3084, %v4102
    %4255 = vst.msk [vmem:[%s4233 + $0xf9] sm:$0xff] %vm3084, %v4103
    %4256 = vst.msk [vmem:[%s4233 + $0x109] sm:$0xff] %vm3084, %v4104
    %4257 = vst.msk [vmem:[%s4233 + $0x111] sm:$0xff] %vm3084, %v4105
    %4258 = vst.msk [vmem:[%s4233 + $0x121] sm:$0xff] %vm3084, %v4106
    %4259 = vst.msk [vmem:[%s4233 + $0x129] sm:$0xff] %vm3084, %v4107
    %4260 = vst.msk [vmem:[%s4233 + $0x139] sm:$0xff] %vm3084, %v4108
    %4261 = vst.msk [vmem:[%s4233 + $0x141] sm:$0xff] %vm3084, %v4109
    %4262 = vst.msk [vmem:[%s4233 + $0x151] sm:$0xff] %vm3084, %v4110
    %4263 = vst.msk [vmem:[%s4233 + $0x159] sm:$0xff] %vm3084, %v4111
    %4264 = vst.msk [vmem:[%s4233 + $0x169] sm:$0xff] %vm3084, %v4112
    %4265 = vst.msk [vmem:[%s4233 + $0x171] sm:$0xff] %vm3084, %v4113
    %4266 = vst.msk [vmem:[%s4233 + $0x1b1] sm:$0xff] %vm3084, %v4114
    %4267 = vst.msk [vmem:[%s4233 + $0x1b9] sm:$0xff] %vm3084, %v4115
    %4268 = vst.msk [vmem:[%s4233 + $0x1c9] sm:$0xff] %vm3084, %v4116
    %4269 = vst.msk [vmem:[%s4233 + $0x1d1] sm:$0xff] %vm3084, %v4117
    %4270 = vst.msk [vmem:[%s4233 + $0x1e1] sm:$0xff] %vm3084, %v4118
    %4271 = vst.msk [vmem:[%s4233 + $0x1e9] sm:$0xff] %vm3084, %v4119
    %4272 = vst.msk [vmem:[%s4233 + $0x1f9] sm:$0xff] %vm3084, %v4120
    %4273 = vst.msk [vmem:[%s4233 + $0x201] sm:$0xff] %vm3084, %v4121
    %4274 = vst.msk [vmem:[%s4233 + $0x211] sm:$0xff] %vm3084, %v4122
    %4275 = vst.msk [vmem:[%s4233 + $0x219] sm:$0xff] %vm3084, %v4123
    %4276 = vst.msk [vmem:[%s4233 + $0x229] sm:$0xff] %vm3084, %v4124
    %4277 = vst.msk [vmem:[%s4233 + $0x231] sm:$0xff] %vm3084, %v4125
    %4278 = vst.msk [vmem:[%s4233 + $0x241] sm:$0xff] %vm3084, %v4126
    %4279 = vst.msk [vmem:[%s4233 + $0x249] sm:$0xff] %vm3084, %v4127
    %4280 = vst.msk [vmem:[%s4233 + $0x259] sm:$0xff] %vm3084, %v4128
    %4281 = vst.msk [vmem:[%s4233 + $0x261] sm:$0xff] %vm3084, %v4129
    %4282 = vst.msk [vmem:[%s4233 + $0x271] sm:$0xff] %vm3084, %v4130
    %4283 = vst.msk [vmem:[%s4233 + $0x279] sm:$0xff] %vm3084, %v4131
    %4284 = vst.msk [vmem:[%s4233 + $0x289] sm:$0xff] %vm3084, %v4132
    %4285 = vst.msk [vmem:[%s4233 + $0x291] sm:$0xff] %vm3084, %v4133
    %4286 = vst.msk [vmem:[%s4233 + $0x2a1] sm:$0xff] %vm3084, %v4134
    %4287 = vst.msk [vmem:[%s4233 + $0x2a9] sm:$0xff] %vm3084, %v4135
    %4288 = vst.msk [vmem:[%s4233 + $0x2b9] sm:$0xff] %vm3084, %v4136
    %4289 = vst.msk [vmem:[%s4233 + $0x2c1] sm:$0xff] %vm3084, %v4137
    %4290 = vst.msk [vmem:[%s4233 + $0x2d1] sm:$0xff] %vm3084, %v4138
    %4291 = vst.msk [vmem:[%s4233 + $0x2d9] sm:$0xff] %vm3084, %v4139
    %4292 = vst.msk [vmem:[%s4233 + $0x2e9] sm:$0xff] %vm3084, %v4140
    %4293 = vst.msk [vmem:[%s4233 + $0x2f1] sm:$0xff] %vm3084, %v4141
    %4294 = vst.msk [vmem:[%s4233 + $0x301] sm:$0xff] %vm3084, %v4142
    %4295 = vst.msk [vmem:[%s4233 + $0x309] sm:$0xff] %vm3084, %v4143
    %4296 = vst.msk [vmem:[%s4233 + $0x319] sm:$0xff] %vm3084, %v4144
    %4297 = vst.msk [vmem:[%s4233 + $0x321] sm:$0xff] %vm3084, %v4145
    %v4298 = vld [vmem:[#allocation3] ss:$2 sm:$0xff]
    %s4299 = scalar_lea.vmem [#allocation3], 48
    %v4300 = vld [vmem:[%s4299] ss:$2 sm:$0xff]
    %s4301 = scalar_lea.vmem [#allocation3], 96
    %v4302 = vld [vmem:[%s4301] ss:$2 sm:$0xff]
    %s4303 = scalar_lea.vmem [#allocation3], 144
    %v4304 = vld [vmem:[%s4303] ss:$2 sm:$0xff]
    %s4305 = scalar_lea.vmem [#allocation3], 192
    %v4306 = vld [vmem:[%s4305] ss:$2 sm:$0xff]
    %s4307 = scalar_lea.vmem [#allocation3], 240
    %v4308 = vld [vmem:[%s4307] ss:$2 sm:$0xff]
    %s4309 = scalar_lea.vmem [#allocation3], 288
    %v4310 = vld [vmem:[%s4309] ss:$2 sm:$0xff]
    %s4311 = scalar_lea.vmem [#allocation3], 336
    %v4312 = vld [vmem:[%s4311] ss:$2 sm:$0xff]
    %s4313 = scalar_lea.vmem [#allocation3], 432
    %v4314 = vld [vmem:[%s4313] ss:$2 sm:$0xff]
    %s4315 = scalar_lea.vmem [#allocation3], 480
    %v4316 = vld [vmem:[%s4315] ss:$2 sm:$0xff]
    %s4317 = scalar_lea.vmem [#allocation3], 528
    %v4318 = vld [vmem:[%s4317] ss:$2 sm:$0xff]
    %s4319 = scalar_lea.vmem [#allocation3], 576
    %v4320 = vld [vmem:[%s4319] ss:$2 sm:$0xff]
    %s4321 = scalar_lea.vmem [#allocation3], 624
    %v4322 = vld [vmem:[%s4321] ss:$2 sm:$0xff]
    %s4323 = scalar_lea.vmem [#allocation3], 672
    %v4324 = vld [vmem:[%s4323] ss:$2 sm:$0xff]
    %s4325 = scalar_lea.vmem [#allocation3], 720
    %v4326 = vld [vmem:[%s4325] ss:$2 sm:$0xff]
    %s4327 = scalar_lea.vmem [#allocation3], 768
    %v4328 = vld [vmem:[%s4327] ss:$2 sm:$0xff]
    %s4329 = scalar_lea.vmem [#allocation3], 1
    %v4330 = vld [vmem:[%s4329] ss:$2 sm:$0xff]
    %s4331 = scalar_lea.vmem [#allocation3], 49
    %v4332 = vld [vmem:[%s4331] ss:$2 sm:$0xff]
    %s4333 = scalar_lea.vmem [#allocation3], 97
    %v4334 = vld [vmem:[%s4333] ss:$2 sm:$0xff]
    %s4335 = scalar_lea.vmem [#allocation3], 145
    %v4336 = vld [vmem:[%s4335] ss:$2 sm:$0xff]
    %s4337 = scalar_lea.vmem [#allocation3], 193
    %v4338 = vld [vmem:[%s4337] ss:$2 sm:$0xff]
    %s4339 = scalar_lea.vmem [#allocation3], 241
    %v4340 = vld [vmem:[%s4339] ss:$2 sm:$0xff]
    %s4341 = scalar_lea.vmem [#allocation3], 289
    %v4342 = vld [vmem:[%s4341] ss:$2 sm:$0xff]
    %s4343 = scalar_lea.vmem [#allocation3], 337
    %v4344 = vld [vmem:[%s4343] ss:$2 sm:$0xff]
    %s4345 = scalar_lea.vmem [#allocation3], 433
    %v4346 = vld [vmem:[%s4345] ss:$2 sm:$0xff]
    %s4347 = scalar_lea.vmem [#allocation3], 481
    %v4348 = vld [vmem:[%s4347] ss:$2 sm:$0xff]
    %s4349 = scalar_lea.vmem [#allocation3], 529
    %v4350 = vld [vmem:[%s4349] ss:$2 sm:$0xff]
    %s4351 = scalar_lea.vmem [#allocation3], 577
    %v4352 = vld [vmem:[%s4351] ss:$2 sm:$0xff]
    %s4353 = scalar_lea.vmem [#allocation3], 625
    %v4354 = vld [vmem:[%s4353] ss:$2 sm:$0xff]
    %s4355 = scalar_lea.vmem [#allocation3], 673
    %v4356 = vld [vmem:[%s4355] ss:$2 sm:$0xff]
    %s4357 = scalar_lea.vmem [#allocation3], 721
    %v4358 = vld [vmem:[%s4357] ss:$2 sm:$0xff]
    %s4359 = scalar_lea.vmem [#allocation3], 769
    %v4360 = vld [vmem:[%s4359] ss:$2 sm:$0xff]
    %s4361 = scalar_lea.vmem [#allocation3], 2
    %v4362 = vld [vmem:[%s4361] ss:$2 sm:$0xff]
    %s4363 = scalar_lea.vmem [#allocation3], 50
    %v4364 = vld [vmem:[%s4363] ss:$2 sm:$0xff]
    %s4365 = scalar_lea.vmem [#allocation3], 98
    %v4366 = vld [vmem:[%s4365] ss:$2 sm:$0xff]
    %s4367 = scalar_lea.vmem [#allocation3], 146
    %v4368 = vld [vmem:[%s4367] ss:$2 sm:$0xff]
    %s4369 = scalar_lea.vmem [#allocation3], 194
    %v4370 = vld [vmem:[%s4369] ss:$2 sm:$0xff]
    %s4371 = scalar_lea.vmem [#allocation3], 242
    %v4372 = vld [vmem:[%s4371] ss:$2 sm:$0xff]
    %s4373 = scalar_lea.vmem [#allocation3], 290
    %v4374 = vld [vmem:[%s4373] ss:$2 sm:$0xff]
    %s4375 = scalar_lea.vmem [#allocation3], 338
    %v4376 = vld [vmem:[%s4375] ss:$2 sm:$0xff]
    %s4377 = scalar_lea.vmem [#allocation3], 434
    %v4378 = vld [vmem:[%s4377] ss:$2 sm:$0xff]
    %s4379 = scalar_lea.vmem [#allocation3], 482
    %v4380 = vld [vmem:[%s4379] ss:$2 sm:$0xff]
    %s4381 = scalar_lea.vmem [#allocation3], 530
    %v4382 = vld [vmem:[%s4381] ss:$2 sm:$0xff]
    %s4383 = scalar_lea.vmem [#allocation3], 578
    %v4384 = vld [vmem:[%s4383] ss:$2 sm:$0xff]
    %s4385 = scalar_lea.vmem [#allocation3], 626
    %v4386 = vld [vmem:[%s4385] ss:$2 sm:$0xff]
    %s4387 = scalar_lea.vmem [#allocation3], 674
    %v4388 = vld [vmem:[%s4387] ss:$2 sm:$0xff]
    %s4389 = scalar_lea.vmem [#allocation3], 722
    %v4390 = vld [vmem:[%s4389] ss:$2 sm:$0xff]
    %s4391 = scalar_lea.vmem [#allocation3], 770
    %v4392 = vld [vmem:[%s4391] ss:$2 sm:$0xff]
    %v4393 = vld [vmem:[%s4233] ss:$2 sm:$0xff]
    %s4394 = scalar_lea.vmem %s4233, 48 [#allocation3]
    %v4395 = vld [vmem:[%s4394] ss:$2 sm:$0xff]
    %s4396 = scalar_lea.vmem %s4233, 96 [#allocation3]
    %v4397 = vld [vmem:[%s4396] ss:$2 sm:$0xff]
    %s4398 = scalar_lea.vmem %s4233, 144 [#allocation3]
    %v4399 = vld [vmem:[%s4398] ss:$2 sm:$0xff]
    %s4400 = scalar_lea.vmem %s4233, 192 [#allocation3]
    %v4401 = vld [vmem:[%s4400] ss:$2 sm:$0xff]
    %s4402 = scalar_lea.vmem %s4233, 240 [#allocation3]
    %v4403 = vld [vmem:[%s4402] ss:$2 sm:$0xff]
    %s4404 = scalar_lea.vmem %s4233, 288 [#allocation3]
    %v4405 = vld [vmem:[%s4404] ss:$2 sm:$0xff]
    %s4406 = scalar_lea.vmem %s4233, 336 [#allocation3]
    %v4407 = vld [vmem:[%s4406] ss:$2 sm:$0xff]
    %s4408 = scalar_lea.vmem %s4233, 432 [#allocation3]
    %v4409 = vld [vmem:[%s4408] ss:$2 sm:$0xff]
    %s4410 = scalar_lea.vmem %s4233, 480 [#allocation3]
    %v4411 = vld [vmem:[%s4410] ss:$2 sm:$0xff]
    %s4412 = scalar_lea.vmem %s4233, 528 [#allocation3]
    %v4413 = vld [vmem:[%s4412] ss:$2 sm:$0xff]
    %s4414 = scalar_lea.vmem %s4233, 576 [#allocation3]
    %v4415 = vld [vmem:[%s4414] ss:$2 sm:$0xff]
    %s4416 = scalar_lea.vmem %s4233, 624 [#allocation3]
    %v4417 = vld [vmem:[%s4416] ss:$2 sm:$0xff]
    %s4418 = scalar_lea.vmem %s4233, 672 [#allocation3]
    %v4419 = vld [vmem:[%s4418] ss:$2 sm:$0xff]
    %s4420 = scalar_lea.vmem %s4233, 720 [#allocation3]
    %v4421 = vld [vmem:[%s4420] ss:$2 sm:$0xff]
    %s4422 = scalar_lea.vmem %s4233, 768 [#allocation3]
    %v4423 = vld [vmem:[%s4422] ss:$2 sm:$0xff]
    %s4424 = scalar_lea.vmem %s4233, 1 [#allocation3]
    %v4425 = vld [vmem:[%s4424] ss:$2 sm:$0xff]
    %s4426 = scalar_lea.vmem %s4233, 49 [#allocation3]
    %v4427 = vld [vmem:[%s4426] ss:$2 sm:$0xff]
    %s4428 = scalar_lea.vmem %s4233, 97 [#allocation3]
    %v4429 = vld [vmem:[%s4428] ss:$2 sm:$0xff]
    %s4430 = scalar_lea.vmem %s4233, 145 [#allocation3]
    %v4431 = vld [vmem:[%s4430] ss:$2 sm:$0xff]
    %s4432 = scalar_lea.vmem %s4233, 193 [#allocation3]
    %v4433 = vld [vmem:[%s4432] ss:$2 sm:$0xff]
    %s4434 = scalar_lea.vmem %s4233, 241 [#allocation3]
    %v4435 = vld [vmem:[%s4434] ss:$2 sm:$0xff]
    %s4436 = scalar_lea.vmem %s4233, 289 [#allocation3]
    %v4437 = vld [vmem:[%s4436] ss:$2 sm:$0xff]
    %s4438 = scalar_lea.vmem %s4233, 337 [#allocation3]
    %v4439 = vld [vmem:[%s4438] ss:$2 sm:$0xff]
    %s4440 = scalar_lea.vmem %s4233, 433 [#allocation3]
    %v4441 = vld [vmem:[%s4440] ss:$2 sm:$0xff]
    %s4442 = scalar_lea.vmem %s4233, 481 [#allocation3]
    %v4443 = vld [vmem:[%s4442] ss:$2 sm:$0xff]
    %s4444 = scalar_lea.vmem %s4233, 529 [#allocation3]
    %v4445 = vld [vmem:[%s4444] ss:$2 sm:$0xff]
    %s4446 = scalar_lea.vmem %s4233, 577 [#allocation3]
    %v4447 = vld [vmem:[%s4446] ss:$2 sm:$0xff]
    %s4448 = scalar_lea.vmem %s4233, 625 [#allocation3]
    %v4449 = vld [vmem:[%s4448] ss:$2 sm:$0xff]
    %s4450 = scalar_lea.vmem %s4233, 673 [#allocation3]
    %v4451 = vld [vmem:[%s4450] ss:$2 sm:$0xff]
    %s4452 = scalar_lea.vmem %s4233, 721 [#allocation3]
    %v4453 = vld [vmem:[%s4452] ss:$2 sm:$0xff]
    %s4454 = scalar_lea.vmem %s4233, 769 [#allocation3]
    %v4455 = vld [vmem:[%s4454] ss:$2 sm:$0xff]
    %s4456 = scalar_lea.vmem %s4233, 2 [#allocation3]
    %v4457 = vld [vmem:[%s4456] ss:$2 sm:$0xff]
    %s4458 = scalar_lea.vmem %s4233, 50 [#allocation3]
    %v4459 = vld [vmem:[%s4458] ss:$2 sm:$0xff]
    %s4460 = scalar_lea.vmem %s4233, 98 [#allocation3]
    %v4461 = vld [vmem:[%s4460] ss:$2 sm:$0xff]
    %s4462 = scalar_lea.vmem %s4233, 146 [#allocation3]
    %v4463 = vld [vmem:[%s4462] ss:$2 sm:$0xff]
    %s4464 = scalar_lea.vmem %s4233, 194 [#allocation3]
    %v4465 = vld [vmem:[%s4464] ss:$2 sm:$0xff]
    %s4466 = scalar_lea.vmem %s4233, 242 [#allocation3]
    %v4467 = vld [vmem:[%s4466] ss:$2 sm:$0xff]
    %s4468 = scalar_lea.vmem %s4233, 290 [#allocation3]
    %v4469 = vld [vmem:[%s4468] ss:$2 sm:$0xff]
    %s4470 = scalar_lea.vmem %s4233, 338 [#allocation3]
    %v4471 = vld [vmem:[%s4470] ss:$2 sm:$0xff]
    %s4472 = scalar_lea.vmem %s4233, 434 [#allocation3]
    %v4473 = vld [vmem:[%s4472] ss:$2 sm:$0xff]
    %s4474 = scalar_lea.vmem %s4233, 482 [#allocation3]
    %v4475 = vld [vmem:[%s4474] ss:$2 sm:$0xff]
    %s4476 = scalar_lea.vmem %s4233, 530 [#allocation3]
    %v4477 = vld [vmem:[%s4476] ss:$2 sm:$0xff]
    %s4478 = scalar_lea.vmem %s4233, 578 [#allocation3]
    %v4479 = vld [vmem:[%s4478] ss:$2 sm:$0xff]
    %s4480 = scalar_lea.vmem %s4233, 626 [#allocation3]
    %v4481 = vld [vmem:[%s4480] ss:$2 sm:$0xff]
    %s4482 = scalar_lea.vmem %s4233, 674 [#allocation3]
    %v4483 = vld [vmem:[%s4482] ss:$2 sm:$0xff]
    %s4484 = scalar_lea.vmem %s4233, 722 [#allocation3]
    %v4485 = vld [vmem:[%s4484] ss:$2 sm:$0xff]
    %s4486 = scalar_lea.vmem %s4233, 770 [#allocation3]
    %v4487 = vld [vmem:[%s4486] ss:$2 sm:$0xff]
    %s4488 = scalar_lea.vmem [#allocation3], 48
    %v4489 = vld [vmem:[%s4488] ss:$2 sm:$0xff]
    %s4490 = scalar_lea.vmem %s4488, 48 [#allocation3]
    %v4491 = vld [vmem:[%s4490] ss:$2 sm:$0xff]
    %s4492 = scalar_lea.vmem %s4488, 96 [#allocation3]
    %v4493 = vld [vmem:[%s4492] ss:$2 sm:$0xff]
    %s4494 = scalar_lea.vmem %s4488, 144 [#allocation3]
    %v4495 = vld [vmem:[%s4494] ss:$2 sm:$0xff]
    %s4496 = scalar_lea.vmem %s4488, 192 [#allocation3]
    %v4497 = vld [vmem:[%s4496] ss:$2 sm:$0xff]
    %s4498 = scalar_lea.vmem %s4488, 240 [#allocation3]
    %v4499 = vld [vmem:[%s4498] ss:$2 sm:$0xff]
    %s4500 = scalar_lea.vmem %s4488, 288 [#allocation3]
    %v4501 = vld [vmem:[%s4500] ss:$2 sm:$0xff]
    %s4502 = scalar_lea.vmem %s4488, 336 [#allocation3]
    %v4503 = vld [vmem:[%s4502] ss:$2 sm:$0xff]
    %s4504 = scalar_lea.vmem %s4488, 432 [#allocation3]
    %v4505 = vld [vmem:[%s4504] ss:$2 sm:$0xff]
    %s4506 = scalar_lea.vmem %s4488, 480 [#allocation3]
    %v4507 = vld [vmem:[%s4506] ss:$2 sm:$0xff]
    %s4508 = scalar_lea.vmem %s4488, 528 [#allocation3]
    %v4509 = vld [vmem:[%s4508] ss:$2 sm:$0xff]
    %s4510 = scalar_lea.vmem %s4488, 576 [#allocation3]
    %v4511 = vld [vmem:[%s4510] ss:$2 sm:$0xff]
    %s4512 = scalar_lea.vmem %s4488, 624 [#allocation3]
    %v4513 = vld [vmem:[%s4512] ss:$2 sm:$0xff]
    %s4514 = scalar_lea.vmem %s4488, 672 [#allocation3]
    %v4515 = vld [vmem:[%s4514] ss:$2 sm:$0xff]
    %s4516 = scalar_lea.vmem %s4488, 720 [#allocation3]
    %v4517 = vld [vmem:[%s4516] ss:$2 sm:$0xff]
    %s4518 = scalar_lea.vmem %s4488, 768 [#allocation3]
    %v4519 = vld [vmem:[%s4518] ss:$2 sm:$0xff]
    %s4520 = scalar_lea.vmem %s4488, 1 [#allocation3]
    %v4521 = vld [vmem:[%s4520] ss:$2 sm:$0xff]
    %s4522 = scalar_lea.vmem %s4488, 49 [#allocation3]
    %v4523 = vld [vmem:[%s4522] ss:$2 sm:$0xff]
    %s4524 = scalar_lea.vmem %s4488, 97 [#allocation3]
    %v4525 = vld [vmem:[%s4524] ss:$2 sm:$0xff]
    %s4526 = scalar_lea.vmem %s4488, 145 [#allocation3]
    %v4527 = vld [vmem:[%s4526] ss:$2 sm:$0xff]
    %s4528 = scalar_lea.vmem %s4488, 193 [#allocation3]
    %v4529 = vld [vmem:[%s4528] ss:$2 sm:$0xff]
    %s4530 = scalar_lea.vmem %s4488, 241 [#allocation3]
    %v4531 = vld [vmem:[%s4530] ss:$2 sm:$0xff]
    %s4532 = scalar_lea.vmem %s4488, 289 [#allocation3]
    %v4533 = vld [vmem:[%s4532] ss:$2 sm:$0xff]
    %s4534 = scalar_lea.vmem %s4488, 337 [#allocation3]
    %v4535 = vld [vmem:[%s4534] ss:$2 sm:$0xff]
    %s4536 = scalar_lea.vmem %s4488, 433 [#allocation3]
    %v4537 = vld [vmem:[%s4536] ss:$2 sm:$0xff]
    %s4538 = scalar_lea.vmem %s4488, 481 [#allocation3]
    %v4539 = vld [vmem:[%s4538] ss:$2 sm:$0xff]
    %s4540 = scalar_lea.vmem %s4488, 529 [#allocation3]
    %v4541 = vld [vmem:[%s4540] ss:$2 sm:$0xff]
    %s4542 = scalar_lea.vmem %s4488, 577 [#allocation3]
    %v4543 = vld [vmem:[%s4542] ss:$2 sm:$0xff]
    %s4544 = scalar_lea.vmem %s4488, 625 [#allocation3]
    %v4545 = vld [vmem:[%s4544] ss:$2 sm:$0xff]
    %s4546 = scalar_lea.vmem %s4488, 673 [#allocation3]
    %v4547 = vld [vmem:[%s4546] ss:$2 sm:$0xff]
    %s4548 = scalar_lea.vmem %s4488, 721 [#allocation3]
    %v4549 = vld [vmem:[%s4548] ss:$2 sm:$0xff]
    %s4550 = scalar_lea.vmem %s4488, 769 [#allocation3]
    %v4551 = vld [vmem:[%s4550] ss:$2 sm:$0xff]
    %s4552 = scalar_lea.vmem %s4488, 2 [#allocation3]
    %v4553 = vld [vmem:[%s4552] ss:$2 sm:$0xff]
    %s4554 = scalar_lea.vmem %s4488, 50 [#allocation3]
    %v4555 = vld [vmem:[%s4554] ss:$2 sm:$0xff]
    %s4556 = scalar_lea.vmem %s4488, 98 [#allocation3]
    %v4557 = vld [vmem:[%s4556] ss:$2 sm:$0xff]
    %s4558 = scalar_lea.vmem %s4488, 146 [#allocation3]
    %v4559 = vld [vmem:[%s4558] ss:$2 sm:$0xff]
    %s4560 = scalar_lea.vmem %s4488, 194 [#allocation3]
    %v4561 = vld [vmem:[%s4560] ss:$2 sm:$0xff]
    %s4562 = scalar_lea.vmem %s4488, 242 [#allocation3]
    %v4563 = vld [vmem:[%s4562] ss:$2 sm:$0xff]
    %s4564 = scalar_lea.vmem %s4488, 290 [#allocation3]
    %v4565 = vld [vmem:[%s4564] ss:$2 sm:$0xff]
    %s4566 = scalar_lea.vmem %s4488, 338 [#allocation3]
    %v4567 = vld [vmem:[%s4566] ss:$2 sm:$0xff]
    %s4568 = scalar_lea.vmem %s4488, 434 [#allocation3]
    %v4569 = vld [vmem:[%s4568] ss:$2 sm:$0xff]
    %s4570 = scalar_lea.vmem %s4488, 482 [#allocation3]
    %v4571 = vld [vmem:[%s4570] ss:$2 sm:$0xff]
    %s4572 = scalar_lea.vmem %s4488, 530 [#allocation3]
    %v4573 = vld [vmem:[%s4572] ss:$2 sm:$0xff]
    %s4574 = scalar_lea.vmem %s4488, 578 [#allocation3]
    %v4575 = vld [vmem:[%s4574] ss:$2 sm:$0xff]
    %s4576 = scalar_lea.vmem %s4488, 626 [#allocation3]
    %v4577 = vld [vmem:[%s4576] ss:$2 sm:$0xff]
    %s4578 = scalar_lea.vmem %s4488, 674 [#allocation3]
    %v4579 = vld [vmem:[%s4578] ss:$2 sm:$0xff]
    %s4580 = scalar_lea.vmem %s4488, 722 [#allocation3]
    %v4581 = vld [vmem:[%s4580] ss:$2 sm:$0xff]
    %s4582 = scalar_lea.vmem %s4488, 770 [#allocation3]
    %v4583 = vld [vmem:[%s4582] ss:$2 sm:$0xff]
    %4600 = vrot.lane.b32.xlu0 %v4330, 8
    %v4601 = vpop.permute.xlu0 %4600
    %4602 = vrot.lane.b32.xlu0 %v4332, 8
    %v4603 = vpop.permute.xlu0 %4602
    %4604 = vrot.lane.b32.xlu0 %v4334, 8
    %v4605 = vpop.permute.xlu0 %4604
    %4606 = vrot.lane.b32.xlu0 %v4336, 8
    %v4607 = vpop.permute.xlu0 %4606
    %4608 = vrot.lane.b32.xlu0 %v4338, 8
    %v4609 = vpop.permute.xlu0 %4608
    %4610 = vrot.lane.b32.xlu0 %v4340, 8
    %v4611 = vpop.permute.xlu0 %4610
    %4612 = vrot.lane.b32.xlu0 %v4342, 8
    %v4613 = vpop.permute.xlu0 %4612
    %4614 = vrot.lane.b32.xlu0 %v4344, 8
    %v4615 = vpop.permute.xlu0 %4614
    %4616 = vrot.lane.b32.xlu0 %v4346, 8
    %v4617 = vpop.permute.xlu0 %4616
    %4618 = vrot.lane.b32.xlu0 %v4348, 8
    %v4619 = vpop.permute.xlu0 %4618
    %4620 = vrot.lane.b32.xlu0 %v4350, 8
    %v4621 = vpop.permute.xlu0 %4620
    %4622 = vrot.lane.b32.xlu0 %v4352, 8
    %v4623 = vpop.permute.xlu0 %4622
    %4624 = vrot.lane.b32.xlu0 %v4354, 8
    %v4625 = vpop.permute.xlu0 %4624
    %4626 = vrot.lane.b32.xlu0 %v4356, 8
    %v4627 = vpop.permute.xlu0 %4626
    %4628 = vrot.lane.b32.xlu0 %v4358, 8
    %v4629 = vpop.permute.xlu0 %4628
    %4630 = vrot.lane.b32.xlu0 %v4360, 8
    %v4631 = vpop.permute.xlu0 %4630
    %4664 = vrot.lane.b32.xlu0 %v4362, 16
    %v4665 = vpop.permute.xlu0 %4664
    %4666 = vrot.lane.b32.xlu0 %v4364, 16
    %v4667 = vpop.permute.xlu0 %4666
    %4668 = vrot.lane.b32.xlu0 %v4366, 16
    %v4669 = vpop.permute.xlu0 %4668
    %4670 = vrot.lane.b32.xlu0 %v4368, 16
    %v4671 = vpop.permute.xlu0 %4670
    %4672 = vrot.lane.b32.xlu0 %v4370, 16
    %v4673 = vpop.permute.xlu0 %4672
    %4674 = vrot.lane.b32.xlu0 %v4372, 16
    %v4675 = vpop.permute.xlu0 %4674
    %4676 = vrot.lane.b32.xlu0 %v4374, 16
    %v4677 = vpop.permute.xlu0 %4676
    %4678 = vrot.lane.b32.xlu0 %v4376, 16
    %v4679 = vpop.permute.xlu0 %4678
    %4680 = vrot.lane.b32.xlu0 %v4378, 16
    %v4681 = vpop.permute.xlu0 %4680
    %4682 = vrot.lane.b32.xlu0 %v4380, 16
    %v4683 = vpop.permute.xlu0 %4682
    %4684 = vrot.lane.b32.xlu0 %v4382, 16
    %v4685 = vpop.permute.xlu0 %4684
    %4686 = vrot.lane.b32.xlu0 %v4384, 16
    %v4687 = vpop.permute.xlu0 %4686
    %4688 = vrot.lane.b32.xlu0 %v4386, 16
    %v4689 = vpop.permute.xlu0 %4688
    %4690 = vrot.lane.b32.xlu0 %v4388, 16
    %v4691 = vpop.permute.xlu0 %4690
    %4692 = vrot.lane.b32.xlu0 %v4390, 16
    %v4693 = vpop.permute.xlu0 %4692
    %4694 = vrot.lane.b32.xlu0 %v4392, 16
    %v4695 = vpop.permute.xlu0 %4694
    %4728 = vrot.lane.b32.xlu0 %v4393, 24
    %v4729 = vpop.permute.xlu0 %4728
    %4730 = vrot.lane.b32.xlu0 %v4395, 24
    %v4731 = vpop.permute.xlu0 %4730
    %4732 = vrot.lane.b32.xlu0 %v4397, 24
    %v4733 = vpop.permute.xlu0 %4732
    %4734 = vrot.lane.b32.xlu0 %v4399, 24
    %v4735 = vpop.permute.xlu0 %4734
    %4736 = vrot.lane.b32.xlu0 %v4401, 24
    %v4737 = vpop.permute.xlu0 %4736
    %4738 = vrot.lane.b32.xlu0 %v4403, 24
    %v4739 = vpop.permute.xlu0 %4738
    %4740 = vrot.lane.b32.xlu0 %v4405, 24
    %v4741 = vpop.permute.xlu0 %4740
    %4742 = vrot.lane.b32.xlu0 %v4407, 24
    %v4743 = vpop.permute.xlu0 %4742
    %4744 = vrot.lane.b32.xlu0 %v4409, 24
    %v4745 = vpop.permute.xlu0 %4744
    %4746 = vrot.lane.b32.xlu0 %v4411, 24
    %v4747 = vpop.permute.xlu0 %4746
    %4748 = vrot.lane.b32.xlu0 %v4413, 24
    %v4749 = vpop.permute.xlu0 %4748
    %4750 = vrot.lane.b32.xlu0 %v4415, 24
    %v4751 = vpop.permute.xlu0 %4750
    %4752 = vrot.lane.b32.xlu0 %v4417, 24
    %v4753 = vpop.permute.xlu0 %4752
    %4754 = vrot.lane.b32.xlu0 %v4419, 24
    %v4755 = vpop.permute.xlu0 %4754
    %4756 = vrot.lane.b32.xlu0 %v4421, 24
    %v4757 = vpop.permute.xlu0 %4756
    %4758 = vrot.lane.b32.xlu0 %v4423, 24
    %v4759 = vpop.permute.xlu0 %4758
    %4792 = vrot.lane.b32.xlu0 %v4425, 32
    %v4793 = vpop.permute.xlu0 %4792
    %4794 = vrot.lane.b32.xlu0 %v4427, 32
    %v4795 = vpop.permute.xlu0 %4794
    %4796 = vrot.lane.b32.xlu0 %v4429, 32
    %v4797 = vpop.permute.xlu0 %4796
    %4798 = vrot.lane.b32.xlu0 %v4431, 32
    %v4799 = vpop.permute.xlu0 %4798
    %4800 = vrot.lane.b32.xlu0 %v4433, 32
    %v4801 = vpop.permute.xlu0 %4800
    %4802 = vrot.lane.b32.xlu0 %v4435, 32
    %v4803 = vpop.permute.xlu0 %4802
    %4804 = vrot.lane.b32.xlu0 %v4437, 32
    %v4805 = vpop.permute.xlu0 %4804
    %4806 = vrot.lane.b32.xlu0 %v4439, 32
    %v4807 = vpop.permute.xlu0 %4806
    %4808 = vrot.lane.b32.xlu0 %v4441, 32
    %v4809 = vpop.permute.xlu0 %4808
    %4810 = vrot.lane.b32.xlu0 %v4443, 32
    %v4811 = vpop.permute.xlu0 %4810
    %4812 = vrot.lane.b32.xlu0 %v4445, 32
    %v4813 = vpop.permute.xlu0 %4812
    %4814 = vrot.lane.b32.xlu0 %v4447, 32
    %v4815 = vpop.permute.xlu0 %4814
    %4816 = vrot.lane.b32.xlu0 %v4449, 32
    %v4817 = vpop.permute.xlu0 %4816
    %4818 = vrot.lane.b32.xlu0 %v4451, 32
    %v4819 = vpop.permute.xlu0 %4818
    %4820 = vrot.lane.b32.xlu0 %v4453, 32
    %v4821 = vpop.permute.xlu0 %4820
    %4822 = vrot.lane.b32.xlu0 %v4455, 32
    %v4823 = vpop.permute.xlu0 %4822
    %4856 = vrot.lane.b32.xlu0 %v4457, 40
    %v4857 = vpop.permute.xlu0 %4856
    %4858 = vrot.lane.b32.xlu0 %v4459, 40
    %v4859 = vpop.permute.xlu0 %4858
    %4860 = vrot.lane.b32.xlu0 %v4461, 40
    %v4861 = vpop.permute.xlu0 %4860
    %4862 = vrot.lane.b32.xlu0 %v4463, 40
    %v4863 = vpop.permute.xlu0 %4862
    %4864 = vrot.lane.b32.xlu0 %v4465, 40
    %v4865 = vpop.permute.xlu0 %4864
    %4866 = vrot.lane.b32.xlu0 %v4467, 40
    %v4867 = vpop.permute.xlu0 %4866
    %4868 = vrot.lane.b32.xlu0 %v4469, 40
    %v4869 = vpop.permute.xlu0 %4868
    %4870 = vrot.lane.b32.xlu0 %v4471, 40
    %v4871 = vpop.permute.xlu0 %4870
    %4872 = vrot.lane.b32.xlu0 %v4473, 40
    %v4873 = vpop.permute.xlu0 %4872
    %4874 = vrot.lane.b32.xlu0 %v4475, 40
    %v4875 = vpop.permute.xlu0 %4874
    %4876 = vrot.lane.b32.xlu0 %v4477, 40
    %v4877 = vpop.permute.xlu0 %4876
    %4878 = vrot.lane.b32.xlu0 %v4479, 40
    %v4879 = vpop.permute.xlu0 %4878
    %4880 = vrot.lane.b32.xlu0 %v4481, 40
    %v4881 = vpop.permute.xlu0 %4880
    %4882 = vrot.lane.b32.xlu0 %v4483, 40
    %v4883 = vpop.permute.xlu0 %4882
    %4884 = vrot.lane.b32.xlu0 %v4485, 40
    %v4885 = vpop.permute.xlu0 %4884
    %4886 = vrot.lane.b32.xlu0 %v4487, 40
    %v4887 = vpop.permute.xlu0 %4886
    %4920 = vrot.lane.b32.xlu0 %v4489, 48
    %v4921 = vpop.permute.xlu0 %4920
    %4922 = vrot.lane.b32.xlu0 %v4491, 48
    %v4923 = vpop.permute.xlu0 %4922
    %4924 = vrot.lane.b32.xlu0 %v4493, 48
    %v4925 = vpop.permute.xlu0 %4924
    %4926 = vrot.lane.b32.xlu0 %v4495, 48
    %v4927 = vpop.permute.xlu0 %4926
    %4928 = vrot.lane.b32.xlu0 %v4497, 48
    %v4929 = vpop.permute.xlu0 %4928
    %4930 = vrot.lane.b32.xlu0 %v4499, 48
    %v4931 = vpop.permute.xlu0 %4930
    %4932 = vrot.lane.b32.xlu0 %v4501, 48
    %v4933 = vpop.permute.xlu0 %4932
    %4934 = vrot.lane.b32.xlu0 %v4503, 48
    %v4935 = vpop.permute.xlu0 %4934
    %4936 = vrot.lane.b32.xlu0 %v4505, 48
    %v4937 = vpop.permute.xlu0 %4936
    %4938 = vrot.lane.b32.xlu0 %v4507, 48
    %v4939 = vpop.permute.xlu0 %4938
    %4940 = vrot.lane.b32.xlu0 %v4509, 48
    %v4941 = vpop.permute.xlu0 %4940
    %4942 = vrot.lane.b32.xlu0 %v4511, 48
    %v4943 = vpop.permute.xlu0 %4942
    %4944 = vrot.lane.b32.xlu0 %v4513, 48
    %v4945 = vpop.permute.xlu0 %4944
    %4946 = vrot.lane.b32.xlu0 %v4515, 48
    %v4947 = vpop.permute.xlu0 %4946
    %4948 = vrot.lane.b32.xlu0 %v4517, 48
    %v4949 = vpop.permute.xlu0 %4948
    %4950 = vrot.lane.b32.xlu0 %v4519, 48
    %v4951 = vpop.permute.xlu0 %4950
    %4984 = vrot.lane.b32.xlu0 %v4521, 56
    %v4985 = vpop.permute.xlu0 %4984
    %4986 = vrot.lane.b32.xlu0 %v4523, 56
    %v4987 = vpop.permute.xlu0 %4986
    %4988 = vrot.lane.b32.xlu0 %v4525, 56
    %v4989 = vpop.permute.xlu0 %4988
    %4990 = vrot.lane.b32.xlu0 %v4527, 56
    %v4991 = vpop.permute.xlu0 %4990
    %4992 = vrot.lane.b32.xlu0 %v4529, 56
    %v4993 = vpop.permute.xlu0 %4992
    %4994 = vrot.lane.b32.xlu0 %v4531, 56
    %v4995 = vpop.permute.xlu0 %4994
    %4996 = vrot.lane.b32.xlu0 %v4533, 56
    %v4997 = vpop.permute.xlu0 %4996
    %4998 = vrot.lane.b32.xlu0 %v4535, 56
    %v4999 = vpop.permute.xlu0 %4998
    %5000 = vrot.lane.b32.xlu0 %v4537, 56
    %v5001 = vpop.permute.xlu0 %5000
    %5002 = vrot.lane.b32.xlu0 %v4539, 56
    %v5003 = vpop.permute.xlu0 %5002
    %5004 = vrot.lane.b32.xlu0 %v4541, 56
    %v5005 = vpop.permute.xlu0 %5004
    %5006 = vrot.lane.b32.xlu0 %v4543, 56
    %v5007 = vpop.permute.xlu0 %5006
    %5008 = vrot.lane.b32.xlu0 %v4545, 56
    %v5009 = vpop.permute.xlu0 %5008
    %5010 = vrot.lane.b32.xlu0 %v4547, 56
    %v5011 = vpop.permute.xlu0 %5010
    %5012 = vrot.lane.b32.xlu0 %v4549, 56
    %v5013 = vpop.permute.xlu0 %5012
    %5014 = vrot.lane.b32.xlu0 %v4551, 56
    %v5015 = vpop.permute.xlu0 %5014
    %5048 = vrot.lane.b32.xlu0 %v4553, 64
    %v5049 = vpop.permute.xlu0 %5048
    %5050 = vrot.lane.b32.xlu0 %v4555, 64
    %v5051 = vpop.permute.xlu0 %5050
    %5052 = vrot.lane.b32.xlu0 %v4557, 64
    %v5053 = vpop.permute.xlu0 %5052
    %5054 = vrot.lane.b32.xlu0 %v4559, 64
    %v5055 = vpop.permute.xlu0 %5054
    %5056 = vrot.lane.b32.xlu0 %v4561, 64
    %v5057 = vpop.permute.xlu0 %5056
    %5058 = vrot.lane.b32.xlu0 %v4563, 64
    %v5059 = vpop.permute.xlu0 %5058
    %5060 = vrot.lane.b32.xlu0 %v4565, 64
    %v5061 = vpop.permute.xlu0 %5060
    %5062 = vrot.lane.b32.xlu0 %v4567, 64
    %v5063 = vpop.permute.xlu0 %5062
    %5064 = vrot.lane.b32.xlu0 %v4569, 64
    %v5065 = vpop.permute.xlu0 %5064
    %5066 = vrot.lane.b32.xlu0 %v4571, 64
    %v5067 = vpop.permute.xlu0 %5066
    %5068 = vrot.lane.b32.xlu0 %v4573, 64
    %v5069 = vpop.permute.xlu0 %5068
    %5070 = vrot.lane.b32.xlu0 %v4575, 64
    %v5071 = vpop.permute.xlu0 %5070
    %5072 = vrot.lane.b32.xlu0 %v4577, 64
    %v5073 = vpop.permute.xlu0 %5072
    %5074 = vrot.lane.b32.xlu0 %v4579, 64
    %v5075 = vpop.permute.xlu0 %5074
    %5076 = vrot.lane.b32.xlu0 %v4581, 64
    %v5077 = vpop.permute.xlu0 %5076
    %5078 = vrot.lane.b32.xlu0 %v4583, 64
    %v5079 = vpop.permute.xlu0 %5078
    %v5096 = vsel %vm3084, %v4298, %v4601
    %v5097 = vsel %vm3084, %v4300, %v4603
    %v5098 = vsel %vm3084, %v4302, %v4605
    %v5099 = vsel %vm3084, %v4304, %v4607
    %v5100 = vsel %vm3084, %v4306, %v4609
    %v5101 = vsel %vm3084, %v4308, %v4611
    %v5102 = vsel %vm3084, %v4310, %v4613
    %v5103 = vsel %vm3084, %v4312, %v4615
    %v5104 = vsel %vm3084, %v4314, %v4617
    %v5105 = vsel %vm3084, %v4316, %v4619
    %v5106 = vsel %vm3084, %v4318, %v4621
    %v5107 = vsel %vm3084, %v4320, %v4623
    %v5108 = vsel %vm3084, %v4322, %v4625
    %v5109 = vsel %vm3084, %v4324, %v4627
    %v5110 = vsel %vm3084, %v4326, %v4629
    %v5111 = vsel %vm3084, %v4328, %v4631
    %v5112 = vsel %vm3214, %v5096, %v4665
    %v5113 = vsel %vm3214, %v5097, %v4667
    %v5114 = vsel %vm3214, %v5098, %v4669
    %v5115 = vsel %vm3214, %v5099, %v4671
    %v5116 = vsel %vm3214, %v5100, %v4673
    %v5117 = vsel %vm3214, %v5101, %v4675
    %v5118 = vsel %vm3214, %v5102, %v4677
    %v5119 = vsel %vm3214, %v5103, %v4679
    %v5120 = vsel %vm3214, %v5104, %v4681
    %v5121 = vsel %vm3214, %v5105, %v4683
    %v5122 = vsel %vm3214, %v5106, %v4685
    %v5123 = vsel %vm3214, %v5107, %v4687
    %v5124 = vsel %vm3214, %v5108, %v4689
    %v5125 = vsel %vm3214, %v5109, %v4691
    %v5126 = vsel %vm3214, %v5110, %v4693
    %v5127 = vsel %vm3214, %v5111, %v4695
    %v5128 = vsel %vm3344, %v5112, %v4729
    %v5129 = vsel %vm3344, %v5113, %v4731
    %v5130 = vsel %vm3344, %v5114, %v4733
    %v5131 = vsel %vm3344, %v5115, %v4735
    %v5132 = vsel %vm3344, %v5116, %v4737
    %v5133 = vsel %vm3344, %v5117, %v4739
    %v5134 = vsel %vm3344, %v5118, %v4741
    %v5135 = vsel %vm3344, %v5119, %v4743
    %v5136 = vsel %vm3344, %v5120, %v4745
    %v5137 = vsel %vm3344, %v5121, %v4747
    %v5138 = vsel %vm3344, %v5122, %v4749
    %v5139 = vsel %vm3344, %v5123, %v4751
    %v5140 = vsel %vm3344, %v5124, %v4753
    %v5141 = vsel %vm3344, %v5125, %v4755
    %v5142 = vsel %vm3344, %v5126, %v4757
    %v5143 = vsel %vm3344, %v5127, %v4759
    %v5144 = vsel %vm3474, %v5128, %v4793
    %v5145 = vsel %vm3474, %v5129, %v4795
    %v5146 = vsel %vm3474, %v5130, %v4797
    %v5147 = vsel %vm3474, %v5131, %v4799
    %v5148 = vsel %vm3474, %v5132, %v4801
    %v5149 = vsel %vm3474, %v5133, %v4803
    %v5150 = vsel %vm3474, %v5134, %v4805
    %v5151 = vsel %vm3474, %v5135, %v4807
    %v5152 = vsel %vm3474, %v5136, %v4809
    %v5153 = vsel %vm3474, %v5137, %v4811
    %v5154 = vsel %vm3474, %v5138, %v4813
    %v5155 = vsel %vm3474, %v5139, %v4815
    %v5156 = vsel %vm3474, %v5140, %v4817
    %v5157 = vsel %vm3474, %v5141, %v4819
    %v5158 = vsel %vm3474, %v5142, %v4821
    %v5159 = vsel %vm3474, %v5143, %v4823
    %vm5160 = vcmask 326656
    %v5161 = vsel %vm5160, %v5144, %v4857
    %v5162 = vsel %vm5160, %v5145, %v4859
    %v5163 = vsel %vm5160, %v5146, %v4861
    %v5164 = vsel %vm5160, %v5147, %v4863
    %v5165 = vsel %vm5160, %v5148, %v4865
    %v5166 = vsel %vm5160, %v5149, %v4867
    %v5167 = vsel %vm5160, %v5150, %v4869
    %v5168 = vsel %vm5160, %v5151, %v4871
    %v5169 = vsel %vm5160, %v5152, %v4873
    %v5170 = vsel %vm5160, %v5153, %v4875
    %v5171 = vsel %vm5160, %v5154, %v4877
    %v5172 = vsel %vm5160, %v5155, %v4879
    %v5173 = vsel %vm5160, %v5156, %v4881
    %v5174 = vsel %vm5160, %v5157, %v4883
    %v5175 = vsel %vm5160, %v5158, %v4885
    %v5176 = vsel %vm5160, %v5159, %v4887
    %vm5177 = vcmask 392192
    %v5178 = vsel %vm5177, %v5161, %v4921
    %v5179 = vsel %vm5177, %v5162, %v4923
    %v5180 = vsel %vm5177, %v5163, %v4925
    %v5181 = vsel %vm5177, %v5164, %v4927
    %v5182 = vsel %vm5177, %v5165, %v4929
    %v5183 = vsel %vm5177, %v5166, %v4931
    %v5184 = vsel %vm5177, %v5167, %v4933
    %v5185 = vsel %vm5177, %v5168, %v4935
    %v5186 = vsel %vm5177, %v5169, %v4937
    %v5187 = vsel %vm5177, %v5170, %v4939
    %v5188 = vsel %vm5177, %v5171, %v4941
    %v5189 = vsel %vm5177, %v5172, %v4943
    %v5190 = vsel %vm5177, %v5173, %v4945
    %v5191 = vsel %vm5177, %v5174, %v4947
    %v5192 = vsel %vm5177, %v5175, %v4949
    %v5193 = vsel %vm5177, %v5176, %v4951
    %vm5194 = vcmask 457728
    %v5195 = vsel %vm5194, %v5178, %v4985
    %v5196 = vsel %vm5194, %v5179, %v4987
    %v5197 = vsel %vm5194, %v5180, %v4989
    %v5198 = vsel %vm5194, %v5181, %v4991
    %v5199 = vsel %vm5194, %v5182, %v4993
    %v5200 = vsel %vm5194, %v5183, %v4995
    %v5201 = vsel %vm5194, %v5184, %v4997
    %v5202 = vsel %vm5194, %v5185, %v4999
    %v5203 = vsel %vm5194, %v5186, %v5001
    %v5204 = vsel %vm5194, %v5187, %v5003
    %v5205 = vsel %vm5194, %v5188, %v5005
    %v5206 = vsel %vm5194, %v5189, %v5007
    %v5207 = vsel %vm5194, %v5190, %v5009
    %v5208 = vsel %vm5194, %v5191, %v5011
    %v5209 = vsel %vm5194, %v5192, %v5013
    %v5210 = vsel %vm5194, %v5193, %v5015
    %vm5211 = vcmask 523264
    %v5212 = vsel %vm5211, %v5195, %v5049
    %v5213 = vsel %vm5211, %v5196, %v5051
    %v5214 = vsel %vm5211, %v5197, %v5053
    %v5215 = vsel %vm5211, %v5198, %v5055
    %v5216 = vsel %vm5211, %v5199, %v5057
    %v5217 = vsel %vm5211, %v5200, %v5059
    %v5218 = vsel %vm5211, %v5201, %v5061
    %v5219 = vsel %vm5211, %v5202, %v5063
    %v5220 = vsel %vm5211, %v5203, %v5065
    %v5221 = vsel %vm5211, %v5204, %v5067
    %v5222 = vsel %vm5211, %v5205, %v5069
    %v5223 = vsel %vm5211, %v5206, %v5071
    %v5224 = vsel %vm5211, %v5207, %v5073
    %v5225 = vsel %vm5211, %v5208, %v5075
    %v5226 = vsel %vm5211, %v5209, %v5077
    %v5227 = vsel %vm5211, %v5210, %v5079
    %v5228 = vld [vmem:[%s6] sm:$0xff]
    %v5229 = vld [vmem:[%s6 + $0x8] sm:$0xff]
    %v5230 = vld [vmem:[%s6 + $0x10] sm:$0xff]
    %v5231 = vld [vmem:[%s6 + $0x18] sm:$0xff]
    %v5232 = vld [vmem:[%s6 + $0x20] sm:$0xff]
    %v5233 = vld [vmem:[%s6 + $0x28] sm:$0xff]
    %v5234 = vld [vmem:[%s6 + $0x30] sm:$0xff]
    %v5235 = vld [vmem:[%s6 + $0x38] sm:$0xff]
    %v5236 = vld [vmem:[%s6 + $0x40] sm:$0xff]
    %vm5237 = vcmask 588800
    %v5239 = vsel %vm5237, %v5212, 0
    %v5242 = vsel %vm5237, %v5213, 0
    %v5245 = vsel %vm5237, %v5214, 0
    %v5248 = vsel %vm5237, %v5215, 0
    %v5251 = vsel %vm5237, %v5216, 0
    %v5254 = vsel %vm5237, %v5217, 0
    %v5257 = vsel %vm5237, %v5218, 0
    %v5260 = vsel %vm5237, %v5219, 0
    %v5263 = vsel %vm5237, %v5220, 0
    %v5266 = vsel %vm5237, %v5221, 0
    %v5269 = vsel %vm5237, %v5222, 0
    %v5272 = vsel %vm5237, %v5223, 0
    %v5275 = vsel %vm5237, %v5224, 0
    %v5278 = vsel %vm5237, %v5225, 0
    %v5281 = vsel %vm5237, %v5226, 0
    %v5284 = vsel %vm5237, %v5227, 0
    %5286 = vmatpush.msra.mxu0 0.0
    %5287 = vmatpush.msra.mxu0 0.0
    %5288 = vmatpush.msra.mxu0 0.0
    %5289 = vmatpush.msra.mxu0 0.0
    %5290 = vmatpush.msra.mxu0 0.0
    %5291 = vmatpush.msra.mxu0 0.0
    %5292 = vmatpush.msra.mxu0 0.0
    %5293 = vmatpush.msra.mxu0 %v5236
    %5294 = vmatpush.msra.mxu0 %v5235
    %5295 = vmatpush.msra.mxu0 %v5234
    %5296 = vmatpush.msra.mxu0 %v5233
    %5297 = vmatpush.msra.mxu0 %v5232
    %5298 = vmatpush.msra.mxu0 %v5231
    %5299 = vmatpush.msra.mxu0 %v5230
    %5300 = vmatpush.msra.mxu0 %v5229
    %5301 = vmatpush.msra.mxu0 %v5228
    %5302 = vmatmul.f32.gmra.mxu0 %v5239
    %v5303 = vpop.f32.mrf.mxu0
    %v5304 = vadd.f32 0.0, %v5303
    %5305 = vmatmul.f32.gmra.mxu0 %v5242
    %v5306 = vpop.f32.mrf.mxu0
    %v5307 = vadd.f32 0.0, %v5306
    %5308 = vmatmul.f32.gmra.mxu0 %v5245
    %v5309 = vpop.f32.mrf.mxu0
    %v5310 = vadd.f32 0.0, %v5309
    %5311 = vmatmul.f32.gmra.mxu0 %v5248
    %v5312 = vpop.f32.mrf.mxu0
    %v5313 = vadd.f32 0.0, %v5312
    %5314 = vmatmul.f32.gmra.mxu0 %v5251
    %v5315 = vpop.f32.mrf.mxu0
    %v5316 = vadd.f32 0.0, %v5315
    %5317 = vmatmul.f32.gmra.mxu0 %v5254
    %v5318 = vpop.f32.mrf.mxu0
    %v5319 = vadd.f32 0.0, %v5318
    %5320 = vmatmul.f32.gmra.mxu0 %v5257
    %v5321 = vpop.f32.mrf.mxu0
    %v5322 = vadd.f32 0.0, %v5321
    %5323 = vmatmul.f32.gmra.mxu0 %v5260
    %v5324 = vpop.f32.mrf.mxu0
    %v5325 = vadd.f32 0.0, %v5324
    %5326 = vmatmul.f32.gmra.mxu0 %v5263
    %v5327 = vpop.f32.mrf.mxu0
    %v5328 = vadd.f32 0.0, %v5327
    %5329 = vmatmul.f32.gmra.mxu0 %v5266
    %v5330 = vpop.f32.mrf.mxu0
    %v5331 = vadd.f32 0.0, %v5330
    %5332 = vmatmul.f32.gmra.mxu0 %v5269
    %v5333 = vpop.f32.mrf.mxu0
    %v5334 = vadd.f32 0.0, %v5333
    %5335 = vmatmul.f32.gmra.mxu0 %v5272
    %v5336 = vpop.f32.mrf.mxu0
    %v5337 = vadd.f32 0.0, %v5336
    %5338 = vmatmul.f32.gmra.mxu0 %v5275
    %v5339 = vpop.f32.mrf.mxu0
    %v5340 = vadd.f32 0.0, %v5339
    %5341 = vmatmul.f32.gmra.mxu0 %v5278
    %v5342 = vpop.f32.mrf.mxu0
    %v5343 = vadd.f32 0.0, %v5342
    %5344 = vmatmul.f32.gmra.mxu0 %v5281
    %v5345 = vpop.f32.mrf.mxu0
    %v5346 = vadd.f32 0.0, %v5345
    %5347 = vmatmul.f32.gmra.mxu0 %v5284
    %v5348 = vpop.f32.mrf.mxu0
    %v5349 = vadd.f32 0.0, %v5348
    %5350 = vdwg.mxu0
    %v5351 = vld [vmem:[%s7] sm:$0x1]
    %v5353 = vperm.slane %v5351, 0
    %v5355 = vmul.f32 %v5304, %v5353
    %v5356 = vmul.f32 %v5307, %v5353
    %v5357 = vmul.f32 %v5310, %v5353
    %v5358 = vmul.f32 %v5313, %v5353
    %v5359 = vmul.f32 %v5316, %v5353
    %v5360 = vmul.f32 %v5319, %v5353
    %v5361 = vmul.f32 %v5322, %v5353
    %v5362 = vmul.f32 %v5325, %v5353
    %v5363 = vmul.f32 %v5328, %v5353
    %v5364 = vmul.f32 %v5331, %v5353
    %v5365 = vmul.f32 %v5334, %v5353
    %v5366 = vmul.f32 %v5337, %v5353
    %v5367 = vmul.f32 %v5340, %v5353
    %v5368 = vmul.f32 %v5343, %v5353
    %v5369 = vmul.f32 %v5346, %v5353
    %v5370 = vmul.f32 %v5349, %v5353
    %v5371 = vld [vmem:[%s8] sm:$0x1]
    %v5373 = vperm.slane %v5371, 0
    %v5375 = vadd.f32 %v5355, %v5373
    %v5376 = vadd.f32 %v5356, %v5373
    %v5377 = vadd.f32 %v5357, %v5373
    %v5378 = vadd.f32 %v5358, %v5373
    %v5379 = vadd.f32 %v5359, %v5373
    %v5380 = vadd.f32 %v5360, %v5373
    %v5381 = vadd.f32 %v5361, %v5373
    %v5382 = vadd.f32 %v5362, %v5373
    %v5383 = vadd.f32 %v5363, %v5373
    %v5384 = vadd.f32 %v5364, %v5373
    %v5385 = vadd.f32 %v5365, %v5373
    %v5386 = vadd.f32 %v5366, %v5373
    %v5387 = vadd.f32 %v5367, %v5373
    %v5388 = vadd.f32 %v5368, %v5373
    %v5389 = vadd.f32 %v5369, %v5373
    %v5390 = vadd.f32 %v5370, %v5373
    %v5391 = vld [vmem:[%s1] sm:$0xff]
    %v5392 = vld [vmem:[%s1 + $0x8] sm:$0xff]
    %v5393 = vld [vmem:[%s1 + $0x10] sm:$0xff]
    %v5394 = vld [vmem:[%s1 + $0x18] sm:$0xff]
    %v5395 = vld [vmem:[%s1 + $0x20] sm:$0xff]
    %v5396 = vld [vmem:[%s1 + $0x28] sm:$0xff]
    %v5397 = vld [vmem:[%s1 + $0x30] sm:$0xff]
    %v5398 = vld [vmem:[%s1 + $0x38] sm:$0xff]
    %v5399 = vld [vmem:[%s1 + $0x40] sm:$0xff]
    %v5400 = vld [vmem:[%s1 + $0x48] sm:$0xff]
    %v5401 = vld [vmem:[%s1 + $0x50] sm:$0xff]
    %v5402 = vld [vmem:[%s1 + $0x58] sm:$0xff]
    %v5403 = vld [vmem:[%s1 + $0x60] sm:$0xff]
    %v5404 = vld [vmem:[%s1 + $0x68] sm:$0xff]
    %v5405 = vld [vmem:[%s1 + $0x70] sm:$0xff]
    %v5406 = vld [vmem:[%s1 + $0x78] sm:$0xff]
    %v5407 = vld [vmem:[%s9] sm:$0xf]
    %v5409 = vsel %vm242, %v5391, 0
    %v5412 = vsel %vm242, %v5392, 0
    %v5415 = vsel %vm242, %v5393, 0
    %v5418 = vsel %vm242, %v5394, 0
    %v5421 = vsel %vm242, %v5395, 0
    %v5424 = vsel %vm242, %v5396, 0
    %v5427 = vsel %vm242, %v5397, 0
    %v5430 = vsel %vm242, %v5398, 0
    %v5433 = vsel %vm242, %v5399, 0
    %v5436 = vsel %vm242, %v5400, 0
    %v5439 = vsel %vm242, %v5401, 0
    %v5442 = vsel %vm242, %v5402, 0
    %v5445 = vsel %vm242, %v5403, 0
    %v5448 = vsel %vm242, %v5404, 0
    %v5451 = vsel %vm242, %v5405, 0
    %v5454 = vsel %vm242, %v5406, 0
    %v5457 = vsel %vm3737, %v5407, 0
    %5459 = vmatpush.msra.mxu0 0.0
    %5460 = vmatpush.msra.mxu0 0.0
    %5461 = vmatpush.msra.mxu0 0.0
    %5462 = vmatpush.msra.mxu0 0.0
    %5463 = vmatpush.msra.mxu0 0.0
    %5464 = vmatpush.msra.mxu0 0.0
    %5465 = vmatpush.msra.mxu0 0.0
    %5466 = vmatpush.msra.mxu0 0.0
    %5467 = vmatpush.msra.mxu0 0.0
    %5468 = vmatpush.msra.mxu0 0.0
    %5469 = vmatpush.msra.mxu0 0.0
    %5470 = vmatpush.msra.mxu0 0.0
    %5471 = vmatpush.msra.mxu0 0.0
    %5472 = vmatpush.msra.mxu0 0.0
    %5473 = vmatpush.msra.mxu0 0.0
    %5474 = vmatpush.msra.mxu0 %v5457
    %5475 = vmatmul.f32.gmra.mxu0 %v5409
    %v5476 = vpop.f32.mrf.mxu0
    %v5477 = vadd.f32 0.0, %v5476
    %5478 = vmatmul.f32.gmra.mxu0 %v5412
    %v5479 = vpop.f32.mrf.mxu0
    %v5480 = vadd.f32 0.0, %v5479
    %5481 = vmatmul.f32.gmra.mxu0 %v5415
    %v5482 = vpop.f32.mrf.mxu0
    %v5483 = vadd.f32 0.0, %v5482
    %5484 = vmatmul.f32.gmra.mxu0 %v5418
    %v5485 = vpop.f32.mrf.mxu0
    %v5486 = vadd.f32 0.0, %v5485
    %5487 = vmatmul.f32.gmra.mxu0 %v5421
    %v5488 = vpop.f32.mrf.mxu0
    %v5489 = vadd.f32 0.0, %v5488
    %5490 = vmatmul.f32.gmra.mxu0 %v5424
    %v5491 = vpop.f32.mrf.mxu0
    %v5492 = vadd.f32 0.0, %v5491
    %5493 = vmatmul.f32.gmra.mxu0 %v5427
    %v5494 = vpop.f32.mrf.mxu0
    %v5495 = vadd.f32 0.0, %v5494
    %5496 = vmatmul.f32.gmra.mxu0 %v5430
    %v5497 = vpop.f32.mrf.mxu0
    %v5498 = vadd.f32 0.0, %v5497
    %5499 = vmatmul.f32.gmra.mxu0 %v5433
    %v5500 = vpop.f32.mrf.mxu0
    %v5501 = vadd.f32 0.0, %v5500
    %5502 = vmatmul.f32.gmra.mxu0 %v5436
    %v5503 = vpop.f32.mrf.mxu0
    %v5504 = vadd.f32 0.0, %v5503
    %5505 = vmatmul.f32.gmra.mxu0 %v5439
    %v5506 = vpop.f32.mrf.mxu0
    %v5507 = vadd.f32 0.0, %v5506
    %5508 = vmatmul.f32.gmra.mxu0 %v5442
    %v5509 = vpop.f32.mrf.mxu0
    %v5510 = vadd.f32 0.0, %v5509
    %5511 = vmatmul.f32.gmra.mxu0 %v5445
    %v5512 = vpop.f32.mrf.mxu0
    %v5513 = vadd.f32 0.0, %v5512
    %5514 = vmatmul.f32.gmra.mxu0 %v5448
    %v5515 = vpop.f32.mrf.mxu0
    %v5516 = vadd.f32 0.0, %v5515
    %5517 = vmatmul.f32.gmra.mxu0 %v5451
    %v5518 = vpop.f32.mrf.mxu0
    %v5519 = vadd.f32 0.0, %v5518
    %5520 = vmatmul.f32.gmra.mxu0 %v5454
    %v5521 = vpop.f32.mrf.mxu0
    %v5522 = vadd.f32 0.0, %v5521
    %5523 = vdwg.mxu0
    %v5524 = vld [vmem:[%s10] sm:$0x1]
    %v5526 = vperm.slane %v5524, 0
    %v5528 = vmul.f32 %v5477, %v5526
    %v5529 = vmul.f32 %v5480, %v5526
    %v5530 = vmul.f32 %v5483, %v5526
    %v5531 = vmul.f32 %v5486, %v5526
    %v5532 = vmul.f32 %v5489, %v5526
    %v5533 = vmul.f32 %v5492, %v5526
    %v5534 = vmul.f32 %v5495, %v5526
    %v5535 = vmul.f32 %v5498, %v5526
    %v5536 = vmul.f32 %v5501, %v5526
    %v5537 = vmul.f32 %v5504, %v5526
    %v5538 = vmul.f32 %v5507, %v5526
    %v5539 = vmul.f32 %v5510, %v5526
    %v5540 = vmul.f32 %v5513, %v5526
    %v5541 = vmul.f32 %v5516, %v5526
    %v5542 = vmul.f32 %v5519, %v5526
    %v5543 = vmul.f32 %v5522, %v5526
    %v5544 = vld [vmem:[%s11] sm:$0x1]
    %v5546 = vperm.slane %v5544, 0
    %v5548 = vadd.f32 %v5528, %v5546
    %v5549 = vadd.f32 %v5529, %v5546
    %v5550 = vadd.f32 %v5530, %v5546
    %v5551 = vadd.f32 %v5531, %v5546
    %v5552 = vadd.f32 %v5532, %v5546
    %v5553 = vadd.f32 %v5533, %v5546
    %v5554 = vadd.f32 %v5534, %v5546
    %v5555 = vadd.f32 %v5535, %v5546
    %v5556 = vadd.f32 %v5536, %v5546
    %v5557 = vadd.f32 %v5537, %v5546
    %v5558 = vadd.f32 %v5538, %v5546
    %v5559 = vadd.f32 %v5539, %v5546
    %v5560 = vadd.f32 %v5540, %v5546
    %v5561 = vadd.f32 %v5541, %v5546
    %v5562 = vadd.f32 %v5542, %v5546
    %v5563 = vadd.f32 %v5543, %v5546
    %v5564 = vadd.f32 %v5375, %v5548
    %v5565 = vadd.f32 %v5376, %v5549
    %v5566 = vadd.f32 %v5377, %v5550
    %v5567 = vadd.f32 %v5378, %v5551
    %v5568 = vadd.f32 %v5379, %v5552
    %v5569 = vadd.f32 %v5380, %v5553
    %v5570 = vadd.f32 %v5381, %v5554
    %v5571 = vadd.f32 %v5382, %v5555
    %v5572 = vadd.f32 %v5383, %v5556
    %v5573 = vadd.f32 %v5384, %v5557
    %v5574 = vadd.f32 %v5385, %v5558
    %v5575 = vadd.f32 %v5386, %v5559
    %v5576 = vadd.f32 %v5387, %v5560
    %v5577 = vadd.f32 %v5388, %v5561
    %v5578 = vadd.f32 %v5389, %v5562
    %v5579 = vadd.f32 %v5390, %v5563
    %5580 = vst.msk [vmem:[#allocation4] sm:$0xff] %vm3084, %v5564
    %5581 = vst.msk [vmem:[#allocation4 + $0x8] sm:$0xff] %vm3084, %v5565
    %5582 = vst.msk [vmem:[#allocation4 + $0x10] sm:$0xff] %vm3084, %v5566
    %5583 = vst.msk [vmem:[#allocation4 + $0x18] sm:$0xff] %vm3084, %v5567
    %5584 = vst.msk [vmem:[#allocation4 + $0x20] sm:$0xff] %vm3084, %v5568
    %5585 = vst.msk [vmem:[#allocation4 + $0x28] sm:$0xff] %vm3084, %v5569
    %5586 = vst.msk [vmem:[#allocation4 + $0x30] sm:$0xff] %vm3084, %v5570
    %5587 = vst.msk [vmem:[#allocation4 + $0x38] sm:$0xff] %vm3084, %v5571
    %5588 = vst.msk [vmem:[#allocation4 + $0x40] sm:$0xff] %vm3084, %v5572
    %5589 = vst.msk [vmem:[#allocation4 + $0x48] sm:$0xff] %vm3084, %v5573
    %5590 = vst.msk [vmem:[#allocation4 + $0x50] sm:$0xff] %vm3084, %v5574
    %5591 = vst.msk [vmem:[#allocation4 + $0x58] sm:$0xff] %vm3084, %v5575
    %5592 = vst.msk [vmem:[#allocation4 + $0x60] sm:$0xff] %vm3084, %v5576
    %5593 = vst.msk [vmem:[#allocation4 + $0x68] sm:$0xff] %vm3084, %v5577
    %5594 = vst.msk [vmem:[#allocation4 + $0x70] sm:$0xff] %vm3084, %v5578
    %5595 = vst.msk [vmem:[#allocation4 + $0x78] sm:$0xff] %vm3084, %v5579
    // Predicated region
    $region50: #{tpu_custom_call.1} parent=1 // pred_check
      _
    $region51: #{tpu_custom_call.1} parent=1 // pred_check_branch
      %5597 = sbr.rel (0) target = $region53
    $region52: #{tpu_custom_call.1} parent=1 // pred_region
      %5599 = vsyncadd [#allocation5], 0
      %s5600 = sshll.u32 [#allocation4], 4
      %s5601 = int_to_ptr.vmem [resolvable:$true] %s5600
      %s5602 = sshll.u32 %s12, 4
      %s5603 = int_to_ptr.hbm [resolvable:$true] %s5602
      %5608 = dma.vmem_to_hbm [thread:$0]  %s5601, 2048, %s5603, [#allocation5], 128, 128, 8
    $region53: #{tpu_custom_call.1} parent=1 // pred_fallthru
      _
    // Predicated region
    $region54: #{tpu_custom_call.1} parent=1 // pred_check
      _
    $region55: #{tpu_custom_call.1} parent=1 // pred_check_branch
      %5610 = sbr.rel (0) target = $region57
    $region56: #{tpu_custom_call.1} parent=1 // pred_region
      %5612 = dma.done [#allocation5], 2048
    $region57: #{tpu_custom_call.1} parent=1 // pred_fallthru
      _
    %5613 = vsyncpa [#allocation5], 1

</llo_original>
